<compile_context>
chip_gen: v7x
topology: tpu7x:2x2x1
jax: 0.10.0
libtpu: 0.0.40
codegen_flags: <defaults>
</compile_context>

<pallas_src>
import jax
import jax.numpy as jnp
import numpy as np
from jax import lax
from jax.experimental import pallas as pl
from jax.experimental.pallas import tpu as pltpu

NEG_SLOPE = 0.01   # nn.LeakyReLU default
BN_EPS = 1e-5      # nn.BatchNorm2d default


def _snap_bf16(x):
    """Round values onto the bf16 grid (stored f32) so the kernel's bf16 weights
    match the f32 reference weights exactly; isolates layout/activation error."""
    return x.astype(jnp.bfloat16).astype(jnp.float32)


# ------------------------------ fused kernel ----------------------------------
def _classifier_kernel(x_ref, w1_ref, b1_ref,
                       w2_ref, b2_ref, g2_ref, be2_ref,
                       w3_ref, b3_ref, g3_ref, be3_ref,
                       w4_hbm_ref, b4_ref, g4_ref, be4_ref,
                       w5_ref, b5_ref,
                       out_ref,
                       w4_vmem, w4_sem, a1_ref, a2_ref, a3_ref):
    f32 = jnp.float32
    bf16 = jnp.bfloat16

    # Kick off the 2 MB layer-4 weight fetch; consumed only after layers 1-3.
    w4_copy = pltpu.make_async_copy(w4_hbm_ref, w4_vmem, w4_sem)
    w4_copy.start()

    def leaky(z):
        return jnp.where(z >= 0, z, NEG_SLOPE * z)

    def bn(z, g, be):
        # training-mode BatchNorm2d over all (batch, spatial) rows; two-pass stats.
        inv_n = 1.0 / z.shape[0]
        mean = jnp.sum(z, axis=0, keepdims=True) * inv_n
        c = z - mean
        var = jnp.sum(c * c, axis=0, keepdims=True) * inv_n
        return c * lax.rsqrt(var + BN_EPS) * g + be

    # ---- layer 1: Conv2d(1->64,(1,12),s(1,12)) + LeakyReLU --------------------
    # x rows = (kh3, h3, wp, b); cols = (kh2, 12 taps).  W1 is block-diagonal so
    # a1 lanes come out as (kh2, c1): layer 2 becomes a single lane-dense dot.
    z1 = jnp.dot(x_ref[...], w1_ref[...], preferred_element_type=f32)
    a1_ref[...] = leaky(z1 + b1_ref[...]).astype(bf16)

    # ---- layer 2: Conv2d(64->128,(4,1),s(4,1)) + BN + LeakyReLU ---------------
    z2 = jnp.dot(a1_ref[...], w2_ref[...], preferred_element_type=f32) + b2_ref[...]
    act2 = leaky(bn(z2, g2_ref[...], be2_ref[...])).astype(bf16)
    # scatter the 2 layer-3 kernel-position row blocks into lane blocks
    r3 = a2_ref.shape[0]
    a2_ref[:, 0:128] = act2[0:r3, :]
    a2_ref[:, 128:256] = act2[r3:2 * r3, :]

    # ---- layer 3: Conv2d(128->256,(2,1),s(2,1)) + BN + LeakyReLU --------------
    z3 = jnp.dot(a2_ref[...], w3_ref[...], preferred_element_type=f32) + b3_ref[...]
    act3 = leaky(bn(z3, g3_ref[...], be3_ref[...])).astype(bf16)
    # scatter the 8 layer-4 kernel-position row blocks into lane blocks
    r4 = a3_ref.shape[0]
    for j in range(8):
        a3_ref[:, j * 256:(j + 1) * 256] = act3[j * r4:(j + 1) * r4, :]

    # ---- layer 4: Conv2d(256->512,(8,1),s(8,1)) + BN + LeakyReLU --------------
    w4_copy.wait()                       # weight DMA hidden behind layers 1-3
    z4 = jnp.dot(a3_ref[...], w4_vmem[...], preferred_element_type=f32) + b4_ref[...]
    act4 = leaky(bn(z4, g4_ref[...], be4_ref[...]))       # (B*7, 512) f32, rows (wp, b)

    # ---- layer 5: Conv2d(512->2,(1,7),s(1,7)) -- only 2 outputs, on the VPU ---
    bsz = out_ref.shape[0]
    for n in range(2):
        col = jnp.sum(act4[0:bsz, :] * w5_ref[n:n + 1, 0:512],
                      axis=1, keepdims=True)
        for j in range(1, 7):
            col = col + jnp.sum(act4[j * bsz:(j + 1) * bsz, :] *
                                w5_ref[n:n + 1, j * 512:(j + 1) * 512],
                                axis=1, keepdims=True)
        out_ref[:, n:n + 1] = col + b5_ref[:, n:n + 1]


# ------------------------- forward pass (one launch) ---------------------------
def classifier_forward(image, wp):
    B = image.shape[0]
    # torch: image.view(B,1,64,84).  Decompose h = h3*8 + kh3*4 + kh2, w = wp*12+t
    # and order rows (kh3, h3, wp, b) x cols (kh2, t) so every layer becomes one
    # lane-dense matmul inside the fused kernel.  (~43 KB one-off transpose.)
    x = image.reshape(B, 8, 2, 4, 7, 12).transpose(2, 1, 4, 0, 3, 5)
    x = x.reshape(B * 112, 48).astype(jnp.bfloat16)

    vmem_spec = pl.BlockSpec(memory_space=pltpu.MemorySpace.VMEM)
    in_specs = [vmem_spec] * 17
    in_specs[11] = pl.BlockSpec(memory_space=pl.ANY)   # w4 stays in HBM; DMA'd in-kernel

    return pl.pallas_call(
        _classifier_kernel,
        out_shape=jax.ShapeDtypeStruct((B, 2), jnp.float32),
        in_specs=in_specs,
        out_specs=pl.BlockSpec(memory_space=pltpu.MemorySpace.VMEM),
        scratch_shapes=[
            pltpu.VMEM((2048, 512), jnp.bfloat16),      # layer-4 weight landing buffer
            pltpu.SemaphoreType.DMA(()),                # its completion semaphore
            pltpu.VMEM((B * 112, 256), jnp.bfloat16),   # layer-1 activations (kh2-folded)
            pltpu.VMEM((B * 56, 256), jnp.bfloat16),    # layer-2 activations (kh3-folded)
            pltpu.VMEM((B * 7, 2048), jnp.bfloat16),    # layer-3 activations (h3-folded)
        ],
    )(x, wp["w1"], wp["b1"],
      wp["w2"], wp["b2"], wp["g2"], wp["be2"],
      wp["w3"], wp["b3"], wp["g3"], wp["be3"],
      wp["w4"], wp["b4"], wp["g4"], wp["be4"],
      wp["w5"], wp["b5"])


# ------------------- one-time parameter repack (not in hot path) ---------------
def prepare_params(p):
    """Repack conv weights into bf16 (K, N) matmul layout with kernel positions
    folded into K; bias/BN params as (1, N) f32; final conv kept f32 (VPU)."""
    f32, bf16 = jnp.float32, jnp.bfloat16
    wp = {}
    # layer 1: block-diagonal (48, 256) so a1 lanes are (layer-2 kernel pos, c1)
    w1m = p["w1"].reshape(64, 12).T                                  # (12, 64): [t, c1]
    w1bd = jnp.zeros((48, 256), f32)
    for j in range(4):
        w1bd = w1bd.at[j * 12:(j + 1) * 12, j * 64:(j + 1) * 64].set(w1m)
    wp["w1"] = w1bd.astype(bf16)
    wp["b1"] = jnp.tile(p["b1"].reshape(1, 64), (1, 4)).astype(f32)  # (1, 256)

    wp["w2"] = p["w2"][:, :, :, 0].transpose(2, 1, 0).reshape(256, 128).astype(bf16)
    wp["b2"] = p["b2"].reshape(1, 128).astype(f32)
    wp["g2"] = p["g2"].reshape(1, 128).astype(f32)
    wp["be2"] = p["be2"].reshape(1, 128).astype(f32)

    wp["w3"] = p["w3"][:, :, :, 0].transpose(2, 1, 0).reshape(256, 256).astype(bf16)
    wp["b3"] = p["b3"].reshape(1, 256).astype(f32)
    wp["g3"] = p["g3"].reshape(1, 256).astype(f32)
    wp["be3"] = p["be3"].reshape(1, 256).astype(f32)

    wp["w4"] = p["w4"][:, :, :, 0].transpose(2, 1, 0).reshape(2048, 512).astype(bf16)
    wp["b4"] = p["b4"].reshape(1, 512).astype(f32)
    wp["g4"] = p["g4"].reshape(1, 512).astype(f32)
    wp["be4"] = p["be4"].reshape(1, 512).astype(f32)

    # final 1x7 conv, lane-dense (co, wp*512 + ci); tiny, keep f32 (used on VPU)
    wp["w5"] = p["w5"][:, :, 0, :].transpose(0, 2, 1).reshape(2, 7 * 512).astype(f32)
    wp["b5"] = p["b5"].reshape(1, 2).astype(f32)
    return wp


# ------------------------------ pure-JAX reference -----------------------------
def _conv_nchw(x, w, b, stride):
    y = lax.conv_general_dilated(x, w, window_strides=stride, padding="VALID",
                                 dimension_numbers=("NCHW", "OIHW", "NCHW"),
                                 precision=lax.Precision.HIGHEST)
    return y + b.reshape(1, -1, 1, 1)


def _bn_train(x, g, b):
    m = jnp.mean(x, axis=(0, 2, 3), keepdims=True)
    v = jnp.mean((x - m) ** 2, axis=(0, 2, 3), keepdims=True)
    return (x - m) * lax.rsqrt(v + BN_EPS) * g.reshape(1, -1, 1, 1) + b.reshape(1, -1, 1, 1)


def _leaky(x):
    return jnp.where(x >= 0, x, NEG_SLOPE * x)


def reference_forward(image, p):
    B = image.shape[0]
    x = image.reshape(B, 1, 64, 84)
    x = _leaky(_conv_nchw(x, p["w1"], p["b1"], (1, 12)))
    x = _leaky(_bn_train(_conv_nchw(x, p["w2"], p["b2"], (4, 1)), p["g2"], p["be2"]))
    x = _leaky(_bn_train(_conv_nchw(x, p["w3"], p["b3"], (2, 1)), p["g3"], p["be3"]))
    x = _leaky(_bn_train(_conv_nchw(x, p["w4"], p["b4"], (8, 1)), p["g4"], p["be4"]))
    x = _conv_nchw(x, p["w5"], p["b5"], (1, 7))
    return x.reshape(B, 2)


# ---------------------------------- params -------------------------------------
def init_params(key):
    ks = jax.random.split(key, 20)

    def w_init(k, shape):
        fan_in = shape[1] * shape[2] * shape[3]
        w = jax.random.normal(k, shape, jnp.float32) / jnp.sqrt(float(fan_in))
        return _snap_bf16(w)     # bf16-representable -> kernel/reference weights identical

    p = {}
    p["w1"] = w_init(ks[0], (64, 1, 1, 12))
    p["b1"] = 0.01 * jax.random.normal(ks[1], (64,), jnp.float32)
    p["w2"] = w_init(ks[2], (128, 64, 4, 1))
    p["b2"] = 0.01 * jax.random.normal(ks[3], (128,), jnp.float32)
    p["g2"] = 1.0 + 0.1 * jax.random.normal(ks[4], (128,), jnp.float32)
    p["be2"] = 0.1 * jax.random.normal(ks[5], (128,), jnp.float32)
    p["w3"] = w_init(ks[6], (256, 128, 2, 1))
    p["b3"] = 0.01 * jax.random.normal(ks[7], (256,), jnp.float32)
    p["g3"] = 1.0 + 0.1 * jax.random.normal(ks[8], (256,), jnp.float32)
    p["be3"] = 0.1 * jax.random.normal(ks[9], (256,), jnp.float32)
    p["w4"] = w_init(ks[10], (512, 256, 8, 1))
    p["b4"] = 0.01 * jax.random.normal(ks[11], (512,), jnp.float32)
    p["g4"] = 1.0 + 0.1 * jax.random.normal(ks[12], (512,), jnp.float32)
    p["be4"] = 0.1 * jax.random.normal(ks[13], (512,), jnp.float32)
    p["w5"] = w_init(ks[14], (2, 512, 1, 7))
    p["b5"] = 0.01 * jax.random.normal(ks[15], (2,), jnp.float32)
    return p


if __name__ == "__main__":
    key = jax.random.PRNGKey(0)
    pkey, xkey = jax.random.split(key)
    params = init_params(pkey)
    wp = prepare_params(params)          # one-time weight repack (outside hot path)
    # forward() requires H=64, W=84 (strides reduce them exactly to 1x1); batch=2.
    image = _snap_bf16(jax.random.normal(xkey, (2, 64, 84, 1), jnp.float32))

    fwd = jax.jit(classifier_forward)
    out = jax.block_until_ready(fwd(image, wp))
    assert out.shape == (2, 2)

    ref = reference_forward(image, params)
    # Weights/input are exactly bf16-representable; the remaining delta comes from
    # bf16 activation storage between layers vs. the all-f32 reference.
    np.testing.assert_allclose(np.asarray(out), np.asarray(ref), rtol=3e-2, atol=3e-2)
    print("KERNEL_OK")
</pallas_src>

<mosaic_0001>
module attributes {stable_mosaic.version = 11 : i64} {
  func.func @_classifier_kernel(%arg0: memref<224x48xbf16, #tpu.memory_space<vmem>>, %arg1: memref<48x256xbf16, #tpu.memory_space<vmem>>, %arg2: memref<1x256xf32, #tpu.memory_space<vmem>>, %arg3: memref<256x128xbf16, #tpu.memory_space<vmem>>, %arg4: memref<1x128xf32, #tpu.memory_space<vmem>>, %arg5: memref<1x128xf32, #tpu.memory_space<vmem>>, %arg6: memref<1x128xf32, #tpu.memory_space<vmem>>, %arg7: memref<256x256xbf16, #tpu.memory_space<vmem>>, %arg8: memref<1x256xf32, #tpu.memory_space<vmem>>, %arg9: memref<1x256xf32, #tpu.memory_space<vmem>>, %arg10: memref<1x256xf32, #tpu.memory_space<vmem>>, %arg11: memref<2048x512xbf16, #tpu.memory_space<any>>, %arg12: memref<1x512xf32, #tpu.memory_space<vmem>>, %arg13: memref<1x512xf32, #tpu.memory_space<vmem>>, %arg14: memref<1x512xf32, #tpu.memory_space<vmem>>, %arg15: memref<2x3584xf32, #tpu.memory_space<vmem>>, %arg16: memref<1x2xf32, #tpu.memory_space<vmem>>, %arg17: memref<2x2xf32, #tpu.memory_space<vmem>>, %arg18: memref<2048x512xbf16, #tpu.memory_space<vmem>>, %arg19: memref<!tpu.dma_semaphore, #tpu.memory_space<semaphore_mem>>, %arg20: memref<224x256xbf16, #tpu.memory_space<vmem>>, %arg21: memref<112x256xbf16, #tpu.memory_space<vmem>>, %arg22: memref<14x2048xbf16, #tpu.memory_space<vmem>>) attributes {dimension_semantics = [], scalar_prefetch = 0 : i64, scratch_operands = 5 : i64, tpu.core_type = #tpu.core_type<tc>} {
    tpu.enqueue_dma source(%arg11 : memref<2048x512xbf16, #tpu.memory_space<any>>) target(%arg18 : memref<2048x512xbf16, #tpu.memory_space<vmem>>) target_semaphore(%arg19 : memref<!tpu.dma_semaphore, #tpu.memory_space<semaphore_mem>>)
    %c0 = arith.constant 0 : index
    %c0_0 = arith.constant 0 : index
    %0 = vector.load %arg0[%c0, %c0_0] : memref<224x48xbf16, #tpu.memory_space<vmem>>, vector<224x48xbf16>
    %c0_1 = arith.constant 0 : index
    %c0_2 = arith.constant 0 : index
    %1 = vector.load %arg1[%c0_1, %c0_2] : memref<48x256xbf16, #tpu.memory_space<vmem>>, vector<48x256xbf16>
    %cst = arith.constant dense<0.000000e+00> : vector<224x256xf32>
    %2 = tpu.matmul %0, %1, %cst {dimension_numbers = #tpu.dot_dimension_numbers<[1], [0], [0], [1], [0, 0, 1, 1], [], []>} : vector<224x48xbf16>, vector<48x256xbf16>, vector<224x256xf32> -> vector<224x256xf32>
    %c0_3 = arith.constant 0 : index
    %c0_4 = arith.constant 0 : index
    %3 = vector.load %arg2[%c0_3, %c0_4] : memref<1x256xf32, #tpu.memory_space<vmem>>, vector<1x256xf32>
    %4 = vector.broadcast %3 : vector<1x256xf32> to vector<224x256xf32>
    %5 = arith.addf %2, %4 : vector<224x256xf32>
    %cst_5 = arith.constant 0.000000e+00 : f32
    %6 = vector.broadcast %cst_5 : f32 to vector<224x256xf32>
    %7 = arith.cmpf oge, %5, %6 : vector<224x256xf32>
    %cst_6 = arith.constant 0.00999999977 : f32
    %8 = vector.broadcast %cst_6 : f32 to vector<224x256xf32>
    %9 = arith.mulf %8, %5 : vector<224x256xf32>
    %10 = arith.select %7, %5, %9 : vector<224x256xi1>, vector<224x256xf32>
    %11 = arith.truncf %10 : vector<224x256xf32> to vector<224x256xbf16>
    %c0_7 = arith.constant 0 : index
    %c0_8 = arith.constant 0 : index
    %12 = vector.load %arg20[%c0_7, %c0_8] : memref<224x256xbf16, #tpu.memory_space<vmem>>, vector<224x256xbf16>
    tpu.vector_store %arg20[%c0_7, %c0_8], %11 {strides = array<i32>} : memref<224x256xbf16, #tpu.memory_space<vmem>>, vector<224x256xbf16>,
    %c0_9 = arith.constant 0 : index
    %c0_10 = arith.constant 0 : index
    %13 = vector.load %arg20[%c0_9, %c0_10] : memref<224x256xbf16, #tpu.memory_space<vmem>>, vector<224x256xbf16>
    %c0_11 = arith.constant 0 : index
    %c0_12 = arith.constant 0 : index
    %14 = vector.load %arg3[%c0_11, %c0_12] : memref<256x128xbf16, #tpu.memory_space<vmem>>, vector<256x128xbf16>
    %cst_13 = arith.constant dense<0.000000e+00> : vector<224x128xf32>
    %15 = tpu.matmul %13, %14, %cst_13 {dimension_numbers = #tpu.dot_dimension_numbers<[1], [0], [0], [1], [0, 0, 1, 1], [], []>} : vector<224x256xbf16>, vector<256x128xbf16>, vector<224x128xf32> -> vector<224x128xf32>
    %c0_14 = arith.constant 0 : index
    %c0_15 = arith.constant 0 : index
    %16 = vector.load %arg4[%c0_14, %c0_15] : memref<1x128xf32, #tpu.memory_space<vmem>>, vector<1x128xf32>
    %17 = vector.broadcast %16 : vector<1x128xf32> to vector<224x128xf32>
    %18 = arith.addf %15, %17 : vector<224x128xf32>
    %c0_16 = arith.constant 0 : index
    %c0_17 = arith.constant 0 : index
    %19 = vector.load %arg5[%c0_16, %c0_17] : memref<1x128xf32, #tpu.memory_space<vmem>>, vector<1x128xf32>
    %c0_18 = arith.constant 0 : index
    %c0_19 = arith.constant 0 : index
    %20 = vector.load %arg6[%c0_18, %c0_19] : memref<1x128xf32, #tpu.memory_space<vmem>>, vector<1x128xf32>
    %cst_20 = arith.constant dense<0.000000e+00> : vector<128xf32>
    %21 = vector.multi_reduction <add>, %18, %cst_20 [0] : vector<224x128xf32> to vector<128xf32>
    %22 = vector.shape_cast %21 : vector<128xf32> to vector<1x128xf32>
    %cst_21 = arith.constant 0.00446428591 : f32
    %23 = vector.broadcast %cst_21 : f32 to vector<1x128xf32>
    %24 = arith.mulf %22, %23 : vector<1x128xf32>
    %25 = vector.broadcast %24 : vector<1x128xf32> to vector<224x128xf32>
    %26 = arith.subf %18, %25 : vector<224x128xf32>
    %27 = arith.mulf %26, %26 : vector<224x128xf32>
    %cst_22 = arith.constant dense<0.000000e+00> : vector<128xf32>
    %28 = vector.multi_reduction <add>, %27, %cst_22 [0] : vector<224x128xf32> to vector<128xf32>
    %29 = vector.shape_cast %28 : vector<128xf32> to vector<1x128xf32>
    %cst_23 = arith.constant 0.00446428591 : f32
    %30 = vector.broadcast %cst_23 : f32 to vector<1x128xf32>
    %31 = arith.mulf %29, %30 : vector<1x128xf32>
    %cst_24 = arith.constant 9.99999974E-6 : f32
    %32 = vector.broadcast %cst_24 : f32 to vector<1x128xf32>
    %33 = arith.addf %31, %32 : vector<1x128xf32>
    %34 = math.rsqrt %33 : vector<1x128xf32>
    %35 = vector.broadcast %34 : vector<1x128xf32> to vector<224x128xf32>
    %36 = arith.mulf %26, %35 : vector<224x128xf32>
    %37 = vector.broadcast %19 : vector<1x128xf32> to vector<224x128xf32>
    %38 = arith.mulf %36, %37 : vector<224x128xf32>
    %39 = vector.broadcast %20 : vector<1x128xf32> to vector<224x128xf32>
    %40 = arith.addf %38, %39 : vector<224x128xf32>
    %cst_25 = arith.constant 0.000000e+00 : f32
    %41 = vector.broadcast %cst_25 : f32 to vector<224x128xf32>
    %42 = arith.cmpf oge, %40, %41 : vector<224x128xf32>
    %cst_26 = arith.constant 0.00999999977 : f32
    %43 = vector.broadcast %cst_26 : f32 to vector<224x128xf32>
    %44 = arith.mulf %43, %40 : vector<224x128xf32>
    %45 = arith.select %42, %40, %44 : vector<224x128xi1>, vector<224x128xf32>
    %46 = arith.truncf %45 : vector<224x128xf32> to vector<224x128xbf16>
    %47 = vector.extract_strided_slice %46 {offsets = [0, 0], sizes = [112, 128], strides = [1, 1]} : vector<224x128xbf16> to vector<112x128xbf16>
    %c0_27 = arith.constant 0 : index
    %c0_28 = arith.constant 0 : index
    %48 = vector.load %arg21[%c0_27, %c0_28] : memref<112x256xbf16, #tpu.memory_space<vmem>>, vector<112x128xbf16>
    tpu.vector_store %arg21[%c0_27, %c0_28], %47 {strides = array<i32>} : memref<112x256xbf16, #tpu.memory_space<vmem>>, vector<112x128xbf16>,
    %49 = vector.extract_strided_slice %46 {offsets = [112, 0], sizes = [112, 128], strides = [1, 1]} : vector<224x128xbf16> to vector<112x128xbf16>
    %c0_29 = arith.constant 0 : index
    %c128 = arith.constant 128 : index
    %50 = vector.load %arg21[%c0_29, %c128] : memref<112x256xbf16, #tpu.memory_space<vmem>>, vector<112x128xbf16>
    tpu.vector_store %arg21[%c0_29, %c128], %49 {strides = array<i32>} : memref<112x256xbf16, #tpu.memory_space<vmem>>, vector<112x128xbf16>,
    %c0_30 = arith.constant 0 : index
    %c0_31 = arith.constant 0 : index
    %51 = vector.load %arg21[%c0_30, %c0_31] : memref<112x256xbf16, #tpu.memory_space<vmem>>, vector<112x256xbf16>
    %c0_32 = arith.constant 0 : index
    %c0_33 = arith.constant 0 : index
    %52 = vector.load %arg7[%c0_32, %c0_33] : memref<256x256xbf16, #tpu.memory_space<vmem>>, vector<256x256xbf16>
    %cst_34 = arith.constant dense<0.000000e+00> : vector<112x256xf32>
    %53 = tpu.matmul %51, %52, %cst_34 {dimension_numbers = #tpu.dot_dimension_numbers<[1], [0], [0], [1], [0, 0, 1, 1], [], []>} : vector<112x256xbf16>, vector<256x256xbf16>, vector<112x256xf32> -> vector<112x256xf32>
    %c0_35 = arith.constant 0 : index
    %c0_36 = arith.constant 0 : index
    %54 = vector.load %arg8[%c0_35, %c0_36] : memref<1x256xf32, #tpu.memory_space<vmem>>, vector<1x256xf32>
    %55 = vector.broadcast %54 : vector<1x256xf32> to vector<112x256xf32>
    %56 = arith.addf %53, %55 : vector<112x256xf32>
    %c0_37 = arith.constant 0 : index
    %c0_38 = arith.constant 0 : index
    %57 = vector.load %arg9[%c0_37, %c0_38] : memref<1x256xf32, #tpu.memory_space<vmem>>, vector<1x256xf32>
    %c0_39 = arith.constant 0 : index
    %c0_40 = arith.constant 0 : index
    %58 = vector.load %arg10[%c0_39, %c0_40] : memref<1x256xf32, #tpu.memory_space<vmem>>, vector<1x256xf32>
    %cst_41 = arith.constant dense<0.000000e+00> : vector<256xf32>
    %59 = vector.multi_reduction <add>, %56, %cst_41 [0] : vector<112x256xf32> to vector<256xf32>
    %60 = vector.shape_cast %59 : vector<256xf32> to vector<1x256xf32>
    %cst_42 = arith.constant 0.00892857183 : f32
    %61 = vector.broadcast %cst_42 : f32 to vector<1x256xf32>
    %62 = arith.mulf %60, %61 : vector<1x256xf32>
    %63 = vector.broadcast %62 : vector<1x256xf32> to vector<112x256xf32>
    %64 = arith.subf %56, %63 : vector<112x256xf32>
    %65 = arith.mulf %64, %64 : vector<112x256xf32>
    %cst_43 = arith.constant dense<0.000000e+00> : vector<256xf32>
    %66 = vector.multi_reduction <add>, %65, %cst_43 [0] : vector<112x256xf32> to vector<256xf32>
    %67 = vector.shape_cast %66 : vector<256xf32> to vector<1x256xf32>
    %cst_44 = arith.constant 0.00892857183 : f32
    %68 = vector.broadcast %cst_44 : f32 to vector<1x256xf32>
    %69 = arith.mulf %67, %68 : vector<1x256xf32>
    %cst_45 = arith.constant 9.99999974E-6 : f32
    %70 = vector.broadcast %cst_45 : f32 to vector<1x256xf32>
    %71 = arith.addf %69, %70 : vector<1x256xf32>
    %72 = math.rsqrt %71 : vector<1x256xf32>
    %73 = vector.broadcast %72 : vector<1x256xf32> to vector<112x256xf32>
    %74 = arith.mulf %64, %73 : vector<112x256xf32>
    %75 = vector.broadcast %57 : vector<1x256xf32> to vector<112x256xf32>
    %76 = arith.mulf %74, %75 : vector<112x256xf32>
    %77 = vector.broadcast %58 : vector<1x256xf32> to vector<112x256xf32>
    %78 = arith.addf %76, %77 : vector<112x256xf32>
    %cst_46 = arith.constant 0.000000e+00 : f32
    %79 = vector.broadcast %cst_46 : f32 to vector<112x256xf32>
    %80 = arith.cmpf oge, %78, %79 : vector<112x256xf32>
    %cst_47 = arith.constant 0.00999999977 : f32
    %81 = vector.broadcast %cst_47 : f32 to vector<112x256xf32>
    %82 = arith.mulf %81, %78 : vector<112x256xf32>
    %83 = arith.select %80, %78, %82 : vector<112x256xi1>, vector<112x256xf32>
    %84 = arith.truncf %83 : vector<112x256xf32> to vector<112x256xbf16>
    %85 = vector.extract_strided_slice %84 {offsets = [0, 0], sizes = [14, 256], strides = [1, 1]} : vector<112x256xbf16> to vector<14x256xbf16>
    %c0_48 = arith.constant 0 : index
    %c0_49 = arith.constant 0 : index
    %86 = vector.load %arg22[%c0_48, %c0_49] : memref<14x2048xbf16, #tpu.memory_space<vmem>>, vector<14x256xbf16>
    tpu.vector_store %arg22[%c0_48, %c0_49], %85 {strides = array<i32>} : memref<14x2048xbf16, #tpu.memory_space<vmem>>, vector<14x256xbf16>,
    %87 = vector.extract_strided_slice %84 {offsets = [14, 0], sizes = [14, 256], strides = [1, 1]} : vector<112x256xbf16> to vector<14x256xbf16>
    %c0_50 = arith.constant 0 : index
    %c256 = arith.constant 256 : index
    %88 = vector.load %arg22[%c0_50, %c256] : memref<14x2048xbf16, #tpu.memory_space<vmem>>, vector<14x256xbf16>
    tpu.vector_store %arg22[%c0_50, %c256], %87 {strides = array<i32>} : memref<14x2048xbf16, #tpu.memory_space<vmem>>, vector<14x256xbf16>,
    %89 = vector.extract_strided_slice %84 {offsets = [28, 0], sizes = [14, 256], strides = [1, 1]} : vector<112x256xbf16> to vector<14x256xbf16>
    %c0_51 = arith.constant 0 : index
    %c512 = arith.constant 512 : index
    %90 = vector.load %arg22[%c0_51, %c512] : memref<14x2048xbf16, #tpu.memory_space<vmem>>, vector<14x256xbf16>
    tpu.vector_store %arg22[%c0_51, %c512], %89 {strides = array<i32>} : memref<14x2048xbf16, #tpu.memory_space<vmem>>, vector<14x256xbf16>,
    %91 = vector.extract_strided_slice %84 {offsets = [42, 0], sizes = [14, 256], strides = [1, 1]} : vector<112x256xbf16> to vector<14x256xbf16>
    %c0_52 = arith.constant 0 : index
    %c768 = arith.constant 768 : index
    %92 = vector.load %arg22[%c0_52, %c768] : memref<14x2048xbf16, #tpu.memory_space<vmem>>, vector<14x256xbf16>
    tpu.vector_store %arg22[%c0_52, %c768], %91 {strides = array<i32>} : memref<14x2048xbf16, #tpu.memory_space<vmem>>, vector<14x256xbf16>,
    %93 = vector.extract_strided_slice %84 {offsets = [56, 0], sizes = [14, 256], strides = [1, 1]} : vector<112x256xbf16> to vector<14x256xbf16>
    %c0_53 = arith.constant 0 : index
    %c1024 = arith.constant 1024 : index
    %94 = vector.load %arg22[%c0_53, %c1024] : memref<14x2048xbf16, #tpu.memory_space<vmem>>, vector<14x256xbf16>
    tpu.vector_store %arg22[%c0_53, %c1024], %93 {strides = array<i32>} : memref<14x2048xbf16, #tpu.memory_space<vmem>>, vector<14x256xbf16>,
    %95 = vector.extract_strided_slice %84 {offsets = [70, 0], sizes = [14, 256], strides = [1, 1]} : vector<112x256xbf16> to vector<14x256xbf16>
    %c0_54 = arith.constant 0 : index
    %c1280 = arith.constant 1280 : index
    %96 = vector.load %arg22[%c0_54, %c1280] : memref<14x2048xbf16, #tpu.memory_space<vmem>>, vector<14x256xbf16>
    tpu.vector_store %arg22[%c0_54, %c1280], %95 {strides = array<i32>} : memref<14x2048xbf16, #tpu.memory_space<vmem>>, vector<14x256xbf16>,
    %97 = vector.extract_strided_slice %84 {offsets = [84, 0], sizes = [14, 256], strides = [1, 1]} : vector<112x256xbf16> to vector<14x256xbf16>
    %c0_55 = arith.constant 0 : index
    %c1536 = arith.constant 1536 : index
    %98 = vector.load %arg22[%c0_55, %c1536] : memref<14x2048xbf16, #tpu.memory_space<vmem>>, vector<14x256xbf16>
    tpu.vector_store %arg22[%c0_55, %c1536], %97 {strides = array<i32>} : memref<14x2048xbf16, #tpu.memory_space<vmem>>, vector<14x256xbf16>,
    %99 = vector.extract_strided_slice %84 {offsets = [98, 0], sizes = [14, 256], strides = [1, 1]} : vector<112x256xbf16> to vector<14x256xbf16>
    %c0_56 = arith.constant 0 : index
    %c1792 = arith.constant 1792 : index
    %100 = vector.load %arg22[%c0_56, %c1792] : memref<14x2048xbf16, #tpu.memory_space<vmem>>, vector<14x256xbf16>
    tpu.vector_store %arg22[%c0_56, %c1792], %99 {strides = array<i32>} : memref<14x2048xbf16, #tpu.memory_space<vmem>>, vector<14x256xbf16>,
    tpu.wait_dma2 semaphore(%arg19 : memref<!tpu.dma_semaphore, #tpu.memory_space<semaphore_mem>>) src(%arg11 : memref<2048x512xbf16, #tpu.memory_space<any>>) dst(%arg18 : memref<2048x512xbf16, #tpu.memory_space<vmem>>)
    %c0_57 = arith.constant 0 : index
    %c0_58 = arith.constant 0 : index
    %101 = vector.load %arg22[%c0_57, %c0_58] : memref<14x2048xbf16, #tpu.memory_space<vmem>>, vector<14x2048xbf16>
    %c0_59 = arith.constant 0 : index
    %c0_60 = arith.constant 0 : index
    %102 = vector.load %arg18[%c0_59, %c0_60] : memref<2048x512xbf16, #tpu.memory_space<vmem>>, vector<2048x512xbf16>
    %cst_61 = arith.constant dense<0.000000e+00> : vector<14x512xf32>
    %103 = tpu.matmul %101, %102, %cst_61 {dimension_numbers = #tpu.dot_dimension_numbers<[1], [0], [0], [1], [0, 0, 1, 1], [], []>} : vector<14x2048xbf16>, vector<2048x512xbf16>, vector<14x512xf32> -> vector<14x512xf32>
    %c0_62 = arith.constant 0 : index
    %c0_63 = arith.constant 0 : index
    %104 = vector.load %arg12[%c0_62, %c0_63] : memref<1x512xf32, #tpu.memory_space<vmem>>, vector<1x512xf32>
    %105 = vector.broadcast %104 : vector<1x512xf32> to vector<14x512xf32>
    %106 = arith.addf %103, %105 : vector<14x512xf32>
    %c0_64 = arith.constant 0 : index
    %c0_65 = arith.constant 0 : index
    %107 = vector.load %arg13[%c0_64, %c0_65] : memref<1x512xf32, #tpu.memory_space<vmem>>, vector<1x512xf32>
    %c0_66 = arith.constant 0 : index
    %c0_67 = arith.constant 0 : index
    %108 = vector.load %arg14[%c0_66, %c0_67] : memref<1x512xf32, #tpu.memory_space<vmem>>, vector<1x512xf32>
    %cst_68 = arith.constant dense<0.000000e+00> : vector<512xf32>
    %109 = vector.multi_reduction <add>, %106, %cst_68 [0] : vector<14x512xf32> to vector<512xf32>
    %110 = vector.shape_cast %109 : vector<512xf32> to vector<1x512xf32>
    %cst_69 = arith.constant 0.0714285746 : f32
    %111 = vector.broadcast %cst_69 : f32 to vector<1x512xf32>
    %112 = arith.mulf %110, %111 : vector<1x512xf32>
    %113 = vector.broadcast %112 : vector<1x512xf32> to vector<14x512xf32>
    %114 = arith.subf %106, %113 : vector<14x512xf32>
    %115 = arith.mulf %114, %114 : vector<14x512xf32>
    %cst_70 = arith.constant dense<0.000000e+00> : vector<512xf32>
    %116 = vector.multi_reduction <add>, %115, %cst_70 [0] : vector<14x512xf32> to vector<512xf32>
    %117 = vector.shape_cast %116 : vector<512xf32> to vector<1x512xf32>
    %cst_71 = arith.constant 0.0714285746 : f32
    %118 = vector.broadcast %cst_71 : f32 to vector<1x512xf32>
    %119 = arith.mulf %117, %118 : vector<1x512xf32>
    %cst_72 = arith.constant 9.99999974E-6 : f32
    %120 = vector.broadcast %cst_72 : f32 to vector<1x512xf32>
    %121 = arith.addf %119, %120 : vector<1x512xf32>
    %122 = math.rsqrt %121 : vector<1x512xf32>
    %123 = vector.broadcast %122 : vector<1x512xf32> to vector<14x512xf32>
    %124 = arith.mulf %114, %123 : vector<14x512xf32>
    %125 = vector.broadcast %107 : vector<1x512xf32> to vector<14x512xf32>
    %126 = arith.mulf %124, %125 : vector<14x512xf32>
    %127 = vector.broadcast %108 : vector<1x512xf32> to vector<14x512xf32>
    %128 = arith.addf %126, %127 : vector<14x512xf32>
    %cst_73 = arith.constant 0.000000e+00 : f32
    %129 = vector.broadcast %cst_73 : f32 to vector<14x512xf32>
    %130 = arith.cmpf oge, %128, %129 : vector<14x512xf32>
    %cst_74 = arith.constant 0.00999999977 : f32
    %131 = vector.broadcast %cst_74 : f32 to vector<14x512xf32>
    %132 = arith.mulf %131, %128 : vector<14x512xf32>
    %133 = arith.select %130, %128, %132 : vector<14x512xi1>, vector<14x512xf32>
    %134 = vector.extract_strided_slice %133 {offsets = [0, 0], sizes = [2, 512], strides = [1, 1]} : vector<14x512xf32> to vector<2x512xf32>
    %c0_75 = arith.constant 0 : index
    %c0_76 = arith.constant 0 : index
    %135 = vector.load %arg15[%c0_75, %c0_76] : memref<2x3584xf32, #tpu.memory_space<vmem>>, vector<1x512xf32>
    %136 = vector.broadcast %135 : vector<1x512xf32> to vector<2x512xf32>
    %137 = arith.mulf %134, %136 : vector<2x512xf32>
    %cst_77 = arith.constant dense<0.000000e+00> : vector<2xf32>
    %138 = vector.multi_reduction <add>, %137, %cst_77 [1] : vector<2x512xf32> to vector<2xf32>
    %139 = vector.shape_cast %138 : vector<2xf32> to vector<2x1xf32>
    %140 = vector.extract_strided_slice %133 {offsets = [2, 0], sizes = [2, 512], strides = [1, 1]} : vector<14x512xf32> to vector<2x512xf32>
    %c0_78 = arith.constant 0 : index
    %c512_79 = arith.constant 512 : index
    %141 = vector.load %arg15[%c0_78, %c512_79] : memref<2x3584xf32, #tpu.memory_space<vmem>>, vector<1x512xf32>
    %142 = vector.broadcast %141 : vector<1x512xf32> to vector<2x512xf32>
    %143 = arith.mulf %140, %142 : vector<2x512xf32>
    %cst_80 = arith.constant dense<0.000000e+00> : vector<2xf32>
    %144 = vector.multi_reduction <add>, %143, %cst_80 [1] : vector<2x512xf32> to vector<2xf32>
    %145 = vector.shape_cast %144 : vector<2xf32> to vector<2x1xf32>
    %146 = arith.addf %139, %145 : vector<2x1xf32>
    %147 = vector.extract_strided_slice %133 {offsets = [4, 0], sizes = [2, 512], strides = [1, 1]} : vector<14x512xf32> to vector<2x512xf32>
    %c0_81 = arith.constant 0 : index
    %c1024_82 = arith.constant 1024 : index
    %148 = vector.load %arg15[%c0_81, %c1024_82] : memref<2x3584xf32, #tpu.memory_space<vmem>>, vector<1x512xf32>
    %149 = vector.broadcast %148 : vector<1x512xf32> to vector<2x512xf32>
    %150 = arith.mulf %147, %149 : vector<2x512xf32>
    %cst_83 = arith.constant dense<0.000000e+00> : vector<2xf32>
    %151 = vector.multi_reduction <add>, %150, %cst_83 [1] : vector<2x512xf32> to vector<2xf32>
    %152 = vector.shape_cast %151 : vector<2xf32> to vector<2x1xf32>
    %153 = arith.addf %146, %152 : vector<2x1xf32>
    %154 = vector.extract_strided_slice %133 {offsets = [6, 0], sizes = [2, 512], strides = [1, 1]} : vector<14x512xf32> to vector<2x512xf32>
    %c0_84 = arith.constant 0 : index
    %c1536_85 = arith.constant 1536 : index
    %155 = vector.load %arg15[%c0_84, %c1536_85] : memref<2x3584xf32, #tpu.memory_space<vmem>>, vector<1x512xf32>
    %156 = vector.broadcast %155 : vector<1x512xf32> to vector<2x512xf32>
    %157 = arith.mulf %154, %156 : vector<2x512xf32>
    %cst_86 = arith.constant dense<0.000000e+00> : vector<2xf32>
    %158 = vector.multi_reduction <add>, %157, %cst_86 [1] : vector<2x512xf32> to vector<2xf32>
    %159 = vector.shape_cast %158 : vector<2xf32> to vector<2x1xf32>
    %160 = arith.addf %153, %159 : vector<2x1xf32>
    %161 = vector.extract_strided_slice %133 {offsets = [8, 0], sizes = [2, 512], strides = [1, 1]} : vector<14x512xf32> to vector<2x512xf32>
    %c0_87 = arith.constant 0 : index
    %c2048 = arith.constant 2048 : index
    %162 = vector.load %arg15[%c0_87, %c2048] : memref<2x3584xf32, #tpu.memory_space<vmem>>, vector<1x512xf32>
    %163 = vector.broadcast %162 : vector<1x512xf32> to vector<2x512xf32>
    %164 = arith.mulf %161, %163 : vector<2x512xf32>
    %cst_88 = arith.constant dense<0.000000e+00> : vector<2xf32>
    %165 = vector.multi_reduction <add>, %164, %cst_88 [1] : vector<2x512xf32> to vector<2xf32>
    %166 = vector.shape_cast %165 : vector<2xf32> to vector<2x1xf32>
    %167 = arith.addf %160, %166 : vector<2x1xf32>
    %168 = vector.extract_strided_slice %133 {offsets = [10, 0], sizes = [2, 512], strides = [1, 1]} : vector<14x512xf32> to vector<2x512xf32>
    %c0_89 = arith.constant 0 : index
    %c2560 = arith.constant 2560 : index
    %169 = vector.load %arg15[%c0_89, %c2560] : memref<2x3584xf32, #tpu.memory_space<vmem>>, vector<1x512xf32>
    %170 = vector.broadcast %169 : vector<1x512xf32> to vector<2x512xf32>
    %171 = arith.mulf %168, %170 : vector<2x512xf32>
    %cst_90 = arith.constant dense<0.000000e+00> : vector<2xf32>
    %172 = vector.multi_reduction <add>, %171, %cst_90 [1] : vector<2x512xf32> to vector<2xf32>
    %173 = vector.shape_cast %172 : vector<2xf32> to vector<2x1xf32>
    %174 = arith.addf %167, %173 : vector<2x1xf32>
    %175 = vector.extract_strided_slice %133 {offsets = [12, 0], sizes = [2, 512], strides = [1, 1]} : vector<14x512xf32> to vector<2x512xf32>
    %c0_91 = arith.constant 0 : index
    %c3072 = arith.constant 3072 : index
    %176 = vector.load %arg15[%c0_91, %c3072] : memref<2x3584xf32, #tpu.memory_space<vmem>>, vector<1x512xf32>
    %177 = vector.broadcast %176 : vector<1x512xf32> to vector<2x512xf32>
    %178 = arith.mulf %175, %177 : vector<2x512xf32>
    %cst_92 = arith.constant dense<0.000000e+00> : vector<2xf32>
    %179 = vector.multi_reduction <add>, %178, %cst_92 [1] : vector<2x512xf32> to vector<2xf32>
    %180 = vector.shape_cast %179 : vector<2xf32> to vector<2x1xf32>
    %181 = arith.addf %174, %180 : vector<2x1xf32>
    %c0_93 = arith.constant 0 : index
    %c0_94 = arith.constant 0 : index
    %182 = vector.load %arg16[%c0_93, %c0_94] : memref<1x2xf32, #tpu.memory_space<vmem>>, vector<1x1xf32>
    %183 = vector.broadcast %182 : vector<1x1xf32> to vector<2x1xf32>
    %184 = arith.addf %181, %183 : vector<2x1xf32>
    %c0_95 = arith.constant 0 : index
    %c0_96 = arith.constant 0 : index
    %185 = vector.load %arg17[%c0_95, %c0_96] : memref<2x2xf32, #tpu.memory_space<vmem>>, vector<2x1xf32>
    tpu.vector_store %arg17[%c0_95, %c0_96], %184 {strides = array<i32>} : memref<2x2xf32, #tpu.memory_space<vmem>>, vector<2x1xf32>,
    %186 = vector.extract_strided_slice %133 {offsets = [0, 0], sizes = [2, 512], strides = [1, 1]} : vector<14x512xf32> to vector<2x512xf32>
    %c1 = arith.constant 1 : index
    %c0_97 = arith.constant 0 : index
    %187 = vector.load %arg15[%c1, %c0_97] : memref<2x3584xf32, #tpu.memory_space<vmem>>, vector<1x512xf32>
    %188 = vector.broadcast %187 : vector<1x512xf32> to vector<2x512xf32>
    %189 = arith.mulf %186, %188 : vector<2x512xf32>
    %cst_98 = arith.constant dense<0.000000e+00> : vector<2xf32>
    %190 = vector.multi_reduction <add>, %189, %cst_98 [1] : vector<2x512xf32> to vector<2xf32>
    %191 = vector.shape_cast %190 : vector<2xf32> to vector<2x1xf32>
    %192 = vector.extract_strided_slice %133 {offsets = [2, 0], sizes = [2, 512], strides = [1, 1]} : vector<14x512xf32> to vector<2x512xf32>
    %c1_99 = arith.constant 1 : index
    %c512_100 = arith.constant 512 : index
    %193 = vector.load %arg15[%c1_99, %c512_100] : memref<2x3584xf32, #tpu.memory_space<vmem>>, vector<1x512xf32>
    %194 = vector.broadcast %193 : vector<1x512xf32> to vector<2x512xf32>
    %195 = arith.mulf %192, %194 : vector<2x512xf32>
    %cst_101 = arith.constant dense<0.000000e+00> : vector<2xf32>
    %196 = vector.multi_reduction <add>, %195, %cst_101 [1] : vector<2x512xf32> to vector<2xf32>
    %197 = vector.shape_cast %196 : vector<2xf32> to vector<2x1xf32>
    %198 = arith.addf %191, %197 : vector<2x1xf32>
    %199 = vector.extract_strided_slice %133 {offsets = [4, 0], sizes = [2, 512], strides = [1, 1]} : vector<14x512xf32> to vector<2x512xf32>
    %c1_102 = arith.constant 1 : index
    %c1024_103 = arith.constant 1024 : index
    %200 = vector.load %arg15[%c1_102, %c1024_103] : memref<2x3584xf32, #tpu.memory_space<vmem>>, vector<1x512xf32>
    %201 = vector.broadcast %200 : vector<1x512xf32> to vector<2x512xf32>
    %202 = arith.mulf %199, %201 : vector<2x512xf32>
    %cst_104 = arith.constant dense<0.000000e+00> : vector<2xf32>
    %203 = vector.multi_reduction <add>, %202, %cst_104 [1] : vector<2x512xf32> to vector<2xf32>
    %204 = vector.shape_cast %203 : vector<2xf32> to vector<2x1xf32>
    %205 = arith.addf %198, %204 : vector<2x1xf32>
    %206 = vector.extract_strided_slice %133 {offsets = [6, 0], sizes = [2, 512], strides = [1, 1]} : vector<14x512xf32> to vector<2x512xf32>
    %c1_105 = arith.constant 1 : index
    %c1536_106 = arith.constant 1536 : index
    %207 = vector.load %arg15[%c1_105, %c1536_106] : memref<2x3584xf32, #tpu.memory_space<vmem>>, vector<1x512xf32>
    %208 = vector.broadcast %207 : vector<1x512xf32> to vector<2x512xf32>
    %209 = arith.mulf %206, %208 : vector<2x512xf32>
    %cst_107 = arith.constant dense<0.000000e+00> : vector<2xf32>
    %210 = vector.multi_reduction <add>, %209, %cst_107 [1] : vector<2x512xf32> to vector<2xf32>
    %211 = vector.shape_cast %210 : vector<2xf32> to vector<2x1xf32>
    %212 = arith.addf %205, %211 : vector<2x1xf32>
    %213 = vector.extract_strided_slice %133 {offsets = [8, 0], sizes = [2, 512], strides = [1, 1]} : vector<14x512xf32> to vector<2x512xf32>
    %c1_108 = arith.constant 1 : index
    %c2048_109 = arith.constant 2048 : index
    %214 = vector.load %arg15[%c1_108, %c2048_109] : memref<2x3584xf32, #tpu.memory_space<vmem>>, vector<1x512xf32>
    %215 = vector.broadcast %214 : vector<1x512xf32> to vector<2x512xf32>
    %216 = arith.mulf %213, %215 : vector<2x512xf32>
    %cst_110 = arith.constant dense<0.000000e+00> : vector<2xf32>
    %217 = vector.multi_reduction <add>, %216, %cst_110 [1] : vector<2x512xf32> to vector<2xf32>
    %218 = vector.shape_cast %217 : vector<2xf32> to vector<2x1xf32>
    %219 = arith.addf %212, %218 : vector<2x1xf32>
    %220 = vector.extract_strided_slice %133 {offsets = [10, 0], sizes = [2, 512], strides = [1, 1]} : vector<14x512xf32> to vector<2x512xf32>
    %c1_111 = arith.constant 1 : index
    %c2560_112 = arith.constant 2560 : index
    %221 = vector.load %arg15[%c1_111, %c2560_112] : memref<2x3584xf32, #tpu.memory_space<vmem>>, vector<1x512xf32>
    %222 = vector.broadcast %221 : vector<1x512xf32> to vector<2x512xf32>
    %223 = arith.mulf %220, %222 : vector<2x512xf32>
    %cst_113 = arith.constant dense<0.000000e+00> : vector<2xf32>
    %224 = vector.multi_reduction <add>, %223, %cst_113 [1] : vector<2x512xf32> to vector<2xf32>
    %225 = vector.shape_cast %224 : vector<2xf32> to vector<2x1xf32>
    %226 = arith.addf %219, %225 : vector<2x1xf32>
    %227 = vector.extract_strided_slice %133 {offsets = [12, 0], sizes = [2, 512], strides = [1, 1]} : vector<14x512xf32> to vector<2x512xf32>
    %c1_114 = arith.constant 1 : index
    %c3072_115 = arith.constant 3072 : index
    %228 = vector.load %arg15[%c1_114, %c3072_115] : memref<2x3584xf32, #tpu.memory_space<vmem>>, vector<1x512xf32>
    %229 = vector.broadcast %228 : vector<1x512xf32> to vector<2x512xf32>
    %230 = arith.mulf %227, %229 : vector<2x512xf32>
    %cst_116 = arith.constant dense<0.000000e+00> : vector<2xf32>
    %231 = vector.multi_reduction <add>, %230, %cst_116 [1] : vector<2x512xf32> to vector<2xf32>
    %232 = vector.shape_cast %231 : vector<2xf32> to vector<2x1xf32>
    %233 = arith.addf %226, %232 : vector<2x1xf32>
    %c0_117 = arith.constant 0 : index
    %c1_118 = arith.constant 1 : index
    %234 = vector.load %arg16[%c0_117, %c1_118] : memref<1x2xf32, #tpu.memory_space<vmem>>, vector<1x1xf32>
    %235 = vector.broadcast %234 : vector<1x1xf32> to vector<2x1xf32>
    %236 = arith.addf %233, %235 : vector<2x1xf32>
    %c0_119 = arith.constant 0 : index
    %c1_120 = arith.constant 1 : index
    %237 = vector.load %arg17[%c0_119, %c1_120] : memref<2x2xf32, #tpu.memory_space<vmem>>, vector<2x1xf32>
    tpu.vector_store %arg17[%c0_119, %c1_120], %236 {strides = array<i32>} : memref<2x2xf32, #tpu.memory_space<vmem>>, vector<2x1xf32>,
    return
  }
}

</mosaic_0001>

<llo_original>
// kernel: classifier_forward.1
$region0: #{classifier_forward.1}
  #allocation0 [shape = 'u32[]', space=smem, size = 0x4, offset = 0x4, fixed_abs, tag = 'smem constant byte address 0x4 - core index']
  #allocation1 [shape = 'u32[144,128]{1,0:T(1,128)}', space=vmem, size = 0x12000, scoped, tag = 'internal scratch']
  #allocation2 [shape = 'bf16[2048,512]{1,0:T(16,128)(2,1)}', space=vmem, size = 0x200000, scoped, tag = 'scratch operand']
  #allocation3 [shape = 's32[1]{0}', space=sflag, size = 0x4, scoped, tag = 'scratch operand']
  #allocation4 [shape = 'bf16[224,256]{1,0:T(16,128)(2,1)}', space=vmem, size = 0x1c000, scoped, tag = 'scratch operand']
  #allocation5 [shape = 'bf16[112,256]{1,0:T(16,128)(2,1)}', space=vmem, size = 0xe000, scoped, tag = 'scratch operand']
  #allocation6 [shape = 'bf16[14,2048]{1,0:T(8,128)(2,1)}', space=vmem, size = 0x10000, scoped, tag = 'scratch operand']
  #allocation32 [shape = 's32[]', space=sflag, size = 0x4, offset = 0, fixed_abs, tag = 'sflag constant byte address 0x0 - dummy sync flag']
  %s0 = inlined_call_operand.vmem [shape: bf16[224,48], index: 0, kind: input, shape index: {}]
  %s1 = inlined_call_operand.hbm [shape: bf16[48,256], index: 1, kind: input, shape index: {}]
  %s2 = inlined_call_operand.hbm [shape: f32[1,256], index: 2, kind: input, shape index: {}]
  %s3 = inlined_call_operand.hbm [shape: bf16[256,128], index: 3, kind: input, shape index: {}]
  %s4 = inlined_call_operand.hbm [shape: f32[1,128], index: 4, kind: input, shape index: {}]
  %s5 = inlined_call_operand.hbm [shape: f32[1,128], index: 5, kind: input, shape index: {}]
  %s6 = inlined_call_operand.hbm [shape: f32[1,128], index: 6, kind: input, shape index: {}]
  %s7 = inlined_call_operand.hbm [shape: bf16[256,256], index: 7, kind: input, shape index: {}]
  %s8 = inlined_call_operand.hbm [shape: f32[1,256], index: 8, kind: input, shape index: {}]
  %s9 = inlined_call_operand.hbm [shape: f32[1,256], index: 9, kind: input, shape index: {}]
  %s10 = inlined_call_operand.hbm [shape: f32[1,256], index: 10, kind: input, shape index: {}]
  %s11 = inlined_call_operand.hbm [shape: bf16[2048,512], index: 11, kind: input, shape index: {}]
  %s12 = inlined_call_operand.hbm [shape: f32[1,512], index: 12, kind: input, shape index: {}]
  %s13 = inlined_call_operand.hbm [shape: f32[1,512], index: 13, kind: input, shape index: {}]
  %s14 = inlined_call_operand.hbm [shape: f32[1,512], index: 14, kind: input, shape index: {}]
  %s15 = inlined_call_operand.hbm [shape: f32[2,3584], index: 15, kind: input, shape index: {}]
  %s16 = inlined_call_operand.hbm [shape: f32[1,2], index: 16, kind: input, shape index: {}]
  %s17 = inlined_call_operand.hbm [shape: f32[2,2], index: 17, kind: output, shape index: {}]
  %s18 = sld [smem:[#allocation0]]
  $region134: #{classifier_forward.1} parent=0
    _
  %s20 = ssub.s32 1, %s18
  %s21 = scalar_select 0, %s20, %s18
  $region1: #{classifier_forward.1} parent=0
    #allocation7 [shape = 'u8[24576]{0}', space=vmem, size = 0x6000, scoped, tag = 'input window, operand 1, single buffered']
    #allocation8 [shape = 's32[1]{0}', space=sflag, size = 0x4, scoped, tag = 'scoped memory for classifier_forward.1']
    #allocation9 [shape = 's32[1]{0}', space=sflag, size = 0x4, scoped, tag = 'scoped memory for classifier_forward.1']
    #allocation10 [shape = 'u8[1024]{0}', space=vmem, size = 0x400, scoped, tag = 'input window, operand 2, single buffered']
    #allocation11 [shape = 's32[1]{0}', space=sflag, size = 0x4, scoped, tag = 'scoped memory for classifier_forward.1']
    #allocation12 [shape = 'u8[65536]{0}', space=vmem, size = 0x10000, scoped, tag = 'input window, operand 3, single buffered']
    #allocation13 [shape = 'u8[512]{0}', space=vmem, size = 0x400, scoped, tag = 'input window, operand 4, single buffered']
    #allocation14 [shape = 's32[1]{0}', space=sflag, size = 0x4, scoped, tag = 'scoped memory for classifier_forward.1']
    #allocation15 [shape = 'u8[512]{0}', space=vmem, size = 0x400, scoped, tag = 'input window, operand 5, single buffered']
    #allocation16 [shape = 'u8[512]{0}', space=vmem, size = 0x400, scoped, tag = 'input window, operand 6, single buffered']
    #allocation17 [shape = 's32[1]{0}', space=sflag, size = 0x4, scoped, tag = 'scoped memory for classifier_forward.1']
    #allocation18 [shape = 'u8[131072]{0}', space=vmem, size = 0x20000, scoped, tag = 'input window, operand 7, single buffered']
    #allocation19 [shape = 'u8[1024]{0}', space=vmem, size = 0x400, scoped, tag = 'input window, operand 8, single buffered']
    #allocation20 [shape = 's32[1]{0}', space=sflag, size = 0x4, scoped, tag = 'scoped memory for classifier_forward.1']
    #allocation21 [shape = 'u8[1024]{0}', space=vmem, size = 0x400, scoped, tag = 'input window, operand 9, single buffered']
    #allocation22 [shape = 'u8[1024]{0}', space=vmem, size = 0x400, scoped, tag = 'input window, operand 10, single buffered']
    #allocation23 [shape = 's32[1]{0}', space=sflag, size = 0x4, scoped, tag = 'scoped memory for classifier_forward.1']
    #allocation24 [shape = 'u8[2048]{0}', space=vmem, size = 0x800, scoped, tag = 'input window, operand 12, single buffered']
    #allocation25 [shape = 'u8[2048]{0}', space=vmem, size = 0x800, scoped, tag = 'input window, operand 13, single buffered']
    #allocation26 [shape = 's32[1]{0}', space=sflag, size = 0x4, scoped, tag = 'scoped memory for classifier_forward.1']
    #allocation27 [shape = 'u8[2048]{0}', space=vmem, size = 0x800, scoped, tag = 'input window, operand 14, single buffered']
    #allocation28 [shape = 'u8[28672]{0}', space=vmem, size = 0x7000, scoped, tag = 'input window, operand 15, single buffered']
    #allocation29 [shape = 's32[1]{0}', space=sflag, size = 0x4, scoped, tag = 'scoped memory for classifier_forward.1']
    #allocation30 [shape = 'u8[512]{0}', space=vmem, size = 0x400, scoped, tag = 'input window, operand 16, single buffered']
    #allocation31 [shape = 'u8[1024]{0}', space=vmem, size = 0x400, scoped, tag = 'output window, operand 0, single buffered']
    #allocation33 [shape = 'u32[9]{0}', space=smem, size = 0x24, scoped, tag = 'DMA stride descriptor']
    %22 = vsyncpa [#allocation8], 0
    %23 = vsyncpa [#allocation11], 0
    %24 = vsyncpa [#allocation14], 0
    %25 = vsyncpa [#allocation17], 0
    %26 = vsyncpa [#allocation20], 0
    %27 = vsyncpa [#allocation23], 0
    %28 = vsyncpa [#allocation26], 0
    %29 = vsyncpa [#allocation29], 0
    %30 = vsyncpa [#allocation9], 0
    // Predicated region
    $region2: #{classifier_forward.1} parent=1 // pred_check
      _
    $region3: #{classifier_forward.1} parent=1 // pred_check_branch
      %32 = sbr.rel (0) target = $region5
    $region4: #{classifier_forward.1} parent=1 // pred_region
      _
    $region5: #{classifier_forward.1} parent=1 // pred_fallthru
      _
    // Predicated region
    $region6: #{classifier_forward.1} parent=1 // pred_check
      _
    $region7: #{classifier_forward.1} parent=1 // pred_check_branch
      %34 = sbr.rel (0) target = $region9
    $region8: #{classifier_forward.1} parent=1 // pred_region
      %s36 = ssub.s32 768, 768
      %37 = vsyncadd [#allocation8], %s36
      %s38 = sshll.u32 [#allocation7], 4
      %s39 = int_to_ptr.vmem [resolvable:$true] %s38
      %44 = dma.hbm_to_vmem [thread:$0]  %s1, 768, %s39, [#allocation8], 128, 128, 8
    $region9: #{classifier_forward.1} parent=1 // pred_fallthru
      _
    // Predicated region
    $region10: #{classifier_forward.1} parent=1 // pred_check
      _
    $region11: #{classifier_forward.1} parent=1 // pred_check_branch
      %46 = sbr.rel (0) target = $region13
    $region12: #{classifier_forward.1} parent=1 // pred_region
      %s48 = ssub.s32 32, 32
      %49 = vsyncadd [#allocation11], %s48
      %s51 = sshll.u32 [#allocation10], 4
      %s52 = int_to_ptr.vmem [resolvable:$true] %s51
      %54 = dma.hbm_to_vmem [thread:$0]  %s2, 32, %s52, [#allocation11]
    $region13: #{classifier_forward.1} parent=1 // pred_fallthru
      _
    // Predicated region
    $region14: #{classifier_forward.1} parent=1 // pred_check
      _
    $region15: #{classifier_forward.1} parent=1 // pred_check_branch
      %56 = sbr.rel (0) target = $region17
    $region16: #{classifier_forward.1} parent=1 // pred_region
      %s58 = ssub.s32 2048, 2048
      %59 = vsyncadd [#allocation11], %s58
      %s60 = sshll.u32 [#allocation12], 4
      %s61 = int_to_ptr.vmem [resolvable:$true] %s60
      %66 = dma.hbm_to_vmem [thread:$0]  %s3, 2048, %s61, [#allocation11], 64, 64, 4
    $region17: #{classifier_forward.1} parent=1 // pred_fallthru
      _
    // Predicated region
    $region18: #{classifier_forward.1} parent=1 // pred_check
      _
    $region19: #{classifier_forward.1} parent=1 // pred_check_branch
      %68 = sbr.rel (0) target = $region21
    $region20: #{classifier_forward.1} parent=1 // pred_region
      %s70 = ssub.s32 16, 16
      %71 = vsyncadd [#allocation14], %s70
      %s73 = sshll.u32 [#allocation13], 4
      %s74 = int_to_ptr.vmem [resolvable:$true] %s73
      %76 = dma.hbm_to_vmem [thread:$0]  %s4, 16, %s74, [#allocation14]
    $region21: #{classifier_forward.1} parent=1 // pred_fallthru
      _
    // Predicated region
    $region22: #{classifier_forward.1} parent=1 // pred_check
      _
    $region23: #{classifier_forward.1} parent=1 // pred_check_branch
      %78 = sbr.rel (0) target = $region25
    $region24: #{classifier_forward.1} parent=1 // pred_region
      %s80 = ssub.s32 16, 16
      %81 = vsyncadd [#allocation14], %s80
      %s83 = sshll.u32 [#allocation15], 4
      %s84 = int_to_ptr.vmem [resolvable:$true] %s83
      %86 = dma.hbm_to_vmem [thread:$0]  %s5, 16, %s84, [#allocation14]
    $region25: #{classifier_forward.1} parent=1 // pred_fallthru
      _
    // Predicated region
    $region26: #{classifier_forward.1} parent=1 // pred_check
      _
    $region27: #{classifier_forward.1} parent=1 // pred_check_branch
      %88 = sbr.rel (0) target = $region29
    $region28: #{classifier_forward.1} parent=1 // pred_region
      %s90 = ssub.s32 16, 16
      %91 = vsyncadd [#allocation17], %s90
      %s93 = sshll.u32 [#allocation16], 4
      %s94 = int_to_ptr.vmem [resolvable:$true] %s93
      %96 = dma.hbm_to_vmem [thread:$0]  %s6, 16, %s94, [#allocation17]
    $region29: #{classifier_forward.1} parent=1 // pred_fallthru
      _
    // Predicated region
    $region30: #{classifier_forward.1} parent=1 // pred_check
      _
    $region31: #{classifier_forward.1} parent=1 // pred_check_branch
      %98 = sbr.rel (0) target = $region33
    $region32: #{classifier_forward.1} parent=1 // pred_region
      %s100 = ssub.s32 4096, 4096
      %101 = vsyncadd [#allocation17], %s100
      %s102 = sshll.u32 [#allocation18], 4
      %s103 = int_to_ptr.vmem [resolvable:$true] %s102
      %108 = dma.hbm_to_vmem [thread:$0]  %s7, 4096, %s103, [#allocation17], 128, 128, 8
    $region33: #{classifier_forward.1} parent=1 // pred_fallthru
      _
    // Predicated region
    $region34: #{classifier_forward.1} parent=1 // pred_check
      _
    $region35: #{classifier_forward.1} parent=1 // pred_check_branch
      %110 = sbr.rel (0) target = $region37
    $region36: #{classifier_forward.1} parent=1 // pred_region
      %s112 = ssub.s32 32, 32
      %113 = vsyncadd [#allocation20], %s112
      %s115 = sshll.u32 [#allocation19], 4
      %s116 = int_to_ptr.vmem [resolvable:$true] %s115
      %118 = dma.hbm_to_vmem [thread:$0]  %s8, 32, %s116, [#allocation20]
    $region37: #{classifier_forward.1} parent=1 // pred_fallthru
      _
    // Predicated region
    $region38: #{classifier_forward.1} parent=1 // pred_check
      _
    $region39: #{classifier_forward.1} parent=1 // pred_check_branch
      %120 = sbr.rel (0) target = $region41
    $region40: #{classifier_forward.1} parent=1 // pred_region
      %s122 = ssub.s32 32, 32
      %123 = vsyncadd [#allocation20], %s122
      %s125 = sshll.u32 [#allocation21], 4
      %s126 = int_to_ptr.vmem [resolvable:$true] %s125
      %128 = dma.hbm_to_vmem [thread:$0]  %s9, 32, %s126, [#allocation20]
    $region41: #{classifier_forward.1} parent=1 // pred_fallthru
      _
    // Predicated region
    $region42: #{classifier_forward.1} parent=1 // pred_check
      _
    $region43: #{classifier_forward.1} parent=1 // pred_check_branch
      %130 = sbr.rel (0) target = $region45
    $region44: #{classifier_forward.1} parent=1 // pred_region
      %s132 = ssub.s32 32, 32
      %133 = vsyncadd [#allocation23], %s132
      %s135 = sshll.u32 [#allocation22], 4
      %s136 = int_to_ptr.vmem [resolvable:$true] %s135
      %138 = dma.hbm_to_vmem [thread:$0]  %s10, 32, %s136, [#allocation23]
    $region45: #{classifier_forward.1} parent=1 // pred_fallthru
      _
    // Predicated region
    $region46: #{classifier_forward.1} parent=1 // pred_check
      _
    $region47: #{classifier_forward.1} parent=1 // pred_check_branch
      %140 = sbr.rel (0) target = $region49
    $region48: #{classifier_forward.1} parent=1 // pred_region
      %s142 = ssub.s32 64, 64
      %143 = vsyncadd [#allocation23], %s142
      %s145 = sshll.u32 [#allocation24], 4
      %s146 = int_to_ptr.vmem [resolvable:$true] %s145
      %148 = dma.hbm_to_vmem [thread:$0]  %s12, 64, %s146, [#allocation23]
    $region49: #{classifier_forward.1} parent=1 // pred_fallthru
      _
    // Predicated region
    $region50: #{classifier_forward.1} parent=1 // pred_check
      _
    $region51: #{classifier_forward.1} parent=1 // pred_check_branch
      %150 = sbr.rel (0) target = $region53
    $region52: #{classifier_forward.1} parent=1 // pred_region
      %s152 = ssub.s32 64, 64
      %153 = vsyncadd [#allocation26], %s152
      %s155 = sshll.u32 [#allocation25], 4
      %s156 = int_to_ptr.vmem [resolvable:$true] %s155
      %158 = dma.hbm_to_vmem [thread:$0]  %s13, 64, %s156, [#allocation26]
    $region53: #{classifier_forward.1} parent=1 // pred_fallthru
      _
    // Predicated region
    $region54: #{classifier_forward.1} parent=1 // pred_check
      _
    $region55: #{classifier_forward.1} parent=1 // pred_check_branch
      %160 = sbr.rel (0) target = $region57
    $region56: #{classifier_forward.1} parent=1 // pred_region
      %s162 = ssub.s32 64, 64
      %163 = vsyncadd [#allocation26], %s162
      %s165 = sshll.u32 [#allocation27], 4
      %s166 = int_to_ptr.vmem [resolvable:$true] %s165
      %168 = dma.hbm_to_vmem [thread:$0]  %s14, 64, %s166, [#allocation26]
    $region57: #{classifier_forward.1} parent=1 // pred_fallthru
      _
    // Predicated region
    $region58: #{classifier_forward.1} parent=1 // pred_check
      _
    $region59: #{classifier_forward.1} parent=1 // pred_check_branch
      %170 = sbr.rel (0) target = $region61
    $region60: #{classifier_forward.1} parent=1 // pred_region
      %s172 = ssub.s32 896, 896
      %173 = vsyncadd [#allocation29], %s172
      %s175 = sshll.u32 [#allocation28], 4
      %s176 = int_to_ptr.vmem [resolvable:$true] %s175
      %178 = dma.hbm_to_vmem [thread:$0]  %s15, 896, %s176, [#allocation29]
    $region61: #{classifier_forward.1} parent=1 // pred_fallthru
      _
    // Predicated region
    $region62: #{classifier_forward.1} parent=1 // pred_check
      _
    $region63: #{classifier_forward.1} parent=1 // pred_check_branch
      %180 = sbr.rel (0) target = $region65
    $region64: #{classifier_forward.1} parent=1 // pred_region
      %s182 = ssub.s32 16, 16
      %183 = vsyncadd [#allocation29], %s182
      %s185 = sshll.u32 [#allocation30], 4
      %s186 = int_to_ptr.vmem [resolvable:$true] %s185
      %188 = dma.hbm_to_vmem [thread:$0]  %s16, 16, %s186, [#allocation29]
    $region65: #{classifier_forward.1} parent=1 // pred_fallthru
      _
    // Predicated region
    $region66: #{classifier_forward.1} parent=1 // pred_check
      _
    $region67: #{classifier_forward.1} parent=1 // pred_check_branch
      %190 = sbr.rel (0) target = $region69
    $region68: #{classifier_forward.1} parent=1 // pred_region
      %191 = dma.done [#allocation8], 768
    $region69: #{classifier_forward.1} parent=1 // pred_fallthru
      _
    // Predicated region
    $region70: #{classifier_forward.1} parent=1 // pred_check
      _
    $region71: #{classifier_forward.1} parent=1 // pred_check_branch
      %193 = sbr.rel (0) target = $region73
    $region72: #{classifier_forward.1} parent=1 // pred_region
      %194 = dma.done [#allocation11], 32
    $region73: #{classifier_forward.1} parent=1 // pred_fallthru
      _
    // Predicated region
    $region74: #{classifier_forward.1} parent=1 // pred_check
      _
    $region75: #{classifier_forward.1} parent=1 // pred_check_branch
      %196 = sbr.rel (0) target = $region77
    $region76: #{classifier_forward.1} parent=1 // pred_region
      %197 = dma.done [#allocation11], 2048
    $region77: #{classifier_forward.1} parent=1 // pred_fallthru
      _
    // Predicated region
    $region78: #{classifier_forward.1} parent=1 // pred_check
      _
    $region79: #{classifier_forward.1} parent=1 // pred_check_branch
      %199 = sbr.rel (0) target = $region81
    $region80: #{classifier_forward.1} parent=1 // pred_region
      %200 = dma.done [#allocation14], 16
    $region81: #{classifier_forward.1} parent=1 // pred_fallthru
      _
    // Predicated region
    $region82: #{classifier_forward.1} parent=1 // pred_check
      _
    $region83: #{classifier_forward.1} parent=1 // pred_check_branch
      %202 = sbr.rel (0) target = $region85
    $region84: #{classifier_forward.1} parent=1 // pred_region
      %203 = dma.done [#allocation14], 16
    $region85: #{classifier_forward.1} parent=1 // pred_fallthru
      _
    // Predicated region
    $region86: #{classifier_forward.1} parent=1 // pred_check
      _
    $region87: #{classifier_forward.1} parent=1 // pred_check_branch
      %205 = sbr.rel (0) target = $region89
    $region88: #{classifier_forward.1} parent=1 // pred_region
      %206 = dma.done [#allocation17], 16
    $region89: #{classifier_forward.1} parent=1 // pred_fallthru
      _
    // Predicated region
    $region90: #{classifier_forward.1} parent=1 // pred_check
      _
    $region91: #{classifier_forward.1} parent=1 // pred_check_branch
      %208 = sbr.rel (0) target = $region93
    $region92: #{classifier_forward.1} parent=1 // pred_region
      %209 = dma.done [#allocation17], 4096
    $region93: #{classifier_forward.1} parent=1 // pred_fallthru
      _
    // Predicated region
    $region94: #{classifier_forward.1} parent=1 // pred_check
      _
    $region95: #{classifier_forward.1} parent=1 // pred_check_branch
      %211 = sbr.rel (0) target = $region97
    $region96: #{classifier_forward.1} parent=1 // pred_region
      %212 = dma.done [#allocation20], 32
    $region97: #{classifier_forward.1} parent=1 // pred_fallthru
      _
    // Predicated region
    $region98: #{classifier_forward.1} parent=1 // pred_check
      _
    $region99: #{classifier_forward.1} parent=1 // pred_check_branch
      %214 = sbr.rel (0) target = $region101
    $region100: #{classifier_forward.1} parent=1 // pred_region
      %215 = dma.done [#allocation20], 32
    $region101: #{classifier_forward.1} parent=1 // pred_fallthru
      _
    // Predicated region
    $region102: #{classifier_forward.1} parent=1 // pred_check
      _
    $region103: #{classifier_forward.1} parent=1 // pred_check_branch
      %217 = sbr.rel (0) target = $region105
    $region104: #{classifier_forward.1} parent=1 // pred_region
      %218 = dma.done [#allocation23], 32
    $region105: #{classifier_forward.1} parent=1 // pred_fallthru
      _
    // Predicated region
    $region106: #{classifier_forward.1} parent=1 // pred_check
      _
    $region107: #{classifier_forward.1} parent=1 // pred_check_branch
      %220 = sbr.rel (0) target = $region109
    $region108: #{classifier_forward.1} parent=1 // pred_region
      %221 = dma.done [#allocation23], 64
    $region109: #{classifier_forward.1} parent=1 // pred_fallthru
      _
    // Predicated region
    $region110: #{classifier_forward.1} parent=1 // pred_check
      _
    $region111: #{classifier_forward.1} parent=1 // pred_check_branch
      %223 = sbr.rel (0) target = $region113
    $region112: #{classifier_forward.1} parent=1 // pred_region
      %224 = dma.done [#allocation26], 64
    $region113: #{classifier_forward.1} parent=1 // pred_fallthru
      _
    // Predicated region
    $region114: #{classifier_forward.1} parent=1 // pred_check
      _
    $region115: #{classifier_forward.1} parent=1 // pred_check_branch
      %226 = sbr.rel (0) target = $region117
    $region116: #{classifier_forward.1} parent=1 // pred_region
      %227 = dma.done [#allocation26], 64
    $region117: #{classifier_forward.1} parent=1 // pred_fallthru
      _
    // Predicated region
    $region118: #{classifier_forward.1} parent=1 // pred_check
      _
    $region119: #{classifier_forward.1} parent=1 // pred_check_branch
      %229 = sbr.rel (0) target = $region121
    $region120: #{classifier_forward.1} parent=1 // pred_region
      %230 = dma.done [#allocation29], 896
    $region121: #{classifier_forward.1} parent=1 // pred_fallthru
      _
    // Predicated region
    $region122: #{classifier_forward.1} parent=1 // pred_check
      _
    $region123: #{classifier_forward.1} parent=1 // pred_check_branch
      %232 = sbr.rel (0) target = $region125
    $region124: #{classifier_forward.1} parent=1 // pred_region
      %233 = dma.done [#allocation29], 16
    $region125: #{classifier_forward.1} parent=1 // pred_fallthru
      _
    %s236 = sshll.u32 1, 14
    %s237 = sxor.u32 4294967295, %s236
    %s239 = sld [smem:[#allocation0]]
    %s240 = sadd.s32 2, %s239
    %s242 = sshll.u32 7, 26
    %s243 = sxor.u32 4294967295, %s242
    %s244 = sand.u32 0, %s243
    %s245 = sshll.u32 %s240, 26
    %s246 = sor.u32 %s244, %s245
    %s247 = sshll.u32 [#allocation2], 4
    %s248 = int_to_ptr.vmem [resolvable:$true] %s247
    %251 = sst [smem:[#allocation33]] 512
    %s252 = scalar_lea.smem [#allocation33], 1
    %253 = sst [smem:[%s252]] 512
    %s254 = scalar_lea.smem [#allocation33], 2
    %255 = sst [smem:[%s254]] 4
    %s256 = scalar_lea.smem [#allocation33], 3
    %257 = sst [smem:[%s256]] 64
    %s258 = scalar_lea.smem [#allocation33], 4
    %259 = sst [smem:[%s258]] 128
    %s260 = scalar_lea.smem [#allocation33], 5
    %261 = sst [smem:[%s260]] 2
    %s262 = scalar_lea.smem [#allocation33], 6
    %263 = sst [smem:[%s262]] 256
    %s264 = scalar_lea.smem [#allocation33], 7
    %265 = sst [smem:[%s264]] 64
    %s266 = scalar_lea.smem [#allocation33], 8
    %267 = sst [smem:[%s266]] 4
    %269 = dma.general %s11, 65536, %s248, [#allocation3], [#allocation32], [#allocation33], %s246, 0
    %v270 = vld [vmem:[%s0] sm:$0xf]
    %v271 = vld [vmem:[%s0 + $0x4] sm:$0xf]
    %v272 = vld [vmem:[%s0 + $0x8] sm:$0xf]
    %v273 = vld [vmem:[%s0 + $0xc] sm:$0xf]
    %v274 = vld [vmem:[%s0 + $0x10] sm:$0xf]
    %v275 = vld [vmem:[%s0 + $0x14] sm:$0xf]
    %v276 = vld [vmem:[%s0 + $0x18] sm:$0xf]
    %v277 = vld [vmem:[%s0 + $0x1c] sm:$0xf]
    %v278 = vld [vmem:[%s0 + $0x20] sm:$0xf]
    %v279 = vld [vmem:[%s0 + $0x24] sm:$0xf]
    %v280 = vld [vmem:[%s0 + $0x28] sm:$0xf]
    %v281 = vld [vmem:[%s0 + $0x2c] sm:$0xf]
    %v282 = vld [vmem:[%s0 + $0x30] sm:$0xf]
    %v283 = vld [vmem:[%s0 + $0x34] sm:$0xf]
    %v284 = vld [vmem:[%s0 + $0x38] sm:$0xf]
    %v285 = vld [vmem:[%s0 + $0x3c] sm:$0xf]
    %v286 = vld [vmem:[%s0 + $0x40] sm:$0xf]
    %v287 = vld [vmem:[%s0 + $0x44] sm:$0xf]
    %v288 = vld [vmem:[%s0 + $0x48] sm:$0xf]
    %v289 = vld [vmem:[%s0 + $0x4c] sm:$0xf]
    %v290 = vld [vmem:[%s0 + $0x50] sm:$0xf]
    %v291 = vld [vmem:[%s0 + $0x54] sm:$0xf]
    %v292 = vld [vmem:[%s0 + $0x58] sm:$0xf]
    %v293 = vld [vmem:[%s0 + $0x5c] sm:$0xf]
    %v294 = vld [vmem:[%s0 + $0x60] sm:$0xf]
    %v295 = vld [vmem:[%s0 + $0x64] sm:$0xf]
    %v296 = vld [vmem:[%s0 + $0x68] sm:$0xf]
    %v297 = vld [vmem:[%s0 + $0x6c] sm:$0xf]
    %v298 = vld [vmem:[#allocation7] sm:$0xff]
    %v299 = vld [vmem:[#allocation7 + $0x8] sm:$0xff]
    %v300 = vld [vmem:[#allocation7 + $0x10] sm:$0xff]
    %v301 = vld [vmem:[#allocation7 + $0x18] sm:$0xff]
    %v302 = vld [vmem:[#allocation7 + $0x20] sm:$0xff]
    %v303 = vld [vmem:[#allocation7 + $0x28] sm:$0xff]
    %v304 = vld [vmem:[#allocation10] sm:$0x3]
    %v306 = vlaneseq
    %v307 = vshrl.u32 %v306, 7
    %v308 = vsub.s32 0, %v307
    %v309 = vrot.slane %v304, %v308
    %v310 = vlaneseq
    %v311 = vshrl.u32 %v310, 7
    %v312 = vsub.s32 1, %v311
    %v313 = vrot.slane %v304, %v312
    %v344 = vunpack.c.l.b16 %v270
    %v345 = vunpack.c.l.b16 %v271
    %v346 = vunpack.c.l.b16 %v272
    %v347 = vunpack.c.l.b16 %v273
    %v348 = vunpack.c.l.b16 %v274
    %v349 = vunpack.c.l.b16 %v275
    %v350 = vunpack.c.l.b16 %v276
    %v351 = vunpack.c.l.b16 %v277
    %v352 = vunpack.c.l.b16 %v278
    %v353 = vunpack.c.l.b16 %v279
    %v354 = vunpack.c.l.b16 %v280
    %v355 = vunpack.c.l.b16 %v281
    %v356 = vunpack.c.l.b16 %v282
    %v357 = vunpack.c.l.b16 %v283
    %v358 = vunpack.c.l.b16 %v284
    %v359 = vunpack.c.l.b16 %v285
    %v360 = vunpack.c.l.b16 %v286
    %v361 = vunpack.c.l.b16 %v287
    %v362 = vunpack.c.l.b16 %v288
    %v363 = vunpack.c.l.b16 %v289
    %v364 = vunpack.c.l.b16 %v290
    %v365 = vunpack.c.l.b16 %v291
    %v366 = vunpack.c.l.b16 %v292
    %v367 = vunpack.c.l.b16 %v293
    %v368 = vunpack.c.l.b16 %v294
    %v369 = vunpack.c.l.b16 %v295
    %v370 = vunpack.c.l.b16 %v296
    %v371 = vunpack.c.l.b16 %v297
    %v372 = vpack.c.b16 %v345, %v344
    %v373 = vpack.c.b16 %v347, %v346
    %v374 = vpack.c.b16 %v349, %v348
    %v375 = vpack.c.b16 %v351, %v350
    %v376 = vpack.c.b16 %v353, %v352
    %v377 = vpack.c.b16 %v355, %v354
    %v378 = vpack.c.b16 %v357, %v356
    %v379 = vpack.c.b16 %v359, %v358
    %v380 = vpack.c.b16 %v361, %v360
    %v381 = vpack.c.b16 %v363, %v362
    %v382 = vpack.c.b16 %v365, %v364
    %v383 = vpack.c.b16 %v367, %v366
    %v384 = vpack.c.b16 %v369, %v368
    %v385 = vpack.c.b16 %v371, %v370
    %v392 = vunpack.c.l.b16 %v298
    %v393 = vunpack.c.h.b16 %v298
    %v394 = vunpack.c.l.b16 %v299
    %v395 = vunpack.c.h.b16 %v299
    %v396 = vunpack.c.l.b16 %v300
    %v397 = vunpack.c.h.b16 %v300
    %v398 = vunpack.c.l.b16 %v301
    %v399 = vunpack.c.h.b16 %v301
    %v400 = vunpack.c.l.b16 %v302
    %v401 = vunpack.c.h.b16 %v302
    %v402 = vunpack.c.l.b16 %v303
    %v403 = vunpack.c.h.b16 %v303
    %v404 = vpack.c.b16 %v394, %v392
    %v405 = vpack.c.b16 %v395, %v393
    %v406 = vpack.c.b16 %v398, %v396
    %v407 = vpack.c.b16 %v399, %v397
    %v408 = vpack.c.b16 %v402, %v400
    %v409 = vpack.c.b16 %v403, %v401
    %vm416 = vcmask 392192
    %v418 = vsel %vm416, %v372, 0
    %v421 = vsel %vm416, %v373, 0
    %v424 = vsel %vm416, %v374, 0
    %v427 = vsel %vm416, %v375, 0
    %v430 = vsel %vm416, %v376, 0
    %v433 = vsel %vm416, %v377, 0
    %v436 = vsel %vm416, %v378, 0
    %v439 = vsel %vm416, %v379, 0
    %v442 = vsel %vm416, %v380, 0
    %v445 = vsel %vm416, %v381, 0
    %v448 = vsel %vm416, %v382, 0
    %v451 = vsel %vm416, %v383, 0
    %v454 = vsel %vm416, %v384, 0
    %v457 = vsel %vm416, %v385, 0
    %459 = vmatprep.subr.bf16.mxu0 %v405
    %460 = vmatpush1.bf16.msra.mxu0 %v404
    %461 = vmatprep.subr.bf16.mxu0 %v407
    %462 = vmatpush1.bf16.msra.mxu0 %v406
    %463 = vmatprep.subr.bf16.mxu0 %v409
    %464 = vmatpush1.bf16.msra.mxu0 %v408
    %465 = vmatprep.subr.bf16.mxu0 0
    %466 = vmatpush1.bf16.msra.mxu0 0
    %467 = vmatprep.subr.bf16.mxu0 0
    %468 = vmatpush1.bf16.msra.mxu0 0
    %469 = vmatprep.subr.bf16.mxu0 0
    %470 = vmatpush1.bf16.msra.mxu0 0
    %471 = vmatprep.subr.bf16.mxu0 0
    %472 = vmatpush1.bf16.msra.mxu0 0
    %473 = vmatprep.subr.bf16.mxu0 0
    %474 = vmatpush1.bf16.msra.mxu0 0
    %475 = vmatprep.subr.bf16.mxu0 0
    %476 = vmatpush1.bf16.msra.mxu0 0
    %477 = vmatprep.subr.bf16.mxu0 0
    %478 = vmatpush1.bf16.msra.mxu0 0
    %479 = vmatprep.subr.bf16.mxu0 0
    %480 = vmatpush1.bf16.msra.mxu0 0
    %481 = vmatprep.subr.bf16.mxu0 0
    %482 = vmatpush1.bf16.msra.mxu0 0
    %483 = vmatprep.subr.bf16.mxu0 0
    %484 = vmatpush1.bf16.msra.mxu0 0
    %485 = vmatprep.subr.bf16.mxu0 0
    %486 = vmatpush1.bf16.msra.mxu0 0
    %487 = vmatprep.subr.bf16.mxu0 0
    %488 = vmatpush1.bf16.msra.mxu0 0
    %489 = vmatprep.subr.bf16.mxu0 0
    %490 = vmatpush1.bf16.msra.mxu0 0
    %491 = vmatprep.mubr.bf16.mxu0 0
    %492 = vmatmul.mubr.bf16.gmra.mrb[0].mxu0 %v418
    %v493 = vpop.f32.mrb[0].mxu0
    %v494 = vadd.f32 %v309, %v493
    %v495 = vpop.f32.mrb[0].mxu0
    %v496 = vadd.f32 %v313, %v495
    %v497 = vpop.f32.mrb[0].mxu0
    %v498 = vadd.f32 %v309, %v497
    %v499 = vpop.f32.mrb[0].mxu0
    %v500 = vadd.f32 %v313, %v499
    %501 = vmatprep.mubr.bf16.mxu0 0
    %502 = vmatmul.mubr.bf16.gmra.mrb[0].mxu0 %v421
    %v503 = vpop.f32.mrb[0].mxu0
    %v504 = vadd.f32 %v309, %v503
    %v505 = vpop.f32.mrb[0].mxu0
    %v506 = vadd.f32 %v313, %v505
    %v507 = vpop.f32.mrb[0].mxu0
    %v508 = vadd.f32 %v309, %v507
    %v509 = vpop.f32.mrb[0].mxu0
    %v510 = vadd.f32 %v313, %v509
    %511 = vmatprep.mubr.bf16.mxu0 0
    %512 = vmatmul.mubr.bf16.gmra.mrb[0].mxu0 %v424
    %v513 = vpop.f32.mrb[0].mxu0
    %v514 = vadd.f32 %v309, %v513
    %v515 = vpop.f32.mrb[0].mxu0
    %v516 = vadd.f32 %v313, %v515
    %v517 = vpop.f32.mrb[0].mxu0
    %v518 = vadd.f32 %v309, %v517
    %v519 = vpop.f32.mrb[0].mxu0
    %v520 = vadd.f32 %v313, %v519
    %521 = vmatprep.mubr.bf16.mxu0 0
    %522 = vmatmul.mubr.bf16.gmra.mrb[0].mxu0 %v427
    %v523 = vpop.f32.mrb[0].mxu0
    %v524 = vadd.f32 %v309, %v523
    %v525 = vpop.f32.mrb[0].mxu0
    %v526 = vadd.f32 %v313, %v525
    %v527 = vpop.f32.mrb[0].mxu0
    %v528 = vadd.f32 %v309, %v527
    %v529 = vpop.f32.mrb[0].mxu0
    %v530 = vadd.f32 %v313, %v529
    %531 = vmatprep.mubr.bf16.mxu0 0
    %532 = vmatmul.mubr.bf16.gmra.mrb[0].mxu0 %v430
    %v533 = vpop.f32.mrb[0].mxu0
    %v534 = vadd.f32 %v309, %v533
    %v535 = vpop.f32.mrb[0].mxu0
    %v536 = vadd.f32 %v313, %v535
    %v537 = vpop.f32.mrb[0].mxu0
    %v538 = vadd.f32 %v309, %v537
    %v539 = vpop.f32.mrb[0].mxu0
    %v540 = vadd.f32 %v313, %v539
    %541 = vmatprep.mubr.bf16.mxu0 0
    %542 = vmatmul.mubr.bf16.gmra.mrb[0].mxu0 %v433
    %v543 = vpop.f32.mrb[0].mxu0
    %v544 = vadd.f32 %v309, %v543
    %v545 = vpop.f32.mrb[0].mxu0
    %v546 = vadd.f32 %v313, %v545
    %v547 = vpop.f32.mrb[0].mxu0
    %v548 = vadd.f32 %v309, %v547
    %v549 = vpop.f32.mrb[0].mxu0
    %v550 = vadd.f32 %v313, %v549
    %551 = vmatprep.mubr.bf16.mxu0 0
    %552 = vmatmul.mubr.bf16.gmra.mrb[0].mxu0 %v436
    %v553 = vpop.f32.mrb[0].mxu0
    %v554 = vadd.f32 %v309, %v553
    %v555 = vpop.f32.mrb[0].mxu0
    %v556 = vadd.f32 %v313, %v555
    %v557 = vpop.f32.mrb[0].mxu0
    %v558 = vadd.f32 %v309, %v557
    %v559 = vpop.f32.mrb[0].mxu0
    %v560 = vadd.f32 %v313, %v559
    %561 = vmatprep.mubr.bf16.mxu0 0
    %562 = vmatmul.mubr.bf16.gmra.mrb[0].mxu0 %v439
    %v563 = vpop.f32.mrb[0].mxu0
    %v564 = vadd.f32 %v309, %v563
    %v565 = vpop.f32.mrb[0].mxu0
    %v566 = vadd.f32 %v313, %v565
    %v567 = vpop.f32.mrb[0].mxu0
    %v568 = vadd.f32 %v309, %v567
    %v569 = vpop.f32.mrb[0].mxu0
    %v570 = vadd.f32 %v313, %v569
    %571 = vmatprep.mubr.bf16.mxu0 0
    %572 = vmatmul.mubr.bf16.gmra.mrb[0].mxu0 %v442
    %v573 = vpop.f32.mrb[0].mxu0
    %v574 = vadd.f32 %v309, %v573
    %v575 = vpop.f32.mrb[0].mxu0
    %v576 = vadd.f32 %v313, %v575
    %v577 = vpop.f32.mrb[0].mxu0
    %v578 = vadd.f32 %v309, %v577
    %v579 = vpop.f32.mrb[0].mxu0
    %v580 = vadd.f32 %v313, %v579
    %581 = vmatprep.mubr.bf16.mxu0 0
    %582 = vmatmul.mubr.bf16.gmra.mrb[0].mxu0 %v445
    %v583 = vpop.f32.mrb[0].mxu0
    %v584 = vadd.f32 %v309, %v583
    %v585 = vpop.f32.mrb[0].mxu0
    %v586 = vadd.f32 %v313, %v585
    %v587 = vpop.f32.mrb[0].mxu0
    %v588 = vadd.f32 %v309, %v587
    %v589 = vpop.f32.mrb[0].mxu0
    %v590 = vadd.f32 %v313, %v589
    %591 = vmatprep.mubr.bf16.mxu0 0
    %592 = vmatmul.mubr.bf16.gmra.mrb[0].mxu0 %v448
    %v593 = vpop.f32.mrb[0].mxu0
    %v594 = vadd.f32 %v309, %v593
    %v595 = vpop.f32.mrb[0].mxu0
    %v596 = vadd.f32 %v313, %v595
    %v597 = vpop.f32.mrb[0].mxu0
    %v598 = vadd.f32 %v309, %v597
    %v599 = vpop.f32.mrb[0].mxu0
    %v600 = vadd.f32 %v313, %v599
    %601 = vmatprep.mubr.bf16.mxu0 0
    %602 = vmatmul.mubr.bf16.gmra.mrb[0].mxu0 %v451
    %v603 = vpop.f32.mrb[0].mxu0
    %v604 = vadd.f32 %v309, %v603
    %v605 = vpop.f32.mrb[0].mxu0
    %v606 = vadd.f32 %v313, %v605
    %v607 = vpop.f32.mrb[0].mxu0
    %v608 = vadd.f32 %v309, %v607
    %v609 = vpop.f32.mrb[0].mxu0
    %v610 = vadd.f32 %v313, %v609
    %611 = vmatprep.mubr.bf16.mxu0 0
    %612 = vmatmul.mubr.bf16.gmra.mrb[0].mxu0 %v454
    %v613 = vpop.f32.mrb[0].mxu0
    %v614 = vadd.f32 %v309, %v613
    %v615 = vpop.f32.mrb[0].mxu0
    %v616 = vadd.f32 %v313, %v615
    %v617 = vpop.f32.mrb[0].mxu0
    %v618 = vadd.f32 %v309, %v617
    %v619 = vpop.f32.mrb[0].mxu0
    %v620 = vadd.f32 %v313, %v619
    %621 = vmatprep.mubr.bf16.mxu0 0
    %622 = vmatmul.mubr.bf16.gmra.mrb[0].mxu0 %v457
    %v623 = vpop.f32.mrb[0].mxu0
    %v624 = vadd.f32 %v309, %v623
    %v625 = vpop.f32.mrb[0].mxu0
    %v626 = vadd.f32 %v313, %v625
    %v627 = vpop.f32.mrb[0].mxu0
    %v628 = vadd.f32 %v309, %v627
    %v629 = vpop.f32.mrb[0].mxu0
    %v630 = vadd.f32 %v313, %v629
    %631 = vdwg.mxu0
    %vm632 = vcmp.ge.f32.partialorder %v494, 0.0
    %vm633 = vcmp.ge.f32.partialorder %v496, 0.0
    %vm634 = vcmp.ge.f32.partialorder %v498, 0.0
    %vm635 = vcmp.ge.f32.partialorder %v500, 0.0
    %vm636 = vcmp.ge.f32.partialorder %v504, 0.0
    %vm637 = vcmp.ge.f32.partialorder %v506, 0.0
    %vm638 = vcmp.ge.f32.partialorder %v508, 0.0
    %vm639 = vcmp.ge.f32.partialorder %v510, 0.0
    %vm640 = vcmp.ge.f32.partialorder %v514, 0.0
    %vm641 = vcmp.ge.f32.partialorder %v516, 0.0
    %vm642 = vcmp.ge.f32.partialorder %v518, 0.0
    %vm643 = vcmp.ge.f32.partialorder %v520, 0.0
    %vm644 = vcmp.ge.f32.partialorder %v524, 0.0
    %vm645 = vcmp.ge.f32.partialorder %v526, 0.0
    %vm646 = vcmp.ge.f32.partialorder %v528, 0.0
    %vm647 = vcmp.ge.f32.partialorder %v530, 0.0
    %vm648 = vcmp.ge.f32.partialorder %v534, 0.0
    %vm649 = vcmp.ge.f32.partialorder %v536, 0.0
    %vm650 = vcmp.ge.f32.partialorder %v538, 0.0
    %vm651 = vcmp.ge.f32.partialorder %v540, 0.0
    %vm652 = vcmp.ge.f32.partialorder %v544, 0.0
    %vm653 = vcmp.ge.f32.partialorder %v546, 0.0
    %vm654 = vcmp.ge.f32.partialorder %v548, 0.0
    %vm655 = vcmp.ge.f32.partialorder %v550, 0.0
    %vm656 = vcmp.ge.f32.partialorder %v554, 0.0
    %vm657 = vcmp.ge.f32.partialorder %v556, 0.0
    %vm658 = vcmp.ge.f32.partialorder %v558, 0.0
    %vm659 = vcmp.ge.f32.partialorder %v560, 0.0
    %vm660 = vcmp.ge.f32.partialorder %v564, 0.0
    %vm661 = vcmp.ge.f32.partialorder %v566, 0.0
    %vm662 = vcmp.ge.f32.partialorder %v568, 0.0
    %vm663 = vcmp.ge.f32.partialorder %v570, 0.0
    %vm664 = vcmp.ge.f32.partialorder %v574, 0.0
    %vm665 = vcmp.ge.f32.partialorder %v576, 0.0
    %vm666 = vcmp.ge.f32.partialorder %v578, 0.0
    %vm667 = vcmp.ge.f32.partialorder %v580, 0.0
    %vm668 = vcmp.ge.f32.partialorder %v584, 0.0
    %vm669 = vcmp.ge.f32.partialorder %v586, 0.0
    %vm670 = vcmp.ge.f32.partialorder %v588, 0.0
    %vm671 = vcmp.ge.f32.partialorder %v590, 0.0
    %vm672 = vcmp.ge.f32.partialorder %v594, 0.0
    %vm673 = vcmp.ge.f32.partialorder %v596, 0.0
    %vm674 = vcmp.ge.f32.partialorder %v598, 0.0
    %vm675 = vcmp.ge.f32.partialorder %v600, 0.0
    %vm676 = vcmp.ge.f32.partialorder %v604, 0.0
    %vm677 = vcmp.ge.f32.partialorder %v606, 0.0
    %vm678 = vcmp.ge.f32.partialorder %v608, 0.0
    %vm679 = vcmp.ge.f32.partialorder %v610, 0.0
    %vm680 = vcmp.ge.f32.partialorder %v614, 0.0
    %vm681 = vcmp.ge.f32.partialorder %v616, 0.0
    %vm682 = vcmp.ge.f32.partialorder %v618, 0.0
    %vm683 = vcmp.ge.f32.partialorder %v620, 0.0
    %vm684 = vcmp.ge.f32.partialorder %v624, 0.0
    %vm685 = vcmp.ge.f32.partialorder %v626, 0.0
    %vm686 = vcmp.ge.f32.partialorder %v628, 0.0
    %vm687 = vcmp.ge.f32.partialorder %v630, 0.0
    %v688 = vmul.f32 %v494, 0.01
    %v689 = vmul.f32 %v496, 0.01
    %v690 = vmul.f32 %v498, 0.01
    %v691 = vmul.f32 %v500, 0.01
    %v692 = vmul.f32 %v504, 0.01
    %v693 = vmul.f32 %v506, 0.01
    %v694 = vmul.f32 %v508, 0.01
    %v695 = vmul.f32 %v510, 0.01
    %v696 = vmul.f32 %v514, 0.01
    %v697 = vmul.f32 %v516, 0.01
    %v698 = vmul.f32 %v518, 0.01
    %v699 = vmul.f32 %v520, 0.01
    %v700 = vmul.f32 %v524, 0.01
    %v701 = vmul.f32 %v526, 0.01
    %v702 = vmul.f32 %v528, 0.01
    %v703 = vmul.f32 %v530, 0.01
    %v704 = vmul.f32 %v534, 0.01
    %v705 = vmul.f32 %v536, 0.01
    %v706 = vmul.f32 %v538, 0.01
    %v707 = vmul.f32 %v540, 0.01
    %v708 = vmul.f32 %v544, 0.01
    %v709 = vmul.f32 %v546, 0.01
    %v710 = vmul.f32 %v548, 0.01
    %v711 = vmul.f32 %v550, 0.01
    %v712 = vmul.f32 %v554, 0.01
    %v713 = vmul.f32 %v556, 0.01
    %v714 = vmul.f32 %v558, 0.01
    %v715 = vmul.f32 %v560, 0.01
    %v716 = vmul.f32 %v564, 0.01
    %v717 = vmul.f32 %v566, 0.01
    %v718 = vmul.f32 %v568, 0.01
    %v719 = vmul.f32 %v570, 0.01
    %v720 = vmul.f32 %v574, 0.01
    %v721 = vmul.f32 %v576, 0.01
    %v722 = vmul.f32 %v578, 0.01
    %v723 = vmul.f32 %v580, 0.01
    %v724 = vmul.f32 %v584, 0.01
    %v725 = vmul.f32 %v586, 0.01
    %v726 = vmul.f32 %v588, 0.01
    %v727 = vmul.f32 %v590, 0.01
    %v728 = vmul.f32 %v594, 0.01
    %v729 = vmul.f32 %v596, 0.01
    %v730 = vmul.f32 %v598, 0.01
    %v731 = vmul.f32 %v600, 0.01
    %v732 = vmul.f32 %v604, 0.01
    %v733 = vmul.f32 %v606, 0.01
    %v734 = vmul.f32 %v608, 0.01
    %v735 = vmul.f32 %v610, 0.01
    %v736 = vmul.f32 %v614, 0.01
    %v737 = vmul.f32 %v616, 0.01
    %v738 = vmul.f32 %v618, 0.01
    %v739 = vmul.f32 %v620, 0.01
    %v740 = vmul.f32 %v624, 0.01
    %v741 = vmul.f32 %v626, 0.01
    %v742 = vmul.f32 %v628, 0.01
    %v743 = vmul.f32 %v630, 0.01
    %v744 = vsel %vm632, %v494, %v688
    %v745 = vsel %vm633, %v496, %v689
    %v746 = vsel %vm634, %v498, %v690
    %v747 = vsel %vm635, %v500, %v691
    %v748 = vsel %vm636, %v504, %v692
    %v749 = vsel %vm637, %v506, %v693
    %v750 = vsel %vm638, %v508, %v694
    %v751 = vsel %vm639, %v510, %v695
    %v752 = vsel %vm640, %v514, %v696
    %v753 = vsel %vm641, %v516, %v697
    %v754 = vsel %vm642, %v518, %v698
    %v755 = vsel %vm643, %v520, %v699
    %v756 = vsel %vm644, %v524, %v700
    %v757 = vsel %vm645, %v526, %v701
    %v758 = vsel %vm646, %v528, %v702
    %v759 = vsel %vm647, %v530, %v703
    %v760 = vsel %vm648, %v534, %v704
    %v761 = vsel %vm649, %v536, %v705
    %v762 = vsel %vm650, %v538, %v706
    %v763 = vsel %vm651, %v540, %v707
    %v764 = vsel %vm652, %v544, %v708
    %v765 = vsel %vm653, %v546, %v709
    %v766 = vsel %vm654, %v548, %v710
    %v767 = vsel %vm655, %v550, %v711
    %v768 = vsel %vm656, %v554, %v712
    %v769 = vsel %vm657, %v556, %v713
    %v770 = vsel %vm658, %v558, %v714
    %v771 = vsel %vm659, %v560, %v715
    %v772 = vsel %vm660, %v564, %v716
    %v773 = vsel %vm661, %v566, %v717
    %v774 = vsel %vm662, %v568, %v718
    %v775 = vsel %vm663, %v570, %v719
    %v776 = vsel %vm664, %v574, %v720
    %v777 = vsel %vm665, %v576, %v721
    %v778 = vsel %vm666, %v578, %v722
    %v779 = vsel %vm667, %v580, %v723
    %v780 = vsel %vm668, %v584, %v724
    %v781 = vsel %vm669, %v586, %v725
    %v782 = vsel %vm670, %v588, %v726
    %v783 = vsel %vm671, %v590, %v727
    %v784 = vsel %vm672, %v594, %v728
    %v785 = vsel %vm673, %v596, %v729
    %v786 = vsel %vm674, %v598, %v730
    %v787 = vsel %vm675, %v600, %v731
    %v788 = vsel %vm676, %v604, %v732
    %v789 = vsel %vm677, %v606, %v733
    %v790 = vsel %vm678, %v608, %v734
    %v791 = vsel %vm679, %v610, %v735
    %v792 = vsel %vm680, %v614, %v736
    %v793 = vsel %vm681, %v616, %v737
    %v794 = vsel %vm682, %v618, %v738
    %v795 = vsel %vm683, %v620, %v739
    %v796 = vsel %vm684, %v624, %v740
    %v797 = vsel %vm685, %v626, %v741
    %v798 = vsel %vm686, %v628, %v742
    %v799 = vsel %vm687, %v630, %v743
    %v800 = vpack.c.bf16 %v746, %v744
    %v801 = vpack.c.bf16 %v747, %v745
    %v802 = vpack.c.bf16 %v750, %v748
    %v803 = vpack.c.bf16 %v751, %v749
    %v804 = vpack.c.bf16 %v754, %v752
    %v805 = vpack.c.bf16 %v755, %v753
    %v806 = vpack.c.bf16 %v758, %v756
    %v807 = vpack.c.bf16 %v759, %v757
    %v808 = vpack.c.bf16 %v762, %v760
    %v809 = vpack.c.bf16 %v763, %v761
    %v810 = vpack.c.bf16 %v766, %v764
    %v811 = vpack.c.bf16 %v767, %v765
    %v812 = vpack.c.bf16 %v770, %v768
    %v813 = vpack.c.bf16 %v771, %v769
    %v814 = vpack.c.bf16 %v774, %v772
    %v815 = vpack.c.bf16 %v775, %v773
    %v816 = vpack.c.bf16 %v778, %v776
    %v817 = vpack.c.bf16 %v779, %v777
    %v818 = vpack.c.bf16 %v782, %v780
    %v819 = vpack.c.bf16 %v783, %v781
    %v820 = vpack.c.bf16 %v786, %v784
    %v821 = vpack.c.bf16 %v787, %v785
    %v822 = vpack.c.bf16 %v790, %v788
    %v823 = vpack.c.bf16 %v791, %v789
    %v824 = vpack.c.bf16 %v794, %v792
    %v825 = vpack.c.bf16 %v795, %v793
    %v826 = vpack.c.bf16 %v798, %v796
    %v827 = vpack.c.bf16 %v799, %v797
    %828 = vst [vmem:[#allocation4] sm:$0xff] %v800
    %829 = vst [vmem:[#allocation4 + $0x8] sm:$0xff] %v801
    %830 = vst [vmem:[#allocation4 + $0x10] sm:$0xff] %v802
    %831 = vst [vmem:[#allocation4 + $0x18] sm:$0xff] %v803
    %832 = vst [vmem:[#allocation4 + $0x20] sm:$0xff] %v804
    %833 = vst [vmem:[#allocation4 + $0x28] sm:$0xff] %v805
    %834 = vst [vmem:[#allocation4 + $0x30] sm:$0xff] %v806
    %835 = vst [vmem:[#allocation4 + $0x38] sm:$0xff] %v807
    %836 = vst [vmem:[#allocation4 + $0x40] sm:$0xff] %v808
    %837 = vst [vmem:[#allocation4 + $0x48] sm:$0xff] %v809
    %838 = vst [vmem:[#allocation4 + $0x50] sm:$0xff] %v810
    %839 = vst [vmem:[#allocation4 + $0x58] sm:$0xff] %v811
    %840 = vst [vmem:[#allocation4 + $0x60] sm:$0xff] %v812
    %841 = vst [vmem:[#allocation4 + $0x68] sm:$0xff] %v813
    %842 = vst [vmem:[#allocation4 + $0x70] sm:$0xff] %v814
    %843 = vst [vmem:[#allocation4 + $0x78] sm:$0xff] %v815
    %844 = vst [vmem:[#allocation4 + $0x80] sm:$0xff] %v816
    %845 = vst [vmem:[#allocation4 + $0x88] sm:$0xff] %v817
    %846 = vst [vmem:[#allocation4 + $0x90] sm:$0xff] %v818
    %847 = vst [vmem:[#allocation4 + $0x98] sm:$0xff] %v819
    %848 = vst [vmem:[#allocation4 + $0xa0] sm:$0xff] %v820
    %849 = vst [vmem:[#allocation4 + $0xa8] sm:$0xff] %v821
    %850 = vst [vmem:[#allocation4 + $0xb0] sm:$0xff] %v822
    %851 = vst [vmem:[#allocation4 + $0xb8] sm:$0xff] %v823
    %852 = vst [vmem:[#allocation4 + $0xc0] sm:$0xff] %v824
    %853 = vst [vmem:[#allocation4 + $0xc8] sm:$0xff] %v825
    %854 = vst [vmem:[#allocation4 + $0xd0] sm:$0xff] %v826
    %855 = vst [vmem:[#allocation4 + $0xd8] sm:$0xff] %v827
    %v856 = vld [vmem:[#allocation4] sm:$0xff]
    %v857 = vld [vmem:[#allocation4 + $0x8] sm:$0xff]
    %v858 = vld [vmem:[#allocation4 + $0x10] sm:$0xff]
    %v859 = vld [vmem:[#allocation4 + $0x18] sm:$0xff]
    %v860 = vld [vmem:[#allocation4 + $0x20] sm:$0xff]
    %v861 = vld [vmem:[#allocation4 + $0x28] sm:$0xff]
    %v862 = vld [vmem:[#allocation4 + $0x30] sm:$0xff]
    %v863 = vld [vmem:[#allocation4 + $0x38] sm:$0xff]
    %v864 = vld [vmem:[#allocation4 + $0x40] sm:$0xff]
    %v865 = vld [vmem:[#allocation4 + $0x48] sm:$0xff]
    %v866 = vld [vmem:[#allocation4 + $0x50] sm:$0xff]
    %v867 = vld [vmem:[#allocation4 + $0x58] sm:$0xff]
    %v868 = vld [vmem:[#allocation4 + $0x60] sm:$0xff]
    %v869 = vld [vmem:[#allocation4 + $0x68] sm:$0xff]
    %v870 = vld [vmem:[#allocation4 + $0x70] sm:$0xff]
    %v871 = vld [vmem:[#allocation4 + $0x78] sm:$0xff]
    %v872 = vld [vmem:[#allocation4 + $0x80] sm:$0xff]
    %v873 = vld [vmem:[#allocation4 + $0x88] sm:$0xff]
    %v874 = vld [vmem:[#allocation4 + $0x90] sm:$0xff]
    %v875 = vld [vmem:[#allocation4 + $0x98] sm:$0xff]
    %v876 = vld [vmem:[#allocation4 + $0xa0] sm:$0xff]
    %v877 = vld [vmem:[#allocation4 + $0xa8] sm:$0xff]
    %v878 = vld [vmem:[#allocation4 + $0xb0] sm:$0xff]
    %v879 = vld [vmem:[#allocation4 + $0xb8] sm:$0xff]
    %v880 = vld [vmem:[#allocation4 + $0xc0] sm:$0xff]
    %v881 = vld [vmem:[#allocation4 + $0xc8] sm:$0xff]
    %v882 = vld [vmem:[#allocation4 + $0xd0] sm:$0xff]
    %v883 = vld [vmem:[#allocation4 + $0xd8] sm:$0xff]
    %v884 = vld [vmem:[#allocation12] sm:$0xf]
    %v885 = vld [vmem:[#allocation12 + $0x4] sm:$0xf]
    %v886 = vld [vmem:[#allocation12 + $0x8] sm:$0xf]
    %v887 = vld [vmem:[#allocation12 + $0xc] sm:$0xf]
    %v888 = vld [vmem:[#allocation12 + $0x10] sm:$0xf]
    %v889 = vld [vmem:[#allocation12 + $0x14] sm:$0xf]
    %v890 = vld [vmem:[#allocation12 + $0x18] sm:$0xf]
    %v891 = vld [vmem:[#allocation12 + $0x1c] sm:$0xf]
    %v892 = vld [vmem:[#allocation12 + $0x20] sm:$0xf]
    %v893 = vld [vmem:[#allocation12 + $0x24] sm:$0xf]
    %v894 = vld [vmem:[#allocation12 + $0x28] sm:$0xf]
    %v895 = vld [vmem:[#allocation12 + $0x2c] sm:$0xf]
    %v896 = vld [vmem:[#allocation12 + $0x30] sm:$0xf]
    %v897 = vld [vmem:[#allocation12 + $0x34] sm:$0xf]
    %v898 = vld [vmem:[#allocation12 + $0x38] sm:$0xf]
    %v899 = vld [vmem:[#allocation12 + $0x3c] sm:$0xf]
    %v900 = vld [vmem:[#allocation12 + $0x40] sm:$0xf]
    %v901 = vld [vmem:[#allocation12 + $0x44] sm:$0xf]
    %v902 = vld [vmem:[#allocation12 + $0x48] sm:$0xf]
    %v903 = vld [vmem:[#allocation12 + $0x4c] sm:$0xf]
    %v904 = vld [vmem:[#allocation12 + $0x50] sm:$0xf]
    %v905 = vld [vmem:[#allocation12 + $0x54] sm:$0xf]
    %v906 = vld [vmem:[#allocation12 + $0x58] sm:$0xf]
    %v907 = vld [vmem:[#allocation12 + $0x5c] sm:$0xf]
    %v908 = vld [vmem:[#allocation12 + $0x60] sm:$0xf]
    %v909 = vld [vmem:[#allocation12 + $0x64] sm:$0xf]
    %v910 = vld [vmem:[#allocation12 + $0x68] sm:$0xf]
    %v911 = vld [vmem:[#allocation12 + $0x6c] sm:$0xf]
    %v912 = vld [vmem:[#allocation12 + $0x70] sm:$0xf]
    %v913 = vld [vmem:[#allocation12 + $0x74] sm:$0xf]
    %v914 = vld [vmem:[#allocation12 + $0x78] sm:$0xf]
    %v915 = vld [vmem:[#allocation12 + $0x7c] sm:$0xf]
    %v916 = vld [vmem:[#allocation13] sm:$0x1]
    %v918 = vlaneseq
    %v919 = vshrl.u32 %v918, 7
    %v920 = vsub.s32 0, %v919
    %v921 = vrot.slane %v916, %v920
    %v955 = vunpack.c.l.b16 %v884
    %v956 = vunpack.c.l.b16 %v885
    %v957 = vunpack.c.l.b16 %v886
    %v958 = vunpack.c.l.b16 %v887
    %v959 = vunpack.c.l.b16 %v888
    %v960 = vunpack.c.l.b16 %v889
    %v961 = vunpack.c.l.b16 %v890
    %v962 = vunpack.c.l.b16 %v891
    %v963 = vunpack.c.l.b16 %v892
    %v964 = vunpack.c.l.b16 %v893
    %v965 = vunpack.c.l.b16 %v894
    %v966 = vunpack.c.l.b16 %v895
    %v967 = vunpack.c.l.b16 %v896
    %v968 = vunpack.c.l.b16 %v897
    %v969 = vunpack.c.l.b16 %v898
    %v970 = vunpack.c.l.b16 %v899
    %v971 = vunpack.c.l.b16 %v900
    %v972 = vunpack.c.l.b16 %v901
    %v973 = vunpack.c.l.b16 %v902
    %v974 = vunpack.c.l.b16 %v903
    %v975 = vunpack.c.l.b16 %v904
    %v976 = vunpack.c.l.b16 %v905
    %v977 = vunpack.c.l.b16 %v906
    %v978 = vunpack.c.l.b16 %v907
    %v979 = vunpack.c.l.b16 %v908
    %v980 = vunpack.c.l.b16 %v909
    %v981 = vunpack.c.l.b16 %v910
    %v982 = vunpack.c.l.b16 %v911
    %v983 = vunpack.c.l.b16 %v912
    %v984 = vunpack.c.l.b16 %v913
    %v985 = vunpack.c.l.b16 %v914
    %v986 = vunpack.c.l.b16 %v915
    %v987 = vpack.c.b16 %v956, %v955
    %v988 = vpack.c.b16 %v958, %v957
    %v989 = vpack.c.b16 %v960, %v959
    %v990 = vpack.c.b16 %v962, %v961
    %v991 = vpack.c.b16 %v964, %v963
    %v992 = vpack.c.b16 %v966, %v965
    %v993 = vpack.c.b16 %v968, %v967
    %v994 = vpack.c.b16 %v970, %v969
    %v995 = vpack.c.b16 %v972, %v971
    %v996 = vpack.c.b16 %v974, %v973
    %v997 = vpack.c.b16 %v976, %v975
    %v998 = vpack.c.b16 %v978, %v977
    %v999 = vpack.c.b16 %v980, %v979
    %v1000 = vpack.c.b16 %v982, %v981
    %v1001 = vpack.c.b16 %v984, %v983
    %v1002 = vpack.c.b16 %v986, %v985
    %1019 = vmatprep.subr.bf16.mxu0 0
    %1020 = vmatpush1.bf16.msra.mxu0 %v987
    %1021 = vmatprep.subr.bf16.mxu0 0
    %1022 = vmatpush1.bf16.msra.mxu0 %v988
    %1023 = vmatprep.subr.bf16.mxu0 0
    %1024 = vmatpush1.bf16.msra.mxu0 %v989
    %1025 = vmatprep.subr.bf16.mxu0 0
    %1026 = vmatpush1.bf16.msra.mxu0 %v990
    %1027 = vmatprep.subr.bf16.mxu0 0
    %1028 = vmatpush1.bf16.msra.mxu0 %v991
    %1029 = vmatprep.subr.bf16.mxu0 0
    %1030 = vmatpush1.bf16.msra.mxu0 %v992
    %1031 = vmatprep.subr.bf16.mxu0 0
    %1032 = vmatpush1.bf16.msra.mxu0 %v993
    %1033 = vmatprep.subr.bf16.mxu0 0
    %1034 = vmatpush1.bf16.msra.mxu0 %v994
    %1035 = vmatprep.subr.bf16.mxu0 0
    %1036 = vmatpush1.bf16.msra.mxu0 %v995
    %1037 = vmatprep.subr.bf16.mxu0 0
    %1038 = vmatpush1.bf16.msra.mxu0 %v996
    %1039 = vmatprep.subr.bf16.mxu0 0
    %1040 = vmatpush1.bf16.msra.mxu0 %v997
    %1041 = vmatprep.subr.bf16.mxu0 0
    %1042 = vmatpush1.bf16.msra.mxu0 %v998
    %1043 = vmatprep.subr.bf16.mxu0 0
    %1044 = vmatpush1.bf16.msra.mxu0 %v999
    %1045 = vmatprep.subr.bf16.mxu0 0
    %1046 = vmatpush1.bf16.msra.mxu0 %v1000
    %1047 = vmatprep.subr.bf16.mxu0 0
    %1048 = vmatpush1.bf16.msra.mxu0 %v1001
    %1049 = vmatprep.subr.bf16.mxu0 0
    %1050 = vmatpush1.bf16.msra.mxu0 %v1002
    %1051 = vmatprep.mubr.bf16.mxu0 %v857
    %1052 = vmatmul.mubr.bf16.gmra.mrb[0].mxu0 %v856
    %v1053 = vpop.f32.mrb[0].mxu0
    %v1054 = vadd.f32 %v921, %v1053
    %v1055 = vpop.f32.mrb[0].mxu0
    %v1056 = vpop.f32.mrb[0].mxu0
    %v1057 = vadd.f32 %v921, %v1056
    %v1058 = vpop.f32.mrb[0].mxu0
    %1059 = vmatprep.mubr.bf16.mxu0 %v859
    %1060 = vmatmul.mubr.bf16.gmra.mrb[0].mxu0 %v858
    %v1061 = vpop.f32.mrb[0].mxu0
    %v1062 = vadd.f32 %v921, %v1061
    %v1063 = vpop.f32.mrb[0].mxu0
    %v1064 = vpop.f32.mrb[0].mxu0
    %v1065 = vadd.f32 %v921, %v1064
    %v1066 = vpop.f32.mrb[0].mxu0
    %1067 = vmatprep.mubr.bf16.mxu0 %v861
    %1068 = vmatmul.mubr.bf16.gmra.mrb[0].mxu0 %v860
    %v1069 = vpop.f32.mrb[0].mxu0
    %v1070 = vadd.f32 %v921, %v1069
    %v1071 = vpop.f32.mrb[0].mxu0
    %v1072 = vpop.f32.mrb[0].mxu0
    %v1073 = vadd.f32 %v921, %v1072
    %v1074 = vpop.f32.mrb[0].mxu0
    %1075 = vmatprep.mubr.bf16.mxu0 %v863
    %1076 = vmatmul.mubr.bf16.gmra.mrb[0].mxu0 %v862
    %v1077 = vpop.f32.mrb[0].mxu0
    %v1078 = vadd.f32 %v921, %v1077
    %v1079 = vpop.f32.mrb[0].mxu0
    %v1080 = vpop.f32.mrb[0].mxu0
    %v1081 = vadd.f32 %v921, %v1080
    %v1082 = vpop.f32.mrb[0].mxu0
    %1083 = vmatprep.mubr.bf16.mxu0 %v865
    %1084 = vmatmul.mubr.bf16.gmra.mrb[0].mxu0 %v864
    %v1085 = vpop.f32.mrb[0].mxu0
    %v1086 = vadd.f32 %v921, %v1085
    %v1087 = vpop.f32.mrb[0].mxu0
    %v1088 = vpop.f32.mrb[0].mxu0
    %v1089 = vadd.f32 %v921, %v1088
    %v1090 = vpop.f32.mrb[0].mxu0
    %1091 = vmatprep.mubr.bf16.mxu0 %v867
    %1092 = vmatmul.mubr.bf16.gmra.mrb[0].mxu0 %v866
    %v1093 = vpop.f32.mrb[0].mxu0
    %v1094 = vadd.f32 %v921, %v1093
    %v1095 = vpop.f32.mrb[0].mxu0
    %v1096 = vpop.f32.mrb[0].mxu0
    %v1097 = vadd.f32 %v921, %v1096
    %v1098 = vpop.f32.mrb[0].mxu0
    %1099 = vmatprep.mubr.bf16.mxu0 %v869
    %1100 = vmatmul.mubr.bf16.gmra.mrb[0].mxu0 %v868
    %v1101 = vpop.f32.mrb[0].mxu0
    %v1102 = vadd.f32 %v921, %v1101
    %v1103 = vpop.f32.mrb[0].mxu0
    %v1104 = vpop.f32.mrb[0].mxu0
    %v1105 = vadd.f32 %v921, %v1104
    %v1106 = vpop.f32.mrb[0].mxu0
    %1107 = vmatprep.mubr.bf16.mxu0 %v871
    %1108 = vmatmul.mubr.bf16.gmra.mrb[0].mxu0 %v870
    %v1109 = vpop.f32.mrb[0].mxu0
    %v1110 = vadd.f32 %v921, %v1109
    %v1111 = vpop.f32.mrb[0].mxu0
    %v1112 = vpop.f32.mrb[0].mxu0
    %v1113 = vadd.f32 %v921, %v1112
    %v1114 = vpop.f32.mrb[0].mxu0
    %1115 = vmatprep.mubr.bf16.mxu0 %v873
    %1116 = vmatmul.mubr.bf16.gmra.mrb[0].mxu0 %v872
    %v1117 = vpop.f32.mrb[0].mxu0
    %v1118 = vadd.f32 %v921, %v1117
    %v1119 = vpop.f32.mrb[0].mxu0
    %v1120 = vpop.f32.mrb[0].mxu0
    %v1121 = vadd.f32 %v921, %v1120
    %v1122 = vpop.f32.mrb[0].mxu0
    %1123 = vmatprep.mubr.bf16.mxu0 %v875
    %1124 = vmatmul.mubr.bf16.gmra.mrb[0].mxu0 %v874
    %v1125 = vpop.f32.mrb[0].mxu0
    %v1126 = vadd.f32 %v921, %v1125
    %v1127 = vpop.f32.mrb[0].mxu0
    %v1128 = vpop.f32.mrb[0].mxu0
    %v1129 = vadd.f32 %v921, %v1128
    %v1130 = vpop.f32.mrb[0].mxu0
    %1131 = vmatprep.mubr.bf16.mxu0 %v877
    %1132 = vmatmul.mubr.bf16.gmra.mrb[0].mxu0 %v876
    %v1133 = vpop.f32.mrb[0].mxu0
    %v1134 = vadd.f32 %v921, %v1133
    %v1135 = vpop.f32.mrb[0].mxu0
    %v1136 = vpop.f32.mrb[0].mxu0
    %v1137 = vadd.f32 %v921, %v1136
    %v1138 = vpop.f32.mrb[0].mxu0
    %1139 = vmatprep.mubr.bf16.mxu0 %v879
    %1140 = vmatmul.mubr.bf16.gmra.mrb[0].mxu0 %v878
    %v1141 = vpop.f32.mrb[0].mxu0
    %v1142 = vadd.f32 %v921, %v1141
    %v1143 = vpop.f32.mrb[0].mxu0
    %v1144 = vpop.f32.mrb[0].mxu0
    %v1145 = vadd.f32 %v921, %v1144
    %v1146 = vpop.f32.mrb[0].mxu0
    %1147 = vmatprep.mubr.bf16.mxu0 %v881
    %1148 = vmatmul.mubr.bf16.gmra.mrb[0].mxu0 %v880
    %v1149 = vpop.f32.mrb[0].mxu0
    %v1150 = vadd.f32 %v921, %v1149
    %v1151 = vpop.f32.mrb[0].mxu0
    %v1152 = vpop.f32.mrb[0].mxu0
    %v1153 = vadd.f32 %v921, %v1152
    %v1154 = vpop.f32.mrb[0].mxu0
    %1155 = vmatprep.mubr.bf16.mxu0 %v883
    %1156 = vmatmul.mubr.bf16.gmra.mrb[0].mxu0 %v882
    %v1157 = vpop.f32.mrb[0].mxu0
    %v1158 = vadd.f32 %v921, %v1157
    %v1159 = vpop.f32.mrb[0].mxu0
    %v1160 = vpop.f32.mrb[0].mxu0
    %v1161 = vadd.f32 %v921, %v1160
    %v1162 = vpop.f32.mrb[0].mxu0
    %1163 = vdwg.mxu0
    %v1164 = vld [vmem:[#allocation15] sm:$0x1]
    %v1165 = vld [vmem:[#allocation16] sm:$0x1]
    %v1166 = vadd.f32 %v1054, %v1057
    %v1167 = vadd.f32 %v1166, %v1062
    %v1168 = vadd.f32 %v1167, %v1065
    %v1169 = vadd.f32 %v1168, %v1070
    %v1170 = vadd.f32 %v1169, %v1073
    %v1171 = vadd.f32 %v1170, %v1078
    %v1172 = vadd.f32 %v1171, %v1081
    %v1173 = vadd.f32 %v1172, %v1086
    %v1174 = vadd.f32 %v1173, %v1089
    %v1175 = vadd.f32 %v1174, %v1094
    %v1176 = vadd.f32 %v1175, %v1097
    %v1177 = vadd.f32 %v1176, %v1102
    %v1178 = vadd.f32 %v1177, %v1105
    %v1179 = vadd.f32 %v1178, %v1110
    %v1180 = vadd.f32 %v1179, %v1113
    %v1181 = vadd.f32 %v1180, %v1118
    %v1182 = vadd.f32 %v1181, %v1121
    %v1183 = vadd.f32 %v1182, %v1126
    %v1184 = vadd.f32 %v1183, %v1129
    %v1185 = vadd.f32 %v1184, %v1134
    %v1186 = vadd.f32 %v1185, %v1137
    %v1187 = vadd.f32 %v1186, %v1142
    %v1188 = vadd.f32 %v1187, %v1145
    %v1189 = vadd.f32 %v1188, %v1150
    %v1190 = vadd.f32 %v1189, %v1153
    %v1191 = vadd.f32 %v1190, %v1158
    %v1192 = vadd.f32 %v1191, %v1161
    %v1193 = vrot.slane %v1192, 4
    %v1194 = vadd.f32 %v1192, %v1193
    %v1195 = vrot.slane %v1194, 2
    %v1196 = vadd.f32 %v1194, %v1195
    %v1197 = vrot.slane %v1196, 1
    %v1198 = vadd.f32 %v1196, %v1197
    %v1199 = vmul.f32 %v1198, 0.004464286
    %v1200 = vsub.f32 %v1054, %v1199
    %v1201 = vsub.f32 %v1057, %v1199
    %v1202 = vsub.f32 %v1062, %v1199
    %v1203 = vsub.f32 %v1065, %v1199
    %v1204 = vsub.f32 %v1070, %v1199
    %v1205 = vsub.f32 %v1073, %v1199
    %v1206 = vsub.f32 %v1078, %v1199
    %v1207 = vsub.f32 %v1081, %v1199
    %v1208 = vsub.f32 %v1086, %v1199
    %v1209 = vsub.f32 %v1089, %v1199
    %v1210 = vsub.f32 %v1094, %v1199
    %v1211 = vsub.f32 %v1097, %v1199
    %v1212 = vsub.f32 %v1102, %v1199
    %v1213 = vsub.f32 %v1105, %v1199
    %v1214 = vsub.f32 %v1110, %v1199
    %v1215 = vsub.f32 %v1113, %v1199
    %v1216 = vsub.f32 %v1118, %v1199
    %v1217 = vsub.f32 %v1121, %v1199
    %v1218 = vsub.f32 %v1126, %v1199
    %v1219 = vsub.f32 %v1129, %v1199
    %v1220 = vsub.f32 %v1134, %v1199
    %v1221 = vsub.f32 %v1137, %v1199
    %v1222 = vsub.f32 %v1142, %v1199
    %v1223 = vsub.f32 %v1145, %v1199
    %v1224 = vsub.f32 %v1150, %v1199
    %v1225 = vsub.f32 %v1153, %v1199
    %v1226 = vsub.f32 %v1158, %v1199
    %v1227 = vsub.f32 %v1161, %v1199
    %v1228 = vmul.f32 %v1200, %v1200
    %v1229 = vmul.f32 %v1201, %v1201
    %v1230 = vmul.f32 %v1202, %v1202
    %v1231 = vmul.f32 %v1203, %v1203
    %v1232 = vmul.f32 %v1204, %v1204
    %v1233 = vmul.f32 %v1205, %v1205
    %v1234 = vmul.f32 %v1206, %v1206
    %v1235 = vmul.f32 %v1207, %v1207
    %v1236 = vmul.f32 %v1208, %v1208
    %v1237 = vmul.f32 %v1209, %v1209
    %v1238 = vmul.f32 %v1210, %v1210
    %v1239 = vmul.f32 %v1211, %v1211
    %v1240 = vmul.f32 %v1212, %v1212
    %v1241 = vmul.f32 %v1213, %v1213
    %v1242 = vmul.f32 %v1214, %v1214
    %v1243 = vmul.f32 %v1215, %v1215
    %v1244 = vmul.f32 %v1216, %v1216
    %v1245 = vmul.f32 %v1217, %v1217
    %v1246 = vmul.f32 %v1218, %v1218
    %v1247 = vmul.f32 %v1219, %v1219
    %v1248 = vmul.f32 %v1220, %v1220
    %v1249 = vmul.f32 %v1221, %v1221
    %v1250 = vmul.f32 %v1222, %v1222
    %v1251 = vmul.f32 %v1223, %v1223
    %v1252 = vmul.f32 %v1224, %v1224
    %v1253 = vmul.f32 %v1225, %v1225
    %v1254 = vmul.f32 %v1226, %v1226
    %v1255 = vmul.f32 %v1227, %v1227
    %v1256 = vadd.f32 %v1228, %v1229
    %v1257 = vadd.f32 %v1256, %v1230
    %v1258 = vadd.f32 %v1257, %v1231
    %v1259 = vadd.f32 %v1258, %v1232
    %v1260 = vadd.f32 %v1259, %v1233
    %v1261 = vadd.f32 %v1260, %v1234
    %v1262 = vadd.f32 %v1261, %v1235
    %v1263 = vadd.f32 %v1262, %v1236
    %v1264 = vadd.f32 %v1263, %v1237
    %v1265 = vadd.f32 %v1264, %v1238
    %v1266 = vadd.f32 %v1265, %v1239
    %v1267 = vadd.f32 %v1266, %v1240
    %v1268 = vadd.f32 %v1267, %v1241
    %v1269 = vadd.f32 %v1268, %v1242
    %v1270 = vadd.f32 %v1269, %v1243
    %v1271 = vadd.f32 %v1270, %v1244
    %v1272 = vadd.f32 %v1271, %v1245
    %v1273 = vadd.f32 %v1272, %v1246
    %v1274 = vadd.f32 %v1273, %v1247
    %v1275 = vadd.f32 %v1274, %v1248
    %v1276 = vadd.f32 %v1275, %v1249
    %v1277 = vadd.f32 %v1276, %v1250
    %v1278 = vadd.f32 %v1277, %v1251
    %v1279 = vadd.f32 %v1278, %v1252
    %v1280 = vadd.f32 %v1279, %v1253
    %v1281 = vadd.f32 %v1280, %v1254
    %v1282 = vadd.f32 %v1281, %v1255
    %v1283 = vrot.slane %v1282, 4
    %v1284 = vadd.f32 %v1282, %v1283
    %v1285 = vrot.slane %v1284, 2
    %v1286 = vadd.f32 %v1284, %v1285
    %v1287 = vrot.slane %v1286, 1
    %v1288 = vadd.f32 %v1286, %v1287
    %v1289 = vmul.f32 %v1288, 0.004464286
    %v1290 = vadd.f32 %v1289, 1e-05
    %v1291 = vrsqrt.pop %v1290
    %v1292 = vmul.f32 %v1200, %v1291
    %v1293 = vmul.f32 %v1201, %v1291
    %v1294 = vmul.f32 %v1202, %v1291
    %v1295 = vmul.f32 %v1203, %v1291
    %v1296 = vmul.f32 %v1204, %v1291
    %v1297 = vmul.f32 %v1205, %v1291
    %v1298 = vmul.f32 %v1206, %v1291
    %v1299 = vmul.f32 %v1207, %v1291
    %v1300 = vmul.f32 %v1208, %v1291
    %v1301 = vmul.f32 %v1209, %v1291
    %v1302 = vmul.f32 %v1210, %v1291
    %v1303 = vmul.f32 %v1211, %v1291
    %v1304 = vmul.f32 %v1212, %v1291
    %v1305 = vmul.f32 %v1213, %v1291
    %v1306 = vmul.f32 %v1214, %v1291
    %v1307 = vmul.f32 %v1215, %v1291
    %v1308 = vmul.f32 %v1216, %v1291
    %v1309 = vmul.f32 %v1217, %v1291
    %v1310 = vmul.f32 %v1218, %v1291
    %v1311 = vmul.f32 %v1219, %v1291
    %v1312 = vmul.f32 %v1220, %v1291
    %v1313 = vmul.f32 %v1221, %v1291
    %v1314 = vmul.f32 %v1222, %v1291
    %v1315 = vmul.f32 %v1223, %v1291
    %v1316 = vmul.f32 %v1224, %v1291
    %v1317 = vmul.f32 %v1225, %v1291
    %v1318 = vmul.f32 %v1226, %v1291
    %v1319 = vmul.f32 %v1227, %v1291
    %v1321 = vlaneseq
    %v1322 = vshrl.u32 %v1321, 7
    %v1323 = vsub.s32 0, %v1322
    %v1324 = vrot.slane %v1164, %v1323
    %v1326 = vmul.f32 %v1292, %v1324
    %v1327 = vmul.f32 %v1293, %v1324
    %v1328 = vmul.f32 %v1294, %v1324
    %v1329 = vmul.f32 %v1295, %v1324
    %v1330 = vmul.f32 %v1296, %v1324
    %v1331 = vmul.f32 %v1297, %v1324
    %v1332 = vmul.f32 %v1298, %v1324
    %v1333 = vmul.f32 %v1299, %v1324
    %v1334 = vmul.f32 %v1300, %v1324
    %v1335 = vmul.f32 %v1301, %v1324
    %v1336 = vmul.f32 %v1302, %v1324
    %v1337 = vmul.f32 %v1303, %v1324
    %v1338 = vmul.f32 %v1304, %v1324
    %v1339 = vmul.f32 %v1305, %v1324
    %v1340 = vmul.f32 %v1306, %v1324
    %v1341 = vmul.f32 %v1307, %v1324
    %v1342 = vmul.f32 %v1308, %v1324
    %v1343 = vmul.f32 %v1309, %v1324
    %v1344 = vmul.f32 %v1310, %v1324
    %v1345 = vmul.f32 %v1311, %v1324
    %v1346 = vmul.f32 %v1312, %v1324
    %v1347 = vmul.f32 %v1313, %v1324
    %v1348 = vmul.f32 %v1314, %v1324
    %v1349 = vmul.f32 %v1315, %v1324
    %v1350 = vmul.f32 %v1316, %v1324
    %v1351 = vmul.f32 %v1317, %v1324
    %v1352 = vmul.f32 %v1318, %v1324
    %v1353 = vmul.f32 %v1319, %v1324
    %v1355 = vlaneseq
    %v1356 = vshrl.u32 %v1355, 7
    %v1357 = vsub.s32 0, %v1356
    %v1358 = vrot.slane %v1165, %v1357
    %v1360 = vadd.f32 %v1326, %v1358
    %v1361 = vadd.f32 %v1327, %v1358
    %v1362 = vadd.f32 %v1328, %v1358
    %v1363 = vadd.f32 %v1329, %v1358
    %v1364 = vadd.f32 %v1330, %v1358
    %v1365 = vadd.f32 %v1331, %v1358
    %v1366 = vadd.f32 %v1332, %v1358
    %v1367 = vadd.f32 %v1333, %v1358
    %v1368 = vadd.f32 %v1334, %v1358
    %v1369 = vadd.f32 %v1335, %v1358
    %v1370 = vadd.f32 %v1336, %v1358
    %v1371 = vadd.f32 %v1337, %v1358
    %v1372 = vadd.f32 %v1338, %v1358
    %v1373 = vadd.f32 %v1339, %v1358
    %v1374 = vadd.f32 %v1340, %v1358
    %v1375 = vadd.f32 %v1341, %v1358
    %v1376 = vadd.f32 %v1342, %v1358
    %v1377 = vadd.f32 %v1343, %v1358
    %v1378 = vadd.f32 %v1344, %v1358
    %v1379 = vadd.f32 %v1345, %v1358
    %v1380 = vadd.f32 %v1346, %v1358
    %v1381 = vadd.f32 %v1347, %v1358
    %v1382 = vadd.f32 %v1348, %v1358
    %v1383 = vadd.f32 %v1349, %v1358
    %v1384 = vadd.f32 %v1350, %v1358
    %v1385 = vadd.f32 %v1351, %v1358
    %v1386 = vadd.f32 %v1352, %v1358
    %v1387 = vadd.f32 %v1353, %v1358
    %vm1388 = vcmp.ge.f32.partialorder %v1360, 0.0
    %vm1389 = vcmp.ge.f32.partialorder %v1361, 0.0
    %vm1390 = vcmp.ge.f32.partialorder %v1362, 0.0
    %vm1391 = vcmp.ge.f32.partialorder %v1363, 0.0
    %vm1392 = vcmp.ge.f32.partialorder %v1364, 0.0
    %vm1393 = vcmp.ge.f32.partialorder %v1365, 0.0
    %vm1394 = vcmp.ge.f32.partialorder %v1366, 0.0
    %vm1395 = vcmp.ge.f32.partialorder %v1367, 0.0
    %vm1396 = vcmp.ge.f32.partialorder %v1368, 0.0
    %vm1397 = vcmp.ge.f32.partialorder %v1369, 0.0
    %vm1398 = vcmp.ge.f32.partialorder %v1370, 0.0
    %vm1399 = vcmp.ge.f32.partialorder %v1371, 0.0
    %vm1400 = vcmp.ge.f32.partialorder %v1372, 0.0
    %vm1401 = vcmp.ge.f32.partialorder %v1373, 0.0
    %vm1402 = vcmp.ge.f32.partialorder %v1374, 0.0
    %vm1403 = vcmp.ge.f32.partialorder %v1375, 0.0
    %vm1404 = vcmp.ge.f32.partialorder %v1376, 0.0
    %vm1405 = vcmp.ge.f32.partialorder %v1377, 0.0
    %vm1406 = vcmp.ge.f32.partialorder %v1378, 0.0
    %vm1407 = vcmp.ge.f32.partialorder %v1379, 0.0
    %vm1408 = vcmp.ge.f32.partialorder %v1380, 0.0
    %vm1409 = vcmp.ge.f32.partialorder %v1381, 0.0
    %vm1410 = vcmp.ge.f32.partialorder %v1382, 0.0
    %vm1411 = vcmp.ge.f32.partialorder %v1383, 0.0
    %vm1412 = vcmp.ge.f32.partialorder %v1384, 0.0
    %vm1413 = vcmp.ge.f32.partialorder %v1385, 0.0
    %vm1414 = vcmp.ge.f32.partialorder %v1386, 0.0
    %vm1415 = vcmp.ge.f32.partialorder %v1387, 0.0
    %v1416 = vmul.f32 %v1360, 0.01
    %v1417 = vmul.f32 %v1361, 0.01
    %v1418 = vmul.f32 %v1362, 0.01
    %v1419 = vmul.f32 %v1363, 0.01
    %v1420 = vmul.f32 %v1364, 0.01
    %v1421 = vmul.f32 %v1365, 0.01
    %v1422 = vmul.f32 %v1366, 0.01
    %v1423 = vmul.f32 %v1367, 0.01
    %v1424 = vmul.f32 %v1368, 0.01
    %v1425 = vmul.f32 %v1369, 0.01
    %v1426 = vmul.f32 %v1370, 0.01
    %v1427 = vmul.f32 %v1371, 0.01
    %v1428 = vmul.f32 %v1372, 0.01
    %v1429 = vmul.f32 %v1373, 0.01
    %v1430 = vmul.f32 %v1374, 0.01
    %v1431 = vmul.f32 %v1375, 0.01
    %v1432 = vmul.f32 %v1376, 0.01
    %v1433 = vmul.f32 %v1377, 0.01
    %v1434 = vmul.f32 %v1378, 0.01
    %v1435 = vmul.f32 %v1379, 0.01
    %v1436 = vmul.f32 %v1380, 0.01
    %v1437 = vmul.f32 %v1381, 0.01
    %v1438 = vmul.f32 %v1382, 0.01
    %v1439 = vmul.f32 %v1383, 0.01
    %v1440 = vmul.f32 %v1384, 0.01
    %v1441 = vmul.f32 %v1385, 0.01
    %v1442 = vmul.f32 %v1386, 0.01
    %v1443 = vmul.f32 %v1387, 0.01
    %v1444 = vsel %vm1388, %v1360, %v1416
    %v1445 = vsel %vm1389, %v1361, %v1417
    %v1446 = vsel %vm1390, %v1362, %v1418
    %v1447 = vsel %vm1391, %v1363, %v1419
    %v1448 = vsel %vm1392, %v1364, %v1420
    %v1449 = vsel %vm1393, %v1365, %v1421
    %v1450 = vsel %vm1394, %v1366, %v1422
    %v1451 = vsel %vm1395, %v1367, %v1423
    %v1452 = vsel %vm1396, %v1368, %v1424
    %v1453 = vsel %vm1397, %v1369, %v1425
    %v1454 = vsel %vm1398, %v1370, %v1426
    %v1455 = vsel %vm1399, %v1371, %v1427
    %v1456 = vsel %vm1400, %v1372, %v1428
    %v1457 = vsel %vm1401, %v1373, %v1429
    %v1458 = vsel %vm1402, %v1374, %v1430
    %v1459 = vsel %vm1403, %v1375, %v1431
    %v1460 = vsel %vm1404, %v1376, %v1432
    %v1461 = vsel %vm1405, %v1377, %v1433
    %v1462 = vsel %vm1406, %v1378, %v1434
    %v1463 = vsel %vm1407, %v1379, %v1435
    %v1464 = vsel %vm1408, %v1380, %v1436
    %v1465 = vsel %vm1409, %v1381, %v1437
    %v1466 = vsel %vm1410, %v1382, %v1438
    %v1467 = vsel %vm1411, %v1383, %v1439
    %v1468 = vsel %vm1412, %v1384, %v1440
    %v1469 = vsel %vm1413, %v1385, %v1441
    %v1470 = vsel %vm1414, %v1386, %v1442
    %v1471 = vsel %vm1415, %v1387, %v1443
    %v1472 = vpack.c.bf16 %v1445, %v1444
    %v1473 = vpack.c.bf16 %v1447, %v1446
    %v1474 = vpack.c.bf16 %v1449, %v1448
    %v1475 = vpack.c.bf16 %v1451, %v1450
    %v1476 = vpack.c.bf16 %v1453, %v1452
    %v1477 = vpack.c.bf16 %v1455, %v1454
    %v1478 = vpack.c.bf16 %v1457, %v1456
    %v1479 = vpack.c.bf16 %v1459, %v1458
    %v1480 = vpack.c.bf16 %v1461, %v1460
    %v1481 = vpack.c.bf16 %v1463, %v1462
    %v1482 = vpack.c.bf16 %v1465, %v1464
    %v1483 = vpack.c.bf16 %v1467, %v1466
    %v1484 = vpack.c.bf16 %v1469, %v1468
    %v1485 = vpack.c.bf16 %v1471, %v1470
    %1486 = vst [vmem:[#allocation5] sm:$0xff] %v1472
    %1487 = vst [vmem:[#allocation5 + $0x10] sm:$0xff] %v1473
    %1488 = vst [vmem:[#allocation5 + $0x20] sm:$0xff] %v1474
    %1489 = vst [vmem:[#allocation5 + $0x30] sm:$0xff] %v1475
    %1490 = vst [vmem:[#allocation5 + $0x40] sm:$0xff] %v1476
    %1491 = vst [vmem:[#allocation5 + $0x50] sm:$0xff] %v1477
    %1492 = vst [vmem:[#allocation5 + $0x60] sm:$0xff] %v1478
    %1493 = vst [vmem:[#allocation5 + $0x8] sm:$0xff] %v1479
    %1494 = vst [vmem:[#allocation5 + $0x18] sm:$0xff] %v1480
    %1495 = vst [vmem:[#allocation5 + $0x28] sm:$0xff] %v1481
    %1496 = vst [vmem:[#allocation5 + $0x38] sm:$0xff] %v1482
    %1497 = vst [vmem:[#allocation5 + $0x48] sm:$0xff] %v1483
    %1498 = vst [vmem:[#allocation5 + $0x58] sm:$0xff] %v1484
    %1499 = vst [vmem:[#allocation5 + $0x68] sm:$0xff] %v1485
    %v1500 = vld [vmem:[#allocation5] sm:$0xff]
    %v1501 = vld [vmem:[#allocation5 + $0x8] sm:$0xff]
    %v1502 = vld [vmem:[#allocation5 + $0x10] sm:$0xff]
    %v1503 = vld [vmem:[#allocation5 + $0x18] sm:$0xff]
    %v1504 = vld [vmem:[#allocation5 + $0x20] sm:$0xff]
    %v1505 = vld [vmem:[#allocation5 + $0x28] sm:$0xff]
    %v1506 = vld [vmem:[#allocation5 + $0x30] sm:$0xff]
    %v1507 = vld [vmem:[#allocation5 + $0x38] sm:$0xff]
    %v1508 = vld [vmem:[#allocation5 + $0x40] sm:$0xff]
    %v1509 = vld [vmem:[#allocation5 + $0x48] sm:$0xff]
    %v1510 = vld [vmem:[#allocation5 + $0x50] sm:$0xff]
    %v1511 = vld [vmem:[#allocation5 + $0x58] sm:$0xff]
    %v1512 = vld [vmem:[#allocation5 + $0x60] sm:$0xff]
    %v1513 = vld [vmem:[#allocation5 + $0x68] sm:$0xff]
    %v1514 = vld [vmem:[#allocation18] sm:$0xff]
    %v1515 = vld [vmem:[#allocation18 + $0x8] sm:$0xff]
    %v1516 = vld [vmem:[#allocation18 + $0x10] sm:$0xff]
    %v1517 = vld [vmem:[#allocation18 + $0x18] sm:$0xff]
    %v1518 = vld [vmem:[#allocation18 + $0x20] sm:$0xff]
    %v1519 = vld [vmem:[#allocation18 + $0x28] sm:$0xff]
    %v1520 = vld [vmem:[#allocation18 + $0x30] sm:$0xff]
    %v1521 = vld [vmem:[#allocation18 + $0x38] sm:$0xff]
    %v1522 = vld [vmem:[#allocation18 + $0x40] sm:$0xff]
    %v1523 = vld [vmem:[#allocation18 + $0x48] sm:$0xff]
    %v1524 = vld [vmem:[#allocation18 + $0x50] sm:$0xff]
    %v1525 = vld [vmem:[#allocation18 + $0x58] sm:$0xff]
    %v1526 = vld [vmem:[#allocation18 + $0x60] sm:$0xff]
    %v1527 = vld [vmem:[#allocation18 + $0x68] sm:$0xff]
    %v1528 = vld [vmem:[#allocation18 + $0x70] sm:$0xff]
    %v1529 = vld [vmem:[#allocation18 + $0x78] sm:$0xff]
    %v1530 = vld [vmem:[#allocation18 + $0x80] sm:$0xff]
    %v1531 = vld [vmem:[#allocation18 + $0x88] sm:$0xff]
    %v1532 = vld [vmem:[#allocation18 + $0x90] sm:$0xff]
    %v1533 = vld [vmem:[#allocation18 + $0x98] sm:$0xff]
    %v1534 = vld [vmem:[#allocation18 + $0xa0] sm:$0xff]
    %v1535 = vld [vmem:[#allocation18 + $0xa8] sm:$0xff]
    %v1536 = vld [vmem:[#allocation18 + $0xb0] sm:$0xff]
    %v1537 = vld [vmem:[#allocation18 + $0xb8] sm:$0xff]
    %v1538 = vld [vmem:[#allocation18 + $0xc0] sm:$0xff]
    %v1539 = vld [vmem:[#allocation18 + $0xc8] sm:$0xff]
    %v1540 = vld [vmem:[#allocation18 + $0xd0] sm:$0xff]
    %v1541 = vld [vmem:[#allocation18 + $0xd8] sm:$0xff]
    %v1542 = vld [vmem:[#allocation18 + $0xe0] sm:$0xff]
    %v1543 = vld [vmem:[#allocation18 + $0xe8] sm:$0xff]
    %v1544 = vld [vmem:[#allocation18 + $0xf0] sm:$0xff]
    %v1545 = vld [vmem:[#allocation18 + $0xf8] sm:$0xff]
    %v1546 = vld [vmem:[#allocation19] sm:$0x3]
    %v1548 = vlaneseq
    %v1549 = vshrl.u32 %v1548, 7
    %v1550 = vsub.s32 0, %v1549
    %v1551 = vrot.slane %v1546, %v1550
    %v1552 = vlaneseq
    %v1553 = vshrl.u32 %v1552, 7
    %v1554 = vsub.s32 1, %v1553
    %v1555 = vrot.slane %v1546, %v1554
    %v1590 = vunpack.c.l.b16 %v1514
    %v1591 = vunpack.c.h.b16 %v1514
    %v1592 = vunpack.c.l.b16 %v1515
    %v1593 = vunpack.c.h.b16 %v1515
    %v1594 = vunpack.c.l.b16 %v1516
    %v1595 = vunpack.c.h.b16 %v1516
    %v1596 = vunpack.c.l.b16 %v1517
    %v1597 = vunpack.c.h.b16 %v1517
    %v1598 = vunpack.c.l.b16 %v1518
    %v1599 = vunpack.c.h.b16 %v1518
    %v1600 = vunpack.c.l.b16 %v1519
    %v1601 = vunpack.c.h.b16 %v1519
    %v1602 = vunpack.c.l.b16 %v1520
    %v1603 = vunpack.c.h.b16 %v1520
    %v1604 = vunpack.c.l.b16 %v1521
    %v1605 = vunpack.c.h.b16 %v1521
    %v1606 = vunpack.c.l.b16 %v1522
    %v1607 = vunpack.c.h.b16 %v1522
    %v1608 = vunpack.c.l.b16 %v1523
    %v1609 = vunpack.c.h.b16 %v1523
    %v1610 = vunpack.c.l.b16 %v1524
    %v1611 = vunpack.c.h.b16 %v1524
    %v1612 = vunpack.c.l.b16 %v1525
    %v1613 = vunpack.c.h.b16 %v1525
    %v1614 = vunpack.c.l.b16 %v1526
    %v1615 = vunpack.c.h.b16 %v1526
    %v1616 = vunpack.c.l.b16 %v1527
    %v1617 = vunpack.c.h.b16 %v1527
    %v1618 = vunpack.c.l.b16 %v1528
    %v1619 = vunpack.c.h.b16 %v1528
    %v1620 = vunpack.c.l.b16 %v1529
    %v1621 = vunpack.c.h.b16 %v1529
    %v1622 = vunpack.c.l.b16 %v1530
    %v1623 = vunpack.c.h.b16 %v1530
    %v1624 = vunpack.c.l.b16 %v1531
    %v1625 = vunpack.c.h.b16 %v1531
    %v1626 = vunpack.c.l.b16 %v1532
    %v1627 = vunpack.c.h.b16 %v1532
    %v1628 = vunpack.c.l.b16 %v1533
    %v1629 = vunpack.c.h.b16 %v1533
    %v1630 = vunpack.c.l.b16 %v1534
    %v1631 = vunpack.c.h.b16 %v1534
    %v1632 = vunpack.c.l.b16 %v1535
    %v1633 = vunpack.c.h.b16 %v1535
    %v1634 = vunpack.c.l.b16 %v1536
    %v1635 = vunpack.c.h.b16 %v1536
    %v1636 = vunpack.c.l.b16 %v1537
    %v1637 = vunpack.c.h.b16 %v1537
    %v1638 = vunpack.c.l.b16 %v1538
    %v1639 = vunpack.c.h.b16 %v1538
    %v1640 = vunpack.c.l.b16 %v1539
    %v1641 = vunpack.c.h.b16 %v1539
    %v1642 = vunpack.c.l.b16 %v1540
    %v1643 = vunpack.c.h.b16 %v1540
    %v1644 = vunpack.c.l.b16 %v1541
    %v1645 = vunpack.c.h.b16 %v1541
    %v1646 = vunpack.c.l.b16 %v1542
    %v1647 = vunpack.c.h.b16 %v1542
    %v1648 = vunpack.c.l.b16 %v1543
    %v1649 = vunpack.c.h.b16 %v1543
    %v1650 = vunpack.c.l.b16 %v1544
    %v1651 = vunpack.c.h.b16 %v1544
    %v1652 = vunpack.c.l.b16 %v1545
    %v1653 = vunpack.c.h.b16 %v1545
    %v1654 = vpack.c.b16 %v1592, %v1590
    %v1655 = vpack.c.b16 %v1593, %v1591
    %v1656 = vpack.c.b16 %v1596, %v1594
    %v1657 = vpack.c.b16 %v1597, %v1595
    %v1658 = vpack.c.b16 %v1600, %v1598
    %v1659 = vpack.c.b16 %v1601, %v1599
    %v1660 = vpack.c.b16 %v1604, %v1602
    %v1661 = vpack.c.b16 %v1605, %v1603
    %v1662 = vpack.c.b16 %v1608, %v1606
    %v1663 = vpack.c.b16 %v1609, %v1607
    %v1664 = vpack.c.b16 %v1612, %v1610
    %v1665 = vpack.c.b16 %v1613, %v1611
    %v1666 = vpack.c.b16 %v1616, %v1614
    %v1667 = vpack.c.b16 %v1617, %v1615
    %v1668 = vpack.c.b16 %v1620, %v1618
    %v1669 = vpack.c.b16 %v1621, %v1619
    %v1670 = vpack.c.b16 %v1624, %v1622
    %v1671 = vpack.c.b16 %v1625, %v1623
    %v1672 = vpack.c.b16 %v1628, %v1626
    %v1673 = vpack.c.b16 %v1629, %v1627
    %v1674 = vpack.c.b16 %v1632, %v1630
    %v1675 = vpack.c.b16 %v1633, %v1631
    %v1676 = vpack.c.b16 %v1636, %v1634
    %v1677 = vpack.c.b16 %v1637, %v1635
    %v1678 = vpack.c.b16 %v1640, %v1638
    %v1679 = vpack.c.b16 %v1641, %v1639
    %v1680 = vpack.c.b16 %v1644, %v1642
    %v1681 = vpack.c.b16 %v1645, %v1643
    %v1682 = vpack.c.b16 %v1648, %v1646
    %v1683 = vpack.c.b16 %v1649, %v1647
    %v1684 = vpack.c.b16 %v1652, %v1650
    %v1685 = vpack.c.b16 %v1653, %v1651
    %1718 = vmatprep.subr.bf16.mxu0 %v1655
    %1719 = vmatpush1.bf16.msra.mxu0 %v1654
    %1720 = vmatprep.subr.bf16.mxu0 %v1657
    %1721 = vmatpush1.bf16.msra.mxu0 %v1656
    %1722 = vmatprep.subr.bf16.mxu0 %v1659
    %1723 = vmatpush1.bf16.msra.mxu0 %v1658
    %1724 = vmatprep.subr.bf16.mxu0 %v1661
    %1725 = vmatpush1.bf16.msra.mxu0 %v1660
    %1726 = vmatprep.subr.bf16.mxu0 %v1663
    %1727 = vmatpush1.bf16.msra.mxu0 %v1662
    %1728 = vmatprep.subr.bf16.mxu0 %v1665
    %1729 = vmatpush1.bf16.msra.mxu0 %v1664
    %1730 = vmatprep.subr.bf16.mxu0 %v1667
    %1731 = vmatpush1.bf16.msra.mxu0 %v1666
    %1732 = vmatprep.subr.bf16.mxu0 %v1669
    %1733 = vmatpush1.bf16.msra.mxu0 %v1668
    %1734 = vmatprep.subr.bf16.mxu0 %v1671
    %1735 = vmatpush1.bf16.msra.mxu0 %v1670
    %1736 = vmatprep.subr.bf16.mxu0 %v1673
    %1737 = vmatpush1.bf16.msra.mxu0 %v1672
    %1738 = vmatprep.subr.bf16.mxu0 %v1675
    %1739 = vmatpush1.bf16.msra.mxu0 %v1674
    %1740 = vmatprep.subr.bf16.mxu0 %v1677
    %1741 = vmatpush1.bf16.msra.mxu0 %v1676
    %1742 = vmatprep.subr.bf16.mxu0 %v1679
    %1743 = vmatpush1.bf16.msra.mxu0 %v1678
    %1744 = vmatprep.subr.bf16.mxu0 %v1681
    %1745 = vmatpush1.bf16.msra.mxu0 %v1680
    %1746 = vmatprep.subr.bf16.mxu0 %v1683
    %1747 = vmatpush1.bf16.msra.mxu0 %v1682
    %1748 = vmatprep.subr.bf16.mxu0 %v1685
    %1749 = vmatpush1.bf16.msra.mxu0 %v1684
    %1750 = vmatprep.mubr.bf16.mxu0 %v1501
    %1751 = vmatmul.mubr.bf16.gmra.mrb[0].mxu0 %v1500
    %v1752 = vpop.f32.mrb[0].mxu0
    %v1753 = vadd.f32 %v1551, %v1752
    %v1754 = vpop.f32.mrb[0].mxu0
    %v1755 = vadd.f32 %v1555, %v1754
    %v1756 = vpop.f32.mrb[0].mxu0
    %v1757 = vadd.f32 %v1551, %v1756
    %v1758 = vpop.f32.mrb[0].mxu0
    %v1759 = vadd.f32 %v1555, %v1758
    %1760 = vmatprep.mubr.bf16.mxu0 %v1503
    %1761 = vmatmul.mubr.bf16.gmra.mrb[0].mxu0 %v1502
    %v1762 = vpop.f32.mrb[0].mxu0
    %v1763 = vadd.f32 %v1551, %v1762
    %v1764 = vpop.f32.mrb[0].mxu0
    %v1765 = vadd.f32 %v1555, %v1764
    %v1766 = vpop.f32.mrb[0].mxu0
    %v1767 = vadd.f32 %v1551, %v1766
    %v1768 = vpop.f32.mrb[0].mxu0
    %v1769 = vadd.f32 %v1555, %v1768
    %1770 = vmatprep.mubr.bf16.mxu0 %v1505
    %1771 = vmatmul.mubr.bf16.gmra.mrb[0].mxu0 %v1504
    %v1772 = vpop.f32.mrb[0].mxu0
    %v1773 = vadd.f32 %v1551, %v1772
    %v1774 = vpop.f32.mrb[0].mxu0
    %v1775 = vadd.f32 %v1555, %v1774
    %v1776 = vpop.f32.mrb[0].mxu0
    %v1777 = vadd.f32 %v1551, %v1776
    %v1778 = vpop.f32.mrb[0].mxu0
    %v1779 = vadd.f32 %v1555, %v1778
    %1780 = vmatprep.mubr.bf16.mxu0 %v1507
    %1781 = vmatmul.mubr.bf16.gmra.mrb[0].mxu0 %v1506
    %v1782 = vpop.f32.mrb[0].mxu0
    %v1783 = vadd.f32 %v1551, %v1782
    %v1784 = vpop.f32.mrb[0].mxu0
    %v1785 = vadd.f32 %v1555, %v1784
    %v1786 = vpop.f32.mrb[0].mxu0
    %v1787 = vadd.f32 %v1551, %v1786
    %v1788 = vpop.f32.mrb[0].mxu0
    %v1789 = vadd.f32 %v1555, %v1788
    %1790 = vmatprep.mubr.bf16.mxu0 %v1509
    %1791 = vmatmul.mubr.bf16.gmra.mrb[0].mxu0 %v1508
    %v1792 = vpop.f32.mrb[0].mxu0
    %v1793 = vadd.f32 %v1551, %v1792
    %v1794 = vpop.f32.mrb[0].mxu0
    %v1795 = vadd.f32 %v1555, %v1794
    %v1796 = vpop.f32.mrb[0].mxu0
    %v1797 = vadd.f32 %v1551, %v1796
    %v1798 = vpop.f32.mrb[0].mxu0
    %v1799 = vadd.f32 %v1555, %v1798
    %1800 = vmatprep.mubr.bf16.mxu0 %v1511
    %1801 = vmatmul.mubr.bf16.gmra.mrb[0].mxu0 %v1510
    %v1802 = vpop.f32.mrb[0].mxu0
    %v1803 = vadd.f32 %v1551, %v1802
    %v1804 = vpop.f32.mrb[0].mxu0
    %v1805 = vadd.f32 %v1555, %v1804
    %v1806 = vpop.f32.mrb[0].mxu0
    %v1807 = vadd.f32 %v1551, %v1806
    %v1808 = vpop.f32.mrb[0].mxu0
    %v1809 = vadd.f32 %v1555, %v1808
    %1810 = vmatprep.mubr.bf16.mxu0 %v1513
    %1811 = vmatmul.mubr.bf16.gmra.mrb[0].mxu0 %v1512
    %v1812 = vpop.f32.mrb[0].mxu0
    %v1813 = vadd.f32 %v1551, %v1812
    %v1814 = vpop.f32.mrb[0].mxu0
    %v1815 = vadd.f32 %v1555, %v1814
    %v1816 = vpop.f32.mrb[0].mxu0
    %v1817 = vadd.f32 %v1551, %v1816
    %v1818 = vpop.f32.mrb[0].mxu0
    %v1819 = vadd.f32 %v1555, %v1818
    %1820 = vdwg.mxu0
    %v1821 = vld [vmem:[#allocation21] sm:$0x3]
    %v1822 = vld [vmem:[#allocation22] sm:$0x3]
    %v1823 = vadd.f32 %v1753, %v1757
    %v1824 = vadd.f32 %v1823, %v1763
    %v1825 = vadd.f32 %v1824, %v1767
    %v1826 = vadd.f32 %v1825, %v1773
    %v1827 = vadd.f32 %v1826, %v1777
    %v1828 = vadd.f32 %v1827, %v1783
    %v1829 = vadd.f32 %v1828, %v1787
    %v1830 = vadd.f32 %v1829, %v1793
    %v1831 = vadd.f32 %v1830, %v1797
    %v1832 = vadd.f32 %v1831, %v1803
    %v1833 = vadd.f32 %v1832, %v1807
    %v1834 = vadd.f32 %v1833, %v1813
    %v1835 = vadd.f32 %v1834, %v1817
    %v1836 = vrot.slane %v1835, 4
    %v1837 = vadd.f32 %v1835, %v1836
    %v1838 = vrot.slane %v1837, 2
    %v1839 = vadd.f32 %v1837, %v1838
    %v1840 = vrot.slane %v1839, 1
    %v1841 = vadd.f32 %v1839, %v1840
    %v1842 = vadd.f32 %v1755, %v1759
    %v1843 = vadd.f32 %v1842, %v1765
    %v1844 = vadd.f32 %v1843, %v1769
    %v1845 = vadd.f32 %v1844, %v1775
    %v1846 = vadd.f32 %v1845, %v1779
    %v1847 = vadd.f32 %v1846, %v1785
    %v1848 = vadd.f32 %v1847, %v1789
    %v1849 = vadd.f32 %v1848, %v1795
    %v1850 = vadd.f32 %v1849, %v1799
    %v1851 = vadd.f32 %v1850, %v1805
    %v1852 = vadd.f32 %v1851, %v1809
    %v1853 = vadd.f32 %v1852, %v1815
    %v1854 = vadd.f32 %v1853, %v1819
    %v1855 = vrot.slane %v1854, 4
    %v1856 = vadd.f32 %v1854, %v1855
    %v1857 = vrot.slane %v1856, 2
    %v1858 = vadd.f32 %v1856, %v1857
    %v1859 = vrot.slane %v1858, 1
    %v1860 = vadd.f32 %v1858, %v1859
    %v1861 = vmul.f32 %v1841, 0.008928572
    %v1862 = vmul.f32 %v1860, 0.008928572
    %v1863 = vsub.f32 %v1753, %v1861
    %v1864 = vsub.f32 %v1755, %v1862
    %v1865 = vsub.f32 %v1757, %v1861
    %v1866 = vsub.f32 %v1759, %v1862
    %v1867 = vsub.f32 %v1763, %v1861
    %v1868 = vsub.f32 %v1765, %v1862
    %v1869 = vsub.f32 %v1767, %v1861
    %v1870 = vsub.f32 %v1769, %v1862
    %v1871 = vsub.f32 %v1773, %v1861
    %v1872 = vsub.f32 %v1775, %v1862
    %v1873 = vsub.f32 %v1777, %v1861
    %v1874 = vsub.f32 %v1779, %v1862
    %v1875 = vsub.f32 %v1783, %v1861
    %v1876 = vsub.f32 %v1785, %v1862
    %v1877 = vsub.f32 %v1787, %v1861
    %v1878 = vsub.f32 %v1789, %v1862
    %v1879 = vsub.f32 %v1793, %v1861
    %v1880 = vsub.f32 %v1795, %v1862
    %v1881 = vsub.f32 %v1797, %v1861
    %v1882 = vsub.f32 %v1799, %v1862
    %v1883 = vsub.f32 %v1803, %v1861
    %v1884 = vsub.f32 %v1805, %v1862
    %v1885 = vsub.f32 %v1807, %v1861
    %v1886 = vsub.f32 %v1809, %v1862
    %v1887 = vsub.f32 %v1813, %v1861
    %v1888 = vsub.f32 %v1815, %v1862
    %v1889 = vsub.f32 %v1817, %v1861
    %v1890 = vsub.f32 %v1819, %v1862
    %v1891 = vmul.f32 %v1863, %v1863
    %v1892 = vmul.f32 %v1864, %v1864
    %v1893 = vmul.f32 %v1865, %v1865
    %v1894 = vmul.f32 %v1866, %v1866
    %v1895 = vmul.f32 %v1867, %v1867
    %v1896 = vmul.f32 %v1868, %v1868
    %v1897 = vmul.f32 %v1869, %v1869
    %v1898 = vmul.f32 %v1870, %v1870
    %v1899 = vmul.f32 %v1871, %v1871
    %v1900 = vmul.f32 %v1872, %v1872
    %v1901 = vmul.f32 %v1873, %v1873
    %v1902 = vmul.f32 %v1874, %v1874
    %v1903 = vmul.f32 %v1875, %v1875
    %v1904 = vmul.f32 %v1876, %v1876
    %v1905 = vmul.f32 %v1877, %v1877
    %v1906 = vmul.f32 %v1878, %v1878
    %v1907 = vmul.f32 %v1879, %v1879
    %v1908 = vmul.f32 %v1880, %v1880
    %v1909 = vmul.f32 %v1881, %v1881
    %v1910 = vmul.f32 %v1882, %v1882
    %v1911 = vmul.f32 %v1883, %v1883
    %v1912 = vmul.f32 %v1884, %v1884
    %v1913 = vmul.f32 %v1885, %v1885
    %v1914 = vmul.f32 %v1886, %v1886
    %v1915 = vmul.f32 %v1887, %v1887
    %v1916 = vmul.f32 %v1888, %v1888
    %v1917 = vmul.f32 %v1889, %v1889
    %v1918 = vmul.f32 %v1890, %v1890
    %v1919 = vadd.f32 %v1891, %v1893
    %v1920 = vadd.f32 %v1919, %v1895
    %v1921 = vadd.f32 %v1920, %v1897
    %v1922 = vadd.f32 %v1921, %v1899
    %v1923 = vadd.f32 %v1922, %v1901
    %v1924 = vadd.f32 %v1923, %v1903
    %v1925 = vadd.f32 %v1924, %v1905
    %v1926 = vadd.f32 %v1925, %v1907
    %v1927 = vadd.f32 %v1926, %v1909
    %v1928 = vadd.f32 %v1927, %v1911
    %v1929 = vadd.f32 %v1928, %v1913
    %v1930 = vadd.f32 %v1929, %v1915
    %v1931 = vadd.f32 %v1930, %v1917
    %v1932 = vrot.slane %v1931, 4
    %v1933 = vadd.f32 %v1931, %v1932
    %v1934 = vrot.slane %v1933, 2
    %v1935 = vadd.f32 %v1933, %v1934
    %v1936 = vrot.slane %v1935, 1
    %v1937 = vadd.f32 %v1935, %v1936
    %v1938 = vadd.f32 %v1892, %v1894
    %v1939 = vadd.f32 %v1938, %v1896
    %v1940 = vadd.f32 %v1939, %v1898
    %v1941 = vadd.f32 %v1940, %v1900
    %v1942 = vadd.f32 %v1941, %v1902
    %v1943 = vadd.f32 %v1942, %v1904
    %v1944 = vadd.f32 %v1943, %v1906
    %v1945 = vadd.f32 %v1944, %v1908
    %v1946 = vadd.f32 %v1945, %v1910
    %v1947 = vadd.f32 %v1946, %v1912
    %v1948 = vadd.f32 %v1947, %v1914
    %v1949 = vadd.f32 %v1948, %v1916
    %v1950 = vadd.f32 %v1949, %v1918
    %v1951 = vrot.slane %v1950, 4
    %v1952 = vadd.f32 %v1950, %v1951
    %v1953 = vrot.slane %v1952, 2
    %v1954 = vadd.f32 %v1952, %v1953
    %v1955 = vrot.slane %v1954, 1
    %v1956 = vadd.f32 %v1954, %v1955
    %v1957 = vmul.f32 %v1937, 0.008928572
    %v1958 = vmul.f32 %v1956, 0.008928572
    %v1959 = vadd.f32 %v1957, 1e-05
    %v1960 = vadd.f32 %v1958, 1e-05
    %v1961 = vrsqrt.pop %v1959
    %v1962 = vrsqrt.pop %v1960
    %v1963 = vmul.f32 %v1863, %v1961
    %v1964 = vmul.f32 %v1864, %v1962
    %v1965 = vmul.f32 %v1865, %v1961
    %v1966 = vmul.f32 %v1866, %v1962
    %v1967 = vmul.f32 %v1867, %v1961
    %v1968 = vmul.f32 %v1868, %v1962
    %v1969 = vmul.f32 %v1869, %v1961
    %v1970 = vmul.f32 %v1870, %v1962
    %v1971 = vmul.f32 %v1871, %v1961
    %v1972 = vmul.f32 %v1872, %v1962
    %v1973 = vmul.f32 %v1873, %v1961
    %v1974 = vmul.f32 %v1874, %v1962
    %v1975 = vmul.f32 %v1875, %v1961
    %v1976 = vmul.f32 %v1876, %v1962
    %v1977 = vmul.f32 %v1877, %v1961
    %v1978 = vmul.f32 %v1878, %v1962
    %v1979 = vmul.f32 %v1879, %v1961
    %v1980 = vmul.f32 %v1880, %v1962
    %v1981 = vmul.f32 %v1881, %v1961
    %v1982 = vmul.f32 %v1882, %v1962
    %v1983 = vmul.f32 %v1883, %v1961
    %v1984 = vmul.f32 %v1884, %v1962
    %v1985 = vmul.f32 %v1885, %v1961
    %v1986 = vmul.f32 %v1886, %v1962
    %v1987 = vmul.f32 %v1887, %v1961
    %v1988 = vmul.f32 %v1888, %v1962
    %v1989 = vmul.f32 %v1889, %v1961
    %v1990 = vmul.f32 %v1890, %v1962
    %v1992 = vlaneseq
    %v1993 = vshrl.u32 %v1992, 7
    %v1994 = vsub.s32 0, %v1993
    %v1995 = vrot.slane %v1821, %v1994
    %v1996 = vlaneseq
    %v1997 = vshrl.u32 %v1996, 7
    %v1998 = vsub.s32 1, %v1997
    %v1999 = vrot.slane %v1821, %v1998
    %v2002 = vmul.f32 %v1963, %v1995
    %v2003 = vmul.f32 %v1964, %v1999
    %v2004 = vmul.f32 %v1965, %v1995
    %v2005 = vmul.f32 %v1966, %v1999
    %v2006 = vmul.f32 %v1967, %v1995
    %v2007 = vmul.f32 %v1968, %v1999
    %v2008 = vmul.f32 %v1969, %v1995
    %v2009 = vmul.f32 %v1970, %v1999
    %v2010 = vmul.f32 %v1971, %v1995
    %v2011 = vmul.f32 %v1972, %v1999
    %v2012 = vmul.f32 %v1973, %v1995
    %v2013 = vmul.f32 %v1974, %v1999
    %v2014 = vmul.f32 %v1975, %v1995
    %v2015 = vmul.f32 %v1976, %v1999
    %v2016 = vmul.f32 %v1977, %v1995
    %v2017 = vmul.f32 %v1978, %v1999
    %v2018 = vmul.f32 %v1979, %v1995
    %v2019 = vmul.f32 %v1980, %v1999
    %v2020 = vmul.f32 %v1981, %v1995
    %v2021 = vmul.f32 %v1982, %v1999
    %v2022 = vmul.f32 %v1983, %v1995
    %v2023 = vmul.f32 %v1984, %v1999
    %v2024 = vmul.f32 %v1985, %v1995
    %v2025 = vmul.f32 %v1986, %v1999
    %v2026 = vmul.f32 %v1987, %v1995
    %v2027 = vmul.f32 %v1988, %v1999
    %v2028 = vmul.f32 %v1989, %v1995
    %v2029 = vmul.f32 %v1990, %v1999
    %v2031 = vlaneseq
    %v2032 = vshrl.u32 %v2031, 7
    %v2033 = vsub.s32 0, %v2032
    %v2034 = vrot.slane %v1822, %v2033
    %v2035 = vlaneseq
    %v2036 = vshrl.u32 %v2035, 7
    %v2037 = vsub.s32 1, %v2036
    %v2038 = vrot.slane %v1822, %v2037
    %v2041 = vadd.f32 %v2002, %v2034
    %v2042 = vadd.f32 %v2003, %v2038
    %v2043 = vadd.f32 %v2004, %v2034
    %v2044 = vadd.f32 %v2005, %v2038
    %v2045 = vadd.f32 %v2006, %v2034
    %v2046 = vadd.f32 %v2007, %v2038
    %v2047 = vadd.f32 %v2008, %v2034
    %v2048 = vadd.f32 %v2009, %v2038
    %v2049 = vadd.f32 %v2010, %v2034
    %v2050 = vadd.f32 %v2011, %v2038
    %v2051 = vadd.f32 %v2012, %v2034
    %v2052 = vadd.f32 %v2013, %v2038
    %v2053 = vadd.f32 %v2014, %v2034
    %v2054 = vadd.f32 %v2015, %v2038
    %v2055 = vadd.f32 %v2016, %v2034
    %v2056 = vadd.f32 %v2017, %v2038
    %v2057 = vadd.f32 %v2018, %v2034
    %v2058 = vadd.f32 %v2019, %v2038
    %v2059 = vadd.f32 %v2020, %v2034
    %v2060 = vadd.f32 %v2021, %v2038
    %v2061 = vadd.f32 %v2022, %v2034
    %v2062 = vadd.f32 %v2023, %v2038
    %v2063 = vadd.f32 %v2024, %v2034
    %v2064 = vadd.f32 %v2025, %v2038
    %v2065 = vadd.f32 %v2026, %v2034
    %v2066 = vadd.f32 %v2027, %v2038
    %v2067 = vadd.f32 %v2028, %v2034
    %v2068 = vadd.f32 %v2029, %v2038
    %vm2069 = vcmp.ge.f32.partialorder %v2041, 0.0
    %vm2070 = vcmp.ge.f32.partialorder %v2042, 0.0
    %vm2071 = vcmp.ge.f32.partialorder %v2043, 0.0
    %vm2072 = vcmp.ge.f32.partialorder %v2044, 0.0
    %vm2073 = vcmp.ge.f32.partialorder %v2045, 0.0
    %vm2074 = vcmp.ge.f32.partialorder %v2046, 0.0
    %vm2075 = vcmp.ge.f32.partialorder %v2047, 0.0
    %vm2076 = vcmp.ge.f32.partialorder %v2048, 0.0
    %vm2077 = vcmp.ge.f32.partialorder %v2049, 0.0
    %vm2078 = vcmp.ge.f32.partialorder %v2050, 0.0
    %vm2079 = vcmp.ge.f32.partialorder %v2051, 0.0
    %vm2080 = vcmp.ge.f32.partialorder %v2052, 0.0
    %vm2081 = vcmp.ge.f32.partialorder %v2053, 0.0
    %vm2082 = vcmp.ge.f32.partialorder %v2054, 0.0
    %vm2083 = vcmp.ge.f32.partialorder %v2055, 0.0
    %vm2084 = vcmp.ge.f32.partialorder %v2056, 0.0
    %vm2085 = vcmp.ge.f32.partialorder %v2057, 0.0
    %vm2086 = vcmp.ge.f32.partialorder %v2058, 0.0
    %vm2087 = vcmp.ge.f32.partialorder %v2059, 0.0
    %vm2088 = vcmp.ge.f32.partialorder %v2060, 0.0
    %vm2089 = vcmp.ge.f32.partialorder %v2061, 0.0
    %vm2090 = vcmp.ge.f32.partialorder %v2062, 0.0
    %vm2091 = vcmp.ge.f32.partialorder %v2063, 0.0
    %vm2092 = vcmp.ge.f32.partialorder %v2064, 0.0
    %vm2093 = vcmp.ge.f32.partialorder %v2065, 0.0
    %vm2094 = vcmp.ge.f32.partialorder %v2066, 0.0
    %vm2095 = vcmp.ge.f32.partialorder %v2067, 0.0
    %vm2096 = vcmp.ge.f32.partialorder %v2068, 0.0
    %v2097 = vmul.f32 %v2041, 0.01
    %v2098 = vmul.f32 %v2042, 0.01
    %v2099 = vmul.f32 %v2043, 0.01
    %v2100 = vmul.f32 %v2044, 0.01
    %v2101 = vmul.f32 %v2045, 0.01
    %v2102 = vmul.f32 %v2046, 0.01
    %v2103 = vmul.f32 %v2047, 0.01
    %v2104 = vmul.f32 %v2048, 0.01
    %v2105 = vmul.f32 %v2049, 0.01
    %v2106 = vmul.f32 %v2050, 0.01
    %v2107 = vmul.f32 %v2051, 0.01
    %v2108 = vmul.f32 %v2052, 0.01
    %v2109 = vmul.f32 %v2053, 0.01
    %v2110 = vmul.f32 %v2054, 0.01
    %v2111 = vmul.f32 %v2055, 0.01
    %v2112 = vmul.f32 %v2056, 0.01
    %v2113 = vmul.f32 %v2057, 0.01
    %v2114 = vmul.f32 %v2058, 0.01
    %v2115 = vmul.f32 %v2059, 0.01
    %v2116 = vmul.f32 %v2060, 0.01
    %v2117 = vmul.f32 %v2061, 0.01
    %v2118 = vmul.f32 %v2062, 0.01
    %v2119 = vmul.f32 %v2063, 0.01
    %v2120 = vmul.f32 %v2064, 0.01
    %v2121 = vmul.f32 %v2065, 0.01
    %v2122 = vmul.f32 %v2066, 0.01
    %v2123 = vmul.f32 %v2067, 0.01
    %v2124 = vmul.f32 %v2068, 0.01
    %v2125 = vsel %vm2069, %v2041, %v2097
    %v2126 = vsel %vm2070, %v2042, %v2098
    %v2127 = vsel %vm2071, %v2043, %v2099
    %v2128 = vsel %vm2072, %v2044, %v2100
    %v2129 = vsel %vm2073, %v2045, %v2101
    %v2130 = vsel %vm2074, %v2046, %v2102
    %v2131 = vsel %vm2075, %v2047, %v2103
    %v2132 = vsel %vm2076, %v2048, %v2104
    %v2133 = vsel %vm2077, %v2049, %v2105
    %v2134 = vsel %vm2078, %v2050, %v2106
    %v2135 = vsel %vm2079, %v2051, %v2107
    %v2136 = vsel %vm2080, %v2052, %v2108
    %v2137 = vsel %vm2081, %v2053, %v2109
    %v2138 = vsel %vm2082, %v2054, %v2110
    %v2139 = vsel %vm2083, %v2055, %v2111
    %v2140 = vsel %vm2084, %v2056, %v2112
    %v2141 = vsel %vm2085, %v2057, %v2113
    %v2142 = vsel %vm2086, %v2058, %v2114
    %v2143 = vsel %vm2087, %v2059, %v2115
    %v2144 = vsel %vm2088, %v2060, %v2116
    %v2145 = vsel %vm2089, %v2061, %v2117
    %v2146 = vsel %vm2090, %v2062, %v2118
    %v2147 = vsel %vm2091, %v2063, %v2119
    %v2148 = vsel %vm2092, %v2064, %v2120
    %v2149 = vsel %vm2093, %v2065, %v2121
    %v2150 = vsel %vm2094, %v2066, %v2122
    %v2151 = vsel %vm2095, %v2067, %v2123
    %v2152 = vsel %vm2096, %v2068, %v2124
    %v2153 = vpack.c.bf16 %v2127, %v2125
    %v2154 = vpack.c.bf16 %v2128, %v2126
    %v2155 = vpack.c.bf16 %v2131, %v2129
    %v2156 = vpack.c.bf16 %v2132, %v2130
    %v2157 = vpack.c.bf16 %v2135, %v2133
    %v2158 = vpack.c.bf16 %v2136, %v2134
    %v2159 = vpack.c.bf16 %v2139, %v2137
    %v2160 = vpack.c.bf16 %v2140, %v2138
    %v2161 = vpack.c.bf16 %v2143, %v2141
    %v2162 = vpack.c.bf16 %v2144, %v2142
    %v2163 = vpack.c.bf16 %v2147, %v2145
    %v2164 = vpack.c.bf16 %v2148, %v2146
    %v2165 = vpack.c.bf16 %v2151, %v2149
    %v2166 = vpack.c.bf16 %v2152, %v2150
    %v2169 = vunpack.c.l.b16 %v2153
    %v2170 = vunpack.c.l.b16 %v2154
    %v2171 = vunpack.c.h.b16 %v2153
    %v2172 = vunpack.c.h.b16 %v2154
    %v2173 = vpack.c.b16 %v2170, %v2169
    %v2174 = vpack.c.b16 %v2172, %v2171
    %2177 = vst [vmem:[#allocation6] sm:$0xff] %v2173
    %2178 = vst [vmem:[#allocation6 + $0x40] sm:$0x77] %v2174
    %v2181 = vunpack.c.l.b16 %v2155
    %v2182 = vunpack.c.l.b16 %v2156
    %v2183 = vunpack.c.h.b16 %v2155
    %v2184 = vunpack.c.h.b16 %v2156
    %v2185 = vpack.c.b16 %v2182, %v2181
    %v2186 = vpack.c.b16 %v2184, %v2183
    %vm2187 = vcmask 1040384
    %vm2188 = vcmask 1044484
    %vm2189 = vmor %vm2187, %vm2188
    %v2190 = vrot.slane %v2174, 7
    %v2191 = vrot.slane %v2190, 4
    %v2192 = vrot.slane %v2185, 7
    %v2193 = vsel %vm2189, %v2191, %v2192
    %v2194 = vrot.slane %v2192, 4
    %v2195 = vrot.slane %v2186, 7
    %v2196 = vsel %vm2189, %v2194, %v2195
    %2199 = vst [vmem:[#allocation6 + $0x8] sm:$0xff] %v2193
    %2200 = vst [vmem:[#allocation6 + $0x48] sm:$0x77] %v2196
    %v2203 = vunpack.c.l.b16 %v2157
    %v2204 = vunpack.c.l.b16 %v2158
    %v2205 = vunpack.c.h.b16 %v2157
    %v2206 = vunpack.c.h.b16 %v2158
    %v2207 = vpack.c.b16 %v2204, %v2203
    %v2208 = vpack.c.b16 %v2206, %v2205
    %vm2209 = vcmask 1041408
    %vm2210 = vcmask 1045508
    %vm2211 = vmor %vm2209, %vm2210
    %v2212 = vrot.slane %v2186, 6
    %v2213 = vrot.slane %v2212, 4
    %v2214 = vrot.slane %v2207, 6
    %v2215 = vsel %vm2211, %v2213, %v2214
    %v2216 = vrot.slane %v2214, 4
    %v2217 = vrot.slane %v2208, 6
    %v2218 = vsel %vm2211, %v2216, %v2217
    %2221 = vst [vmem:[#allocation6 + $0x10] sm:$0xff] %v2215
    %2222 = vst [vmem:[#allocation6 + $0x50] sm:$0x77] %v2218
    %v2225 = vunpack.c.l.b16 %v2159
    %v2226 = vunpack.c.l.b16 %v2160
    %v2227 = vpack.c.b16 %v2226, %v2225
    %vm2228 = vcmask 1042432
    %vm2229 = vcmask 1046532
    %vm2230 = vmor %vm2228, %vm2229
    %v2231 = vrot.slane %v2208, 5
    %v2232 = vrot.slane %v2231, 4
    %v2233 = vrot.slane %v2227, 5
    %v2234 = vsel %vm2230, %v2232, %v2233
    %v2235 = vrot.slane %v2233, 4
    %2238 = vst [vmem:[#allocation6 + $0x18] sm:$0xff] %v2234
    %2239 = vst [vmem:[#allocation6 + $0x58] sm:$0x77] %v2235
    %v2242 = vunpack.c.h.b16 %v2159
    %v2243 = vunpack.c.h.b16 %v2160
    %v2244 = vunpack.c.l.b16 %v2161
    %v2245 = vunpack.c.l.b16 %v2162
    %v2246 = vpack.c.b16 %v2243, %v2242
    %v2247 = vpack.c.b16 %v2245, %v2244
    %2250 = vst [vmem:[#allocation6 + $0x20] sm:$0xff] %v2246
    %2251 = vst [vmem:[#allocation6 + $0x60] sm:$0x77] %v2247
    %v2254 = vunpack.c.h.b16 %v2161
    %v2255 = vunpack.c.h.b16 %v2162
    %v2256 = vunpack.c.l.b16 %v2163
    %v2257 = vunpack.c.l.b16 %v2164
    %v2258 = vpack.c.b16 %v2255, %v2254
    %v2259 = vpack.c.b16 %v2257, %v2256
    %v2260 = vrot.slane %v2247, 7
    %v2261 = vrot.slane %v2260, 4
    %v2262 = vrot.slane %v2258, 7
    %v2263 = vsel %vm2189, %v2261, %v2262
    %v2264 = vrot.slane %v2262, 4
    %v2265 = vrot.slane %v2259, 7
    %v2266 = vsel %vm2189, %v2264, %v2265
    %2269 = vst [vmem:[#allocation6 + $0x28] sm:$0xff] %v2263
    %2270 = vst [vmem:[#allocation6 + $0x68] sm:$0x77] %v2266
    %v2273 = vunpack.c.h.b16 %v2163
    %v2274 = vunpack.c.h.b16 %v2164
    %v2275 = vunpack.c.l.b16 %v2165
    %v2276 = vunpack.c.l.b16 %v2166
    %v2277 = vpack.c.b16 %v2274, %v2273
    %v2278 = vpack.c.b16 %v2276, %v2275
    %v2279 = vrot.slane %v2259, 6
    %v2280 = vrot.slane %v2279, 4
    %v2281 = vrot.slane %v2277, 6
    %v2282 = vsel %vm2211, %v2280, %v2281
    %v2283 = vrot.slane %v2281, 4
    %v2284 = vrot.slane %v2278, 6
    %v2285 = vsel %vm2211, %v2283, %v2284
    %2288 = vst [vmem:[#allocation6 + $0x30] sm:$0xff] %v2282
    %2289 = vst [vmem:[#allocation6 + $0x70] sm:$0x77] %v2285
    %v2290 = vunpack.c.h.b16 %v2165
    %v2291 = vunpack.c.h.b16 %v2166
    %v2292 = vpack.c.b16 %v2291, %v2290
    %v2293 = vrot.slane %v2278, 5
    %v2294 = vrot.slane %v2293, 4
    %v2295 = vrot.slane %v2292, 5
    %v2296 = vsel %vm2230, %v2294, %v2295
    %v2297 = vrot.slane %v2295, 4
    %2300 = vst [vmem:[#allocation6 + $0x38] sm:$0xff] %v2296
    %2301 = vst [vmem:[#allocation6 + $0x78] sm:$0x77] %v2297
    %s2302 = smul.u32 4, 256
    %s2303 = smul.u32 %s2302, 4
    %s2304 = sshll.u32 %s2303, 4
    %2305 = dma.done [#allocation3], %s2304
    %v2306 = vld [vmem:[#allocation6] sm:$0xff]
    %v2307 = vld [vmem:[#allocation6 + $0x8] sm:$0xff]
    %v2308 = vld [vmem:[#allocation6 + $0x10] sm:$0xff]
    %v2309 = vld [vmem:[#allocation6 + $0x18] sm:$0xff]
    %v2310 = vld [vmem:[#allocation6 + $0x20] sm:$0xff]
    %v2311 = vld [vmem:[#allocation6 + $0x28] sm:$0xff]
    %v2312 = vld [vmem:[#allocation6 + $0x30] sm:$0xff]
    %v2313 = vld [vmem:[#allocation6 + $0x38] sm:$0xff]
    %v2314 = vld [vmem:[#allocation6 + $0x40] sm:$0x77]
    %v2315 = vld [vmem:[#allocation6 + $0x48] sm:$0x77]
    %v2316 = vld [vmem:[#allocation6 + $0x50] sm:$0x77]
    %v2317 = vld [vmem:[#allocation6 + $0x58] sm:$0x77]
    %v2318 = vld [vmem:[#allocation6 + $0x60] sm:$0x77]
    %v2319 = vld [vmem:[#allocation6 + $0x68] sm:$0x77]
    %v2320 = vld [vmem:[#allocation6 + $0x70] sm:$0x77]
    %v2321 = vld [vmem:[#allocation6 + $0x78] sm:$0x77]
    %v2322 = vld [vmem:[#allocation2] sm:$0xff]
    %v2323 = vld [vmem:[#allocation2 + $0x8] sm:$0xff]
    %v2324 = vld [vmem:[#allocation2 + $0x10] sm:$0xff]
    %v2325 = vld [vmem:[#allocation2 + $0x18] sm:$0xff]
    %v2326 = vld [vmem:[#allocation2 + $0x20] sm:$0xff]
    %v2327 = vld [vmem:[#allocation2 + $0x28] sm:$0xff]
    %v2328 = vld [vmem:[#allocation2 + $0x30] sm:$0xff]
    %v2329 = vld [vmem:[#allocation2 + $0x38] sm:$0xff]
    %v2330 = vld [vmem:[#allocation2 + $0x40] sm:$0xff]
    %v2331 = vld [vmem:[#allocation2 + $0x48] sm:$0xff]
    %v2332 = vld [vmem:[#allocation2 + $0x50] sm:$0xff]
    %v2333 = vld [vmem:[#allocation2 + $0x58] sm:$0xff]
    %v2334 = vld [vmem:[#allocation2 + $0x60] sm:$0xff]
    %v2335 = vld [vmem:[#allocation2 + $0x68] sm:$0xff]
    %v2336 = vld [vmem:[#allocation2 + $0x70] sm:$0xff]
    %v2337 = vld [vmem:[#allocation2 + $0x78] sm:$0xff]
    %v2338 = vld [vmem:[#allocation2 + $0x80] sm:$0xff]
    %v2339 = vld [vmem:[#allocation2 + $0x88] sm:$0xff]
    %v2340 = vld [vmem:[#allocation2 + $0x90] sm:$0xff]
    %v2341 = vld [vmem:[#allocation2 + $0x98] sm:$0xff]
    %v2342 = vld [vmem:[#allocation2 + $0xa0] sm:$0xff]
    %v2343 = vld [vmem:[#allocation2 + $0xa8] sm:$0xff]
    %v2344 = vld [vmem:[#allocation2 + $0xb0] sm:$0xff]
    %v2345 = vld [vmem:[#allocation2 + $0xb8] sm:$0xff]
    %v2346 = vld [vmem:[#allocation2 + $0xc0] sm:$0xff]
    %v2347 = vld [vmem:[#allocation2 + $0xc8] sm:$0xff]
    %v2348 = vld [vmem:[#allocation2 + $0xd0] sm:$0xff]
    %v2349 = vld [vmem:[#allocation2 + $0xd8] sm:$0xff]
    %v2350 = vld [vmem:[#allocation2 + $0xe0] sm:$0xff]
    %v2351 = vld [vmem:[#allocation2 + $0xe8] sm:$0xff]
    %v2352 = vld [vmem:[#allocation2 + $0xf0] sm:$0xff]
    %v2353 = vld [vmem:[#allocation2 + $0xf8] sm:$0xff]
    %v2354 = vld [vmem:[#allocation2 + $0x100] sm:$0xff]
    %v2355 = vld [vmem:[#allocation2 + $0x108] sm:$0xff]
    %v2356 = vld [vmem:[#allocation2 + $0x110] sm:$0xff]
    %v2357 = vld [vmem:[#allocation2 + $0x118] sm:$0xff]
    %v2358 = vld [vmem:[#allocation2 + $0x120] sm:$0xff]
    %v2359 = vld [vmem:[#allocation2 + $0x128] sm:$0xff]
    %v2360 = vld [vmem:[#allocation2 + $0x130] sm:$0xff]
    %v2361 = vld [vmem:[#allocation2 + $0x138] sm:$0xff]
    %v2362 = vld [vmem:[#allocation2 + $0x140] sm:$0xff]
    %v2363 = vld [vmem:[#allocation2 + $0x148] sm:$0xff]
    %v2364 = vld [vmem:[#allocation2 + $0x150] sm:$0xff]
    %v2365 = vld [vmem:[#allocation2 + $0x158] sm:$0xff]
    %v2366 = vld [vmem:[#allocation2 + $0x160] sm:$0xff]
    %v2367 = vld [vmem:[#allocation2 + $0x168] sm:$0xff]
    %v2368 = vld [vmem:[#allocation2 + $0x170] sm:$0xff]
    %v2369 = vld [vmem:[#allocation2 + $0x178] sm:$0xff]
    %v2370 = vld [vmem:[#allocation2 + $0x180] sm:$0xff]
    %v2371 = vld [vmem:[#allocation2 + $0x188] sm:$0xff]
    %v2372 = vld [vmem:[#allocation2 + $0x190] sm:$0xff]
    %v2373 = vld [vmem:[#allocation2 + $0x198] sm:$0xff]
    %v2374 = vld [vmem:[#allocation2 + $0x1a0] sm:$0xff]
    %v2375 = vld [vmem:[#allocation2 + $0x1a8] sm:$0xff]
    %v2376 = vld [vmem:[#allocation2 + $0x1b0] sm:$0xff]
    %v2377 = vld [vmem:[#allocation2 + $0x1b8] sm:$0xff]
    %v2378 = vld [vmem:[#allocation2 + $0x1c0] sm:$0xff]
    %v2379 = vld [vmem:[#allocation2 + $0x1c8] sm:$0xff]
    %v2380 = vld [vmem:[#allocation2 + $0x1d0] sm:$0xff]
    %v2381 = vld [vmem:[#allocation2 + $0x1d8] sm:$0xff]
    %v2382 = vld [vmem:[#allocation2 + $0x1e0] sm:$0xff]
    %v2383 = vld [vmem:[#allocation2 + $0x1e8] sm:$0xff]
    %v2384 = vld [vmem:[#allocation2 + $0x1f0] sm:$0xff]
    %v2385 = vld [vmem:[#allocation2 + $0x1f8] sm:$0xff]
    %v2386 = vld [vmem:[#allocation2 + $0x200] sm:$0xff]
    %v2387 = vld [vmem:[#allocation2 + $0x208] sm:$0xff]
    %v2388 = vld [vmem:[#allocation2 + $0x210] sm:$0xff]
    %v2389 = vld [vmem:[#allocation2 + $0x218] sm:$0xff]
    %v2390 = vld [vmem:[#allocation2 + $0x220] sm:$0xff]
    %v2391 = vld [vmem:[#allocation2 + $0x228] sm:$0xff]
    %v2392 = vld [vmem:[#allocation2 + $0x230] sm:$0xff]
    %v2393 = vld [vmem:[#allocation2 + $0x238] sm:$0xff]
    %v2394 = vld [vmem:[#allocation2 + $0x240] sm:$0xff]
    %v2395 = vld [vmem:[#allocation2 + $0x248] sm:$0xff]
    %v2396 = vld [vmem:[#allocation2 + $0x250] sm:$0xff]
    %v2397 = vld [vmem:[#allocation2 + $0x258] sm:$0xff]
    %v2398 = vld [vmem:[#allocation2 + $0x260] sm:$0xff]
    %v2399 = vld [vmem:[#allocation2 + $0x268] sm:$0xff]
    %v2400 = vld [vmem:[#allocation2 + $0x270] sm:$0xff]
    %v2401 = vld [vmem:[#allocation2 + $0x278] sm:$0xff]
    %v2402 = vld [vmem:[#allocation2 + $0x280] sm:$0xff]
    %v2403 = vld [vmem:[#allocation2 + $0x288] sm:$0xff]
    %v2404 = vld [vmem:[#allocation2 + $0x290] sm:$0xff]
    %v2405 = vld [vmem:[#allocation2 + $0x298] sm:$0xff]
    %v2406 = vld [vmem:[#allocation2 + $0x2a0] sm:$0xff]
    %v2407 = vld [vmem:[#allocation2 + $0x2a8] sm:$0xff]
    %v2408 = vld [vmem:[#allocation2 + $0x2b0] sm:$0xff]
    %v2409 = vld [vmem:[#allocation2 + $0x2b8] sm:$0xff]
    %v2410 = vld [vmem:[#allocation2 + $0x2c0] sm:$0xff]
    %v2411 = vld [vmem:[#allocation2 + $0x2c8] sm:$0xff]
    %v2412 = vld [vmem:[#allocation2 + $0x2d0] sm:$0xff]
    %v2413 = vld [vmem:[#allocation2 + $0x2d8] sm:$0xff]
    %v2414 = vld [vmem:[#allocation2 + $0x2e0] sm:$0xff]
    %v2415 = vld [vmem:[#allocation2 + $0x2e8] sm:$0xff]
    %v2416 = vld [vmem:[#allocation2 + $0x2f0] sm:$0xff]
    %v2417 = vld [vmem:[#allocation2 + $0x2f8] sm:$0xff]
    %v2418 = vld [vmem:[#allocation2 + $0x300] sm:$0xff]
    %v2419 = vld [vmem:[#allocation2 + $0x308] sm:$0xff]
    %v2420 = vld [vmem:[#allocation2 + $0x310] sm:$0xff]
    %v2421 = vld [vmem:[#allocation2 + $0x318] sm:$0xff]
    %v2422 = vld [vmem:[#allocation2 + $0x320] sm:$0xff]
    %v2423 = vld [vmem:[#allocation2 + $0x328] sm:$0xff]
    %v2424 = vld [vmem:[#allocation2 + $0x330] sm:$0xff]
    %v2425 = vld [vmem:[#allocation2 + $0x338] sm:$0xff]
    %v2426 = vld [vmem:[#allocation2 + $0x340] sm:$0xff]
    %v2427 = vld [vmem:[#allocation2 + $0x348] sm:$0xff]
    %v2428 = vld [vmem:[#allocation2 + $0x350] sm:$0xff]
    %v2429 = vld [vmem:[#allocation2 + $0x358] sm:$0xff]
    %v2430 = vld [vmem:[#allocation2 + $0x360] sm:$0xff]
    %v2431 = vld [vmem:[#allocation2 + $0x368] sm:$0xff]
    %v2432 = vld [vmem:[#allocation2 + $0x370] sm:$0xff]
    %v2433 = vld [vmem:[#allocation2 + $0x378] sm:$0xff]
    %v2434 = vld [vmem:[#allocation2 + $0x380] sm:$0xff]
    %v2435 = vld [vmem:[#allocation2 + $0x388] sm:$0xff]
    %v2436 = vld [vmem:[#allocation2 + $0x390] sm:$0xff]
    %v2437 = vld [vmem:[#allocation2 + $0x398] sm:$0xff]
    %v2438 = vld [vmem:[#allocation2 + $0x3a0] sm:$0xff]
    %v2439 = vld [vmem:[#allocation2 + $0x3a8] sm:$0xff]
    %v2440 = vld [vmem:[#allocation2 + $0x3b0] sm:$0xff]
    %v2441 = vld [vmem:[#allocation2 + $0x3b8] sm:$0xff]
    %v2442 = vld [vmem:[#allocation2 + $0x3c0] sm:$0xff]
    %v2443 = vld [vmem:[#allocation2 + $0x3c8] sm:$0xff]
    %v2444 = vld [vmem:[#allocation2 + $0x3d0] sm:$0xff]
    %v2445 = vld [vmem:[#allocation2 + $0x3d8] sm:$0xff]
    %v2446 = vld [vmem:[#allocation2 + $0x3e0] sm:$0xff]
    %v2447 = vld [vmem:[#allocation2 + $0x3e8] sm:$0xff]
    %v2448 = vld [vmem:[#allocation2 + $0x3f0] sm:$0xff]
    %v2449 = vld [vmem:[#allocation2 + $0x3f8] sm:$0xff]
    %v2450 = vld [vmem:[#allocation2 + $0x400] sm:$0xff]
    %v2451 = vld [vmem:[#allocation2 + $0x408] sm:$0xff]
    %v2452 = vld [vmem:[#allocation2 + $0x410] sm:$0xff]
    %v2453 = vld [vmem:[#allocation2 + $0x418] sm:$0xff]
    %v2454 = vld [vmem:[#allocation2 + $0x420] sm:$0xff]
    %v2455 = vld [vmem:[#allocation2 + $0x428] sm:$0xff]
    %v2456 = vld [vmem:[#allocation2 + $0x430] sm:$0xff]
    %v2457 = vld [vmem:[#allocation2 + $0x438] sm:$0xff]
    %v2458 = vld [vmem:[#allocation2 + $0x440] sm:$0xff]
    %v2459 = vld [vmem:[#allocation2 + $0x448] sm:$0xff]
    %v2460 = vld [vmem:[#allocation2 + $0x450] sm:$0xff]
    %v2461 = vld [vmem:[#allocation2 + $0x458] sm:$0xff]
    %v2462 = vld [vmem:[#allocation2 + $0x460] sm:$0xff]
    %v2463 = vld [vmem:[#allocation2 + $0x468] sm:$0xff]
    %v2464 = vld [vmem:[#allocation2 + $0x470] sm:$0xff]
    %v2465 = vld [vmem:[#allocation2 + $0x478] sm:$0xff]
    %v2466 = vld [vmem:[#allocation2 + $0x480] sm:$0xff]
    %v2467 = vld [vmem:[#allocation2 + $0x488] sm:$0xff]
    %v2468 = vld [vmem:[#allocation2 + $0x490] sm:$0xff]
    %v2469 = vld [vmem:[#allocation2 + $0x498] sm:$0xff]
    %v2470 = vld [vmem:[#allocation2 + $0x4a0] sm:$0xff]
    %v2471 = vld [vmem:[#allocation2 + $0x4a8] sm:$0xff]
    %v2472 = vld [vmem:[#allocation2 + $0x4b0] sm:$0xff]
    %v2473 = vld [vmem:[#allocation2 + $0x4b8] sm:$0xff]
    %v2474 = vld [vmem:[#allocation2 + $0x4c0] sm:$0xff]
    %v2475 = vld [vmem:[#allocation2 + $0x4c8] sm:$0xff]
    %v2476 = vld [vmem:[#allocation2 + $0x4d0] sm:$0xff]
    %v2477 = vld [vmem:[#allocation2 + $0x4d8] sm:$0xff]
    %v2478 = vld [vmem:[#allocation2 + $0x4e0] sm:$0xff]
    %v2479 = vld [vmem:[#allocation2 + $0x4e8] sm:$0xff]
    %v2480 = vld [vmem:[#allocation2 + $0x4f0] sm:$0xff]
    %v2481 = vld [vmem:[#allocation2 + $0x4f8] sm:$0xff]
    %v2482 = vld [vmem:[#allocation2 + $0x500] sm:$0xff]
    %v2483 = vld [vmem:[#allocation2 + $0x508] sm:$0xff]
    %v2484 = vld [vmem:[#allocation2 + $0x510] sm:$0xff]
    %v2485 = vld [vmem:[#allocation2 + $0x518] sm:$0xff]
    %v2486 = vld [vmem:[#allocation2 + $0x520] sm:$0xff]
    %v2487 = vld [vmem:[#allocation2 + $0x528] sm:$0xff]
    %v2488 = vld [vmem:[#allocation2 + $0x530] sm:$0xff]
    %v2489 = vld [vmem:[#allocation2 + $0x538] sm:$0xff]
    %v2490 = vld [vmem:[#allocation2 + $0x540] sm:$0xff]
    %v2491 = vld [vmem:[#allocation2 + $0x548] sm:$0xff]
    %v2492 = vld [vmem:[#allocation2 + $0x550] sm:$0xff]
    %v2493 = vld [vmem:[#allocation2 + $0x558] sm:$0xff]
    %v2494 = vld [vmem:[#allocation2 + $0x560] sm:$0xff]
    %v2495 = vld [vmem:[#allocation2 + $0x568] sm:$0xff]
    %v2496 = vld [vmem:[#allocation2 + $0x570] sm:$0xff]
    %v2497 = vld [vmem:[#allocation2 + $0x578] sm:$0xff]
    %v2498 = vld [vmem:[#allocation2 + $0x580] sm:$0xff]
    %v2499 = vld [vmem:[#allocation2 + $0x588] sm:$0xff]
    %v2500 = vld [vmem:[#allocation2 + $0x590] sm:$0xff]
    %v2501 = vld [vmem:[#allocation2 + $0x598] sm:$0xff]
    %v2502 = vld [vmem:[#allocation2 + $0x5a0] sm:$0xff]
    %v2503 = vld [vmem:[#allocation2 + $0x5a8] sm:$0xff]
    %v2504 = vld [vmem:[#allocation2 + $0x5b0] sm:$0xff]
    %v2505 = vld [vmem:[#allocation2 + $0x5b8] sm:$0xff]
    %v2506 = vld [vmem:[#allocation2 + $0x5c0] sm:$0xff]
    %v2507 = vld [vmem:[#allocation2 + $0x5c8] sm:$0xff]
    %v2508 = vld [vmem:[#allocation2 + $0x5d0] sm:$0xff]
    %v2509 = vld [vmem:[#allocation2 + $0x5d8] sm:$0xff]
    %v2510 = vld [vmem:[#allocation2 + $0x5e0] sm:$0xff]
    %v2511 = vld [vmem:[#allocation2 + $0x5e8] sm:$0xff]
    %v2512 = vld [vmem:[#allocation2 + $0x5f0] sm:$0xff]
    %v2513 = vld [vmem:[#allocation2 + $0x5f8] sm:$0xff]
    %v2514 = vld [vmem:[#allocation2 + $0x600] sm:$0xff]
    %v2515 = vld [vmem:[#allocation2 + $0x608] sm:$0xff]
    %v2516 = vld [vmem:[#allocation2 + $0x610] sm:$0xff]
    %v2517 = vld [vmem:[#allocation2 + $0x618] sm:$0xff]
    %v2518 = vld [vmem:[#allocation2 + $0x620] sm:$0xff]
    %v2519 = vld [vmem:[#allocation2 + $0x628] sm:$0xff]
    %v2520 = vld [vmem:[#allocation2 + $0x630] sm:$0xff]
    %v2521 = vld [vmem:[#allocation2 + $0x638] sm:$0xff]
    %v2522 = vld [vmem:[#allocation2 + $0x640] sm:$0xff]
    %v2523 = vld [vmem:[#allocation2 + $0x648] sm:$0xff]
    %v2524 = vld [vmem:[#allocation2 + $0x650] sm:$0xff]
    %v2525 = vld [vmem:[#allocation2 + $0x658] sm:$0xff]
    %v2526 = vld [vmem:[#allocation2 + $0x660] sm:$0xff]
    %v2527 = vld [vmem:[#allocation2 + $0x668] sm:$0xff]
    %v2528 = vld [vmem:[#allocation2 + $0x670] sm:$0xff]
    %v2529 = vld [vmem:[#allocation2 + $0x678] sm:$0xff]
    %v2530 = vld [vmem:[#allocation2 + $0x680] sm:$0xff]
    %v2531 = vld [vmem:[#allocation2 + $0x688] sm:$0xff]
    %v2532 = vld [vmem:[#allocation2 + $0x690] sm:$0xff]
    %v2533 = vld [vmem:[#allocation2 + $0x698] sm:$0xff]
    %v2534 = vld [vmem:[#allocation2 + $0x6a0] sm:$0xff]
    %v2535 = vld [vmem:[#allocation2 + $0x6a8] sm:$0xff]
    %v2536 = vld [vmem:[#allocation2 + $0x6b0] sm:$0xff]
    %v2537 = vld [vmem:[#allocation2 + $0x6b8] sm:$0xff]
    %v2538 = vld [vmem:[#allocation2 + $0x6c0] sm:$0xff]
    %v2539 = vld [vmem:[#allocation2 + $0x6c8] sm:$0xff]
    %v2540 = vld [vmem:[#allocation2 + $0x6d0] sm:$0xff]
    %v2541 = vld [vmem:[#allocation2 + $0x6d8] sm:$0xff]
    %v2542 = vld [vmem:[#allocation2 + $0x6e0] sm:$0xff]
    %v2543 = vld [vmem:[#allocation2 + $0x6e8] sm:$0xff]
    %v2544 = vld [vmem:[#allocation2 + $0x6f0] sm:$0xff]
    %v2545 = vld [vmem:[#allocation2 + $0x6f8] sm:$0xff]
    %v2546 = vld [vmem:[#allocation2 + $0x700] sm:$0xff]
    %v2547 = vld [vmem:[#allocation2 + $0x708] sm:$0xff]
    %v2548 = vld [vmem:[#allocation2 + $0x710] sm:$0xff]
    %v2549 = vld [vmem:[#allocation2 + $0x718] sm:$0xff]
    %v2550 = vld [vmem:[#allocation2 + $0x720] sm:$0xff]
    %v2551 = vld [vmem:[#allocation2 + $0x728] sm:$0xff]
    %v2552 = vld [vmem:[#allocation2 + $0x730] sm:$0xff]
    %v2553 = vld [vmem:[#allocation2 + $0x738] sm:$0xff]
    %v2554 = vld [vmem:[#allocation2 + $0x740] sm:$0xff]
    %v2555 = vld [vmem:[#allocation2 + $0x748] sm:$0xff]
    %v2556 = vld [vmem:[#allocation2 + $0x750] sm:$0xff]
    %v2557 = vld [vmem:[#allocation2 + $0x758] sm:$0xff]
    %v2558 = vld [vmem:[#allocation2 + $0x760] sm:$0xff]
    %v2559 = vld [vmem:[#allocation2 + $0x768] sm:$0xff]
    %v2560 = vld [vmem:[#allocation2 + $0x770] sm:$0xff]
    %v2561 = vld [vmem:[#allocation2 + $0x778] sm:$0xff]
    %v2562 = vld [vmem:[#allocation2 + $0x780] sm:$0xff]
    %v2563 = vld [vmem:[#allocation2 + $0x788] sm:$0xff]
    %v2564 = vld [vmem:[#allocation2 + $0x790] sm:$0xff]
    %v2565 = vld [vmem:[#allocation2 + $0x798] sm:$0xff]
    %v2566 = vld [vmem:[#allocation2 + $0x7a0] sm:$0xff]
    %v2567 = vld [vmem:[#allocation2 + $0x7a8] sm:$0xff]
    %v2568 = vld [vmem:[#allocation2 + $0x7b0] sm:$0xff]
    %v2569 = vld [vmem:[#allocation2 + $0x7b8] sm:$0xff]
    %v2570 = vld [vmem:[#allocation2 + $0x7c0] sm:$0xff]
    %v2571 = vld [vmem:[#allocation2 + $0x7c8] sm:$0xff]
    %v2572 = vld [vmem:[#allocation2 + $0x7d0] sm:$0xff]
    %v2573 = vld [vmem:[#allocation2 + $0x7d8] sm:$0xff]
    %v2574 = vld [vmem:[#allocation2 + $0x7e0] sm:$0xff]
    %v2575 = vld [vmem:[#allocation2 + $0x7e8] sm:$0xff]
    %v2576 = vld [vmem:[#allocation2 + $0x7f0] sm:$0xff]
    %v2577 = vld [vmem:[#allocation2 + $0x7f8] sm:$0xff]
    %v2578 = vld [vmem:[#allocation2 + $0x800] sm:$0xff]
    %v2579 = vld [vmem:[#allocation2 + $0x808] sm:$0xff]
    %v2580 = vld [vmem:[#allocation2 + $0x810] sm:$0xff]
    %v2581 = vld [vmem:[#allocation2 + $0x818] sm:$0xff]
    %v2582 = vld [vmem:[#allocation2 + $0x820] sm:$0xff]
    %v2583 = vld [vmem:[#allocation2 + $0x828] sm:$0xff]
    %v2584 = vld [vmem:[#allocation2 + $0x830] sm:$0xff]
    %v2585 = vld [vmem:[#allocation2 + $0x838] sm:$0xff]
    %v2586 = vld [vmem:[#allocation2 + $0x840] sm:$0xff]
    %v2587 = vld [vmem:[#allocation2 + $0x848] sm:$0xff]
    %v2588 = vld [vmem:[#allocation2 + $0x850] sm:$0xff]
    %v2589 = vld [vmem:[#allocation2 + $0x858] sm:$0xff]
    %v2590 = vld [vmem:[#allocation2 + $0x860] sm:$0xff]
    %v2591 = vld [vmem:[#allocation2 + $0x868] sm:$0xff]
    %v2592 = vld [vmem:[#allocation2 + $0x870] sm:$0xff]
    %v2593 = vld [vmem:[#allocation2 + $0x878] sm:$0xff]
    %v2594 = vld [vmem:[#allocation2 + $0x880] sm:$0xff]
    %v2595 = vld [vmem:[#allocation2 + $0x888] sm:$0xff]
    %v2596 = vld [vmem:[#allocation2 + $0x890] sm:$0xff]
    %v2597 = vld [vmem:[#allocation2 + $0x898] sm:$0xff]
    %v2598 = vld [vmem:[#allocation2 + $0x8a0] sm:$0xff]
    %v2599 = vld [vmem:[#allocation2 + $0x8a8] sm:$0xff]
    %v2600 = vld [vmem:[#allocation2 + $0x8b0] sm:$0xff]
    %v2601 = vld [vmem:[#allocation2 + $0x8b8] sm:$0xff]
    %v2602 = vld [vmem:[#allocation2 + $0x8c0] sm:$0xff]
    %v2603 = vld [vmem:[#allocation2 + $0x8c8] sm:$0xff]
    %v2604 = vld [vmem:[#allocation2 + $0x8d0] sm:$0xff]
    %v2605 = vld [vmem:[#allocation2 + $0x8d8] sm:$0xff]
    %v2606 = vld [vmem:[#allocation2 + $0x8e0] sm:$0xff]
    %v2607 = vld [vmem:[#allocation2 + $0x8e8] sm:$0xff]
    %v2608 = vld [vmem:[#allocation2 + $0x8f0] sm:$0xff]
    %v2609 = vld [vmem:[#allocation2 + $0x8f8] sm:$0xff]
    %v2610 = vld [vmem:[#allocation2 + $0x900] sm:$0xff]
    %v2611 = vld [vmem:[#allocation2 + $0x908] sm:$0xff]
    %v2612 = vld [vmem:[#allocation2 + $0x910] sm:$0xff]
    %v2613 = vld [vmem:[#allocation2 + $0x918] sm:$0xff]
    %v2614 = vld [vmem:[#allocation2 + $0x920] sm:$0xff]
    %v2615 = vld [vmem:[#allocation2 + $0x928] sm:$0xff]
    %v2616 = vld [vmem:[#allocation2 + $0x930] sm:$0xff]
    %v2617 = vld [vmem:[#allocation2 + $0x938] sm:$0xff]
    %v2618 = vld [vmem:[#allocation2 + $0x940] sm:$0xff]
    %v2619 = vld [vmem:[#allocation2 + $0x948] sm:$0xff]
    %v2620 = vld [vmem:[#allocation2 + $0x950] sm:$0xff]
    %v2621 = vld [vmem:[#allocation2 + $0x958] sm:$0xff]
    %v2622 = vld [vmem:[#allocation2 + $0x960] sm:$0xff]
    %v2623 = vld [vmem:[#allocation2 + $0x968] sm:$0xff]
    %v2624 = vld [vmem:[#allocation2 + $0x970] sm:$0xff]
    %v2625 = vld [vmem:[#allocation2 + $0x978] sm:$0xff]
    %v2626 = vld [vmem:[#allocation2 + $0x980] sm:$0xff]
    %v2627 = vld [vmem:[#allocation2 + $0x988] sm:$0xff]
    %v2628 = vld [vmem:[#allocation2 + $0x990] sm:$0xff]
    %v2629 = vld [vmem:[#allocation2 + $0x998] sm:$0xff]
    %v2630 = vld [vmem:[#allocation2 + $0x9a0] sm:$0xff]
    %v2631 = vld [vmem:[#allocation2 + $0x9a8] sm:$0xff]
    %v2632 = vld [vmem:[#allocation2 + $0x9b0] sm:$0xff]
    %v2633 = vld [vmem:[#allocation2 + $0x9b8] sm:$0xff]
    %v2634 = vld [vmem:[#allocation2 + $0x9c0] sm:$0xff]
    %v2635 = vld [vmem:[#allocation2 + $0x9c8] sm:$0xff]
    %v2636 = vld [vmem:[#allocation2 + $0x9d0] sm:$0xff]
    %v2637 = vld [vmem:[#allocation2 + $0x9d8] sm:$0xff]
    %v2638 = vld [vmem:[#allocation2 + $0x9e0] sm:$0xff]
    %v2639 = vld [vmem:[#allocation2 + $0x9e8] sm:$0xff]
    %v2640 = vld [vmem:[#allocation2 + $0x9f0] sm:$0xff]
    %v2641 = vld [vmem:[#allocation2 + $0x9f8] sm:$0xff]
    %v2642 = vld [vmem:[#allocation2 + $0xa00] sm:$0xff]
    %v2643 = vld [vmem:[#allocation2 + $0xa08] sm:$0xff]
    %v2644 = vld [vmem:[#allocation2 + $0xa10] sm:$0xff]
    %v2645 = vld [vmem:[#allocation2 + $0xa18] sm:$0xff]
    %v2646 = vld [vmem:[#allocation2 + $0xa20] sm:$0xff]
    %v2647 = vld [vmem:[#allocation2 + $0xa28] sm:$0xff]
    %v2648 = vld [vmem:[#allocation2 + $0xa30] sm:$0xff]
    %v2649 = vld [vmem:[#allocation2 + $0xa38] sm:$0xff]
    %v2650 = vld [vmem:[#allocation2 + $0xa40] sm:$0xff]
    %v2651 = vld [vmem:[#allocation2 + $0xa48] sm:$0xff]
    %v2652 = vld [vmem:[#allocation2 + $0xa50] sm:$0xff]
    %v2653 = vld [vmem:[#allocation2 + $0xa58] sm:$0xff]
    %v2654 = vld [vmem:[#allocation2 + $0xa60] sm:$0xff]
    %v2655 = vld [vmem:[#allocation2 + $0xa68] sm:$0xff]
    %v2656 = vld [vmem:[#allocation2 + $0xa70] sm:$0xff]
    %v2657 = vld [vmem:[#allocation2 + $0xa78] sm:$0xff]
    %v2658 = vld [vmem:[#allocation2 + $0xa80] sm:$0xff]
    %v2659 = vld [vmem:[#allocation2 + $0xa88] sm:$0xff]
    %v2660 = vld [vmem:[#allocation2 + $0xa90] sm:$0xff]
    %v2661 = vld [vmem:[#allocation2 + $0xa98] sm:$0xff]
    %v2662 = vld [vmem:[#allocation2 + $0xaa0] sm:$0xff]
    %v2663 = vld [vmem:[#allocation2 + $0xaa8] sm:$0xff]
    %v2664 = vld [vmem:[#allocation2 + $0xab0] sm:$0xff]
    %v2665 = vld [vmem:[#allocation2 + $0xab8] sm:$0xff]
    %v2666 = vld [vmem:[#allocation2 + $0xac0] sm:$0xff]
    %v2667 = vld [vmem:[#allocation2 + $0xac8] sm:$0xff]
    %v2668 = vld [vmem:[#allocation2 + $0xad0] sm:$0xff]
    %v2669 = vld [vmem:[#allocation2 + $0xad8] sm:$0xff]
    %v2670 = vld [vmem:[#allocation2 + $0xae0] sm:$0xff]
    %v2671 = vld [vmem:[#allocation2 + $0xae8] sm:$0xff]
    %v2672 = vld [vmem:[#allocation2 + $0xaf0] sm:$0xff]
    %v2673 = vld [vmem:[#allocation2 + $0xaf8] sm:$0xff]
    %v2674 = vld [vmem:[#allocation2 + $0xb00] sm:$0xff]
    %v2675 = vld [vmem:[#allocation2 + $0xb08] sm:$0xff]
    %v2676 = vld [vmem:[#allocation2 + $0xb10] sm:$0xff]
    %v2677 = vld [vmem:[#allocation2 + $0xb18] sm:$0xff]
    %v2678 = vld [vmem:[#allocation2 + $0xb20] sm:$0xff]
    %v2679 = vld [vmem:[#allocation2 + $0xb28] sm:$0xff]
    %v2680 = vld [vmem:[#allocation2 + $0xb30] sm:$0xff]
    %v2681 = vld [vmem:[#allocation2 + $0xb38] sm:$0xff]
    %v2682 = vld [vmem:[#allocation2 + $0xb40] sm:$0xff]
    %v2683 = vld [vmem:[#allocation2 + $0xb48] sm:$0xff]
    %v2684 = vld [vmem:[#allocation2 + $0xb50] sm:$0xff]
    %v2685 = vld [vmem:[#allocation2 + $0xb58] sm:$0xff]
    %v2686 = vld [vmem:[#allocation2 + $0xb60] sm:$0xff]
    %v2687 = vld [vmem:[#allocation2 + $0xb68] sm:$0xff]
    %v2688 = vld [vmem:[#allocation2 + $0xb70] sm:$0xff]
    %v2689 = vld [vmem:[#allocation2 + $0xb78] sm:$0xff]
    %v2690 = vld [vmem:[#allocation2 + $0xb80] sm:$0xff]
    %v2691 = vld [vmem:[#allocation2 + $0xb88] sm:$0xff]
    %v2692 = vld [vmem:[#allocation2 + $0xb90] sm:$0xff]
    %v2693 = vld [vmem:[#allocation2 + $0xb98] sm:$0xff]
    %v2694 = vld [vmem:[#allocation2 + $0xba0] sm:$0xff]
    %v2695 = vld [vmem:[#allocation2 + $0xba8] sm:$0xff]
    %v2696 = vld [vmem:[#allocation2 + $0xbb0] sm:$0xff]
    %v2697 = vld [vmem:[#allocation2 + $0xbb8] sm:$0xff]
    %v2698 = vld [vmem:[#allocation2 + $0xbc0] sm:$0xff]
    %v2699 = vld [vmem:[#allocation2 + $0xbc8] sm:$0xff]
    %v2700 = vld [vmem:[#allocation2 + $0xbd0] sm:$0xff]
    %v2701 = vld [vmem:[#allocation2 + $0xbd8] sm:$0xff]
    %v2702 = vld [vmem:[#allocation2 + $0xbe0] sm:$0xff]
    %v2703 = vld [vmem:[#allocation2 + $0xbe8] sm:$0xff]
    %v2704 = vld [vmem:[#allocation2 + $0xbf0] sm:$0xff]
    %v2705 = vld [vmem:[#allocation2 + $0xbf8] sm:$0xff]
    %v2706 = vld [vmem:[#allocation2 + $0xc00] sm:$0xff]
    %v2707 = vld [vmem:[#allocation2 + $0xc08] sm:$0xff]
    %v2708 = vld [vmem:[#allocation2 + $0xc10] sm:$0xff]
    %v2709 = vld [vmem:[#allocation2 + $0xc18] sm:$0xff]
    %v2710 = vld [vmem:[#allocation2 + $0xc20] sm:$0xff]
    %v2711 = vld [vmem:[#allocation2 + $0xc28] sm:$0xff]
    %v2712 = vld [vmem:[#allocation2 + $0xc30] sm:$0xff]
    %v2713 = vld [vmem:[#allocation2 + $0xc38] sm:$0xff]
    %v2714 = vld [vmem:[#allocation2 + $0xc40] sm:$0xff]
    %v2715 = vld [vmem:[#allocation2 + $0xc48] sm:$0xff]
    %v2716 = vld [vmem:[#allocation2 + $0xc50] sm:$0xff]
    %v2717 = vld [vmem:[#allocation2 + $0xc58] sm:$0xff]
    %v2718 = vld [vmem:[#allocation2 + $0xc60] sm:$0xff]
    %v2719 = vld [vmem:[#allocation2 + $0xc68] sm:$0xff]
    %v2720 = vld [vmem:[#allocation2 + $0xc70] sm:$0xff]
    %v2721 = vld [vmem:[#allocation2 + $0xc78] sm:$0xff]
    %v2722 = vld [vmem:[#allocation2 + $0xc80] sm:$0xff]
    %v2723 = vld [vmem:[#allocation2 + $0xc88] sm:$0xff]
    %v2724 = vld [vmem:[#allocation2 + $0xc90] sm:$0xff]
    %v2725 = vld [vmem:[#allocation2 + $0xc98] sm:$0xff]
    %v2726 = vld [vmem:[#allocation2 + $0xca0] sm:$0xff]
    %v2727 = vld [vmem:[#allocation2 + $0xca8] sm:$0xff]
    %v2728 = vld [vmem:[#allocation2 + $0xcb0] sm:$0xff]
    %v2729 = vld [vmem:[#allocation2 + $0xcb8] sm:$0xff]
    %v2730 = vld [vmem:[#allocation2 + $0xcc0] sm:$0xff]
    %v2731 = vld [vmem:[#allocation2 + $0xcc8] sm:$0xff]
    %v2732 = vld [vmem:[#allocation2 + $0xcd0] sm:$0xff]
    %v2733 = vld [vmem:[#allocation2 + $0xcd8] sm:$0xff]
    %v2734 = vld [vmem:[#allocation2 + $0xce0] sm:$0xff]
    %v2735 = vld [vmem:[#allocation2 + $0xce8] sm:$0xff]
    %v2736 = vld [vmem:[#allocation2 + $0xcf0] sm:$0xff]
    %v2737 = vld [vmem:[#allocation2 + $0xcf8] sm:$0xff]
    %v2738 = vld [vmem:[#allocation2 + $0xd00] sm:$0xff]
    %v2739 = vld [vmem:[#allocation2 + $0xd08] sm:$0xff]
    %v2740 = vld [vmem:[#allocation2 + $0xd10] sm:$0xff]
    %v2741 = vld [vmem:[#allocation2 + $0xd18] sm:$0xff]
    %v2742 = vld [vmem:[#allocation2 + $0xd20] sm:$0xff]
    %v2743 = vld [vmem:[#allocation2 + $0xd28] sm:$0xff]
    %v2744 = vld [vmem:[#allocation2 + $0xd30] sm:$0xff]
    %v2745 = vld [vmem:[#allocation2 + $0xd38] sm:$0xff]
    %v2746 = vld [vmem:[#allocation2 + $0xd40] sm:$0xff]
    %v2747 = vld [vmem:[#allocation2 + $0xd48] sm:$0xff]
    %v2748 = vld [vmem:[#allocation2 + $0xd50] sm:$0xff]
    %v2749 = vld [vmem:[#allocation2 + $0xd58] sm:$0xff]
    %v2750 = vld [vmem:[#allocation2 + $0xd60] sm:$0xff]
    %v2751 = vld [vmem:[#allocation2 + $0xd68] sm:$0xff]
    %v2752 = vld [vmem:[#allocation2 + $0xd70] sm:$0xff]
    %v2753 = vld [vmem:[#allocation2 + $0xd78] sm:$0xff]
    %v2754 = vld [vmem:[#allocation2 + $0xd80] sm:$0xff]
    %v2755 = vld [vmem:[#allocation2 + $0xd88] sm:$0xff]
    %v2756 = vld [vmem:[#allocation2 + $0xd90] sm:$0xff]
    %v2757 = vld [vmem:[#allocation2 + $0xd98] sm:$0xff]
    %v2758 = vld [vmem:[#allocation2 + $0xda0] sm:$0xff]
    %v2759 = vld [vmem:[#allocation2 + $0xda8] sm:$0xff]
    %v2760 = vld [vmem:[#allocation2 + $0xdb0] sm:$0xff]
    %v2761 = vld [vmem:[#allocation2 + $0xdb8] sm:$0xff]
    %v2762 = vld [vmem:[#allocation2 + $0xdc0] sm:$0xff]
    %v2763 = vld [vmem:[#allocation2 + $0xdc8] sm:$0xff]
    %v2764 = vld [vmem:[#allocation2 + $0xdd0] sm:$0xff]
    %v2765 = vld [vmem:[#allocation2 + $0xdd8] sm:$0xff]
    %v2766 = vld [vmem:[#allocation2 + $0xde0] sm:$0xff]
    %v2767 = vld [vmem:[#allocation2 + $0xde8] sm:$0xff]
    %v2768 = vld [vmem:[#allocation2 + $0xdf0] sm:$0xff]
    %v2769 = vld [vmem:[#allocation2 + $0xdf8] sm:$0xff]
    %v2770 = vld [vmem:[#allocation2 + $0xe00] sm:$0xff]
    %v2771 = vld [vmem:[#allocation2 + $0xe08] sm:$0xff]
    %v2772 = vld [vmem:[#allocation2 + $0xe10] sm:$0xff]
    %v2773 = vld [vmem:[#allocation2 + $0xe18] sm:$0xff]
    %v2774 = vld [vmem:[#allocation2 + $0xe20] sm:$0xff]
    %v2775 = vld [vmem:[#allocation2 + $0xe28] sm:$0xff]
    %v2776 = vld [vmem:[#allocation2 + $0xe30] sm:$0xff]
    %v2777 = vld [vmem:[#allocation2 + $0xe38] sm:$0xff]
    %v2778 = vld [vmem:[#allocation2 + $0xe40] sm:$0xff]
    %v2779 = vld [vmem:[#allocation2 + $0xe48] sm:$0xff]
    %v2780 = vld [vmem:[#allocation2 + $0xe50] sm:$0xff]
    %v2781 = vld [vmem:[#allocation2 + $0xe58] sm:$0xff]
    %v2782 = vld [vmem:[#allocation2 + $0xe60] sm:$0xff]
    %v2783 = vld [vmem:[#allocation2 + $0xe68] sm:$0xff]
    %v2784 = vld [vmem:[#allocation2 + $0xe70] sm:$0xff]
    %v2785 = vld [vmem:[#allocation2 + $0xe78] sm:$0xff]
    %v2786 = vld [vmem:[#allocation2 + $0xe80] sm:$0xff]
    %v2787 = vld [vmem:[#allocation2 + $0xe88] sm:$0xff]
    %v2788 = vld [vmem:[#allocation2 + $0xe90] sm:$0xff]
    %v2789 = vld [vmem:[#allocation2 + $0xe98] sm:$0xff]
    %v2790 = vld [vmem:[#allocation2 + $0xea0] sm:$0xff]
    %v2791 = vld [vmem:[#allocation2 + $0xea8] sm:$0xff]
    %v2792 = vld [vmem:[#allocation2 + $0xeb0] sm:$0xff]
    %v2793 = vld [vmem:[#allocation2 + $0xeb8] sm:$0xff]
    %v2794 = vld [vmem:[#allocation2 + $0xec0] sm:$0xff]
    %v2795 = vld [vmem:[#allocation2 + $0xec8] sm:$0xff]
    %v2796 = vld [vmem:[#allocation2 + $0xed0] sm:$0xff]
    %v2797 = vld [vmem:[#allocation2 + $0xed8] sm:$0xff]
    %v2798 = vld [vmem:[#allocation2 + $0xee0] sm:$0xff]
    %v2799 = vld [vmem:[#allocation2 + $0xee8] sm:$0xff]
    %v2800 = vld [vmem:[#allocation2 + $0xef0] sm:$0xff]
    %v2801 = vld [vmem:[#allocation2 + $0xef8] sm:$0xff]
    %v2802 = vld [vmem:[#allocation2 + $0xf00] sm:$0xff]
    %v2803 = vld [vmem:[#allocation2 + $0xf08] sm:$0xff]
    %v2804 = vld [vmem:[#allocation2 + $0xf10] sm:$0xff]
    %v2805 = vld [vmem:[#allocation2 + $0xf18] sm:$0xff]
    %v2806 = vld [vmem:[#allocation2 + $0xf20] sm:$0xff]
    %v2807 = vld [vmem:[#allocation2 + $0xf28] sm:$0xff]
    %v2808 = vld [vmem:[#allocation2 + $0xf30] sm:$0xff]
    %v2809 = vld [vmem:[#allocation2 + $0xf38] sm:$0xff]
    %v2810 = vld [vmem:[#allocation2 + $0xf40] sm:$0xff]
    %v2811 = vld [vmem:[#allocation2 + $0xf48] sm:$0xff]
    %v2812 = vld [vmem:[#allocation2 + $0xf50] sm:$0xff]
    %v2813 = vld [vmem:[#allocation2 + $0xf58] sm:$0xff]
    %v2814 = vld [vmem:[#allocation2 + $0xf60] sm:$0xff]
    %v2815 = vld [vmem:[#allocation2 + $0xf68] sm:$0xff]
    %v2816 = vld [vmem:[#allocation2 + $0xf70] sm:$0xff]
    %v2817 = vld [vmem:[#allocation2 + $0xf78] sm:$0xff]
    %v2818 = vld [vmem:[#allocation2 + $0xf80] sm:$0xff]
    %v2819 = vld [vmem:[#allocation2 + $0xf88] sm:$0xff]
    %v2820 = vld [vmem:[#allocation2 + $0xf90] sm:$0xff]
    %v2821 = vld [vmem:[#allocation2 + $0xf98] sm:$0xff]
    %v2822 = vld [vmem:[#allocation2 + $0xfa0] sm:$0xff]
    %v2823 = vld [vmem:[#allocation2 + $0xfa8] sm:$0xff]
    %v2824 = vld [vmem:[#allocation2 + $0xfb0] sm:$0xff]
    %v2825 = vld [vmem:[#allocation2 + $0xfb8] sm:$0xff]
    %v2826 = vld [vmem:[#allocation2 + $0xfc0] sm:$0xff]
    %v2827 = vld [vmem:[#allocation2 + $0xfc8] sm:$0xff]
    %v2828 = vld [vmem:[#allocation2 + $0xfd0] sm:$0xff]
    %v2829 = vld [vmem:[#allocation2 + $0xfd8] sm:$0xff]
    %v2830 = vld [vmem:[#allocation2 + $0xfe0] sm:$0xff]
    %v2831 = vld [vmem:[#allocation2 + $0xfe8] sm:$0xff]
    %v2832 = vld [vmem:[#allocation2 + $0xff0] sm:$0xff]
    %v2833 = vld [vmem:[#allocation2 + $0xff8] sm:$0xff]
    %v2834 = vld [vmem:[#allocation24] sm:$0xf]
    %v2836 = vlaneseq
    %v2837 = vshrl.u32 %v2836, 7
    %v2838 = vsub.s32 0, %v2837
    %v2839 = vrot.slane %v2834, %v2838
    %v2840 = vlaneseq
    %v2841 = vshrl.u32 %v2840, 7
    %v2842 = vsub.s32 1, %v2841
    %v2843 = vrot.slane %v2834, %v2842
    %v2844 = vlaneseq
    %v2845 = vshrl.u32 %v2844, 7
    %v2846 = vsub.s32 2, %v2845
    %v2847 = vrot.slane %v2834, %v2846
    %v2848 = vlaneseq
    %v2849 = vshrl.u32 %v2848, 7
    %v2850 = vsub.s32 3, %v2849
    %v2851 = vrot.slane %v2834, %v2850
    %v2872 = vunpack.c.l.b16 %v2306
    %v2873 = vunpack.c.h.b16 %v2306
    %v2874 = vunpack.c.l.b16 %v2307
    %v2875 = vunpack.c.h.b16 %v2307
    %v2876 = vunpack.c.l.b16 %v2308
    %v2877 = vunpack.c.h.b16 %v2308
    %v2878 = vunpack.c.l.b16 %v2309
    %v2879 = vunpack.c.h.b16 %v2309
    %v2880 = vunpack.c.l.b16 %v2310
    %v2881 = vunpack.c.h.b16 %v2310
    %v2882 = vunpack.c.l.b16 %v2311
    %v2883 = vunpack.c.h.b16 %v2311
    %v2884 = vunpack.c.l.b16 %v2312
    %v2885 = vunpack.c.h.b16 %v2312
    %v2886 = vunpack.c.l.b16 %v2313
    %v2887 = vunpack.c.h.b16 %v2313
    %v2888 = vunpack.c.l.b16 %v2314
    %v2889 = vunpack.c.h.b16 %v2314
    %v2890 = vunpack.c.l.b16 %v2315
    %v2891 = vunpack.c.h.b16 %v2315
    %v2892 = vunpack.c.l.b16 %v2316
    %v2893 = vunpack.c.h.b16 %v2316
    %v2894 = vunpack.c.l.b16 %v2317
    %v2895 = vunpack.c.h.b16 %v2317
    %v2896 = vunpack.c.l.b16 %v2318
    %v2897 = vunpack.c.h.b16 %v2318
    %v2898 = vunpack.c.l.b16 %v2319
    %v2899 = vunpack.c.h.b16 %v2319
    %v2900 = vunpack.c.l.b16 %v2320
    %v2901 = vunpack.c.h.b16 %v2320
    %v2902 = vunpack.c.l.b16 %v2321
    %v2903 = vunpack.c.h.b16 %v2321
    %v2904 = vpack.c.b16 %v2888, %v2872
    %v2905 = vpack.c.b16 %v2889, %v2873
    %v2906 = vpack.c.b16 %v2890, %v2874
    %v2907 = vpack.c.b16 %v2891, %v2875
    %v2908 = vpack.c.b16 %v2892, %v2876
    %v2909 = vpack.c.b16 %v2893, %v2877
    %v2910 = vpack.c.b16 %v2894, %v2878
    %v2911 = vpack.c.b16 %v2895, %v2879
    %v2912 = vpack.c.b16 %v2896, %v2880
    %v2913 = vpack.c.b16 %v2897, %v2881
    %v2914 = vpack.c.b16 %v2898, %v2882
    %v2915 = vpack.c.b16 %v2899, %v2883
    %v2916 = vpack.c.b16 %v2900, %v2884
    %v2917 = vpack.c.b16 %v2901, %v2885
    %v2918 = vpack.c.b16 %v2902, %v2886
    %v2919 = vpack.c.b16 %v2903, %v2887
    %2936 = vmatprep.subr.bf16.mxu0 %v2323
    %2937 = vmatpush1.bf16.msra.mxu0 %v2322
    %2938 = vmatprep.subr.bf16.mxu0 %v2327
    %2939 = vmatpush1.bf16.msra.mxu0 %v2326
    %2940 = vmatprep.subr.bf16.mxu0 %v2331
    %2941 = vmatpush1.bf16.msra.mxu0 %v2330
    %2942 = vmatprep.subr.bf16.mxu0 %v2335
    %2943 = vmatpush1.bf16.msra.mxu0 %v2334
    %2944 = vmatprep.subr.bf16.mxu0 %v2339
    %2945 = vmatpush1.bf16.msra.mxu0 %v2338
    %2946 = vmatprep.subr.bf16.mxu0 %v2343
    %2947 = vmatpush1.bf16.msra.mxu0 %v2342
    %2948 = vmatprep.subr.bf16.mxu0 %v2347
    %2949 = vmatpush1.bf16.msra.mxu0 %v2346
    %2950 = vmatprep.subr.bf16.mxu0 %v2351
    %2951 = vmatpush1.bf16.msra.mxu0 %v2350
    %2952 = vmatprep.subr.bf16.mxu0 %v2355
    %2953 = vmatpush1.bf16.msra.mxu0 %v2354
    %2954 = vmatprep.subr.bf16.mxu0 %v2359
    %2955 = vmatpush1.bf16.msra.mxu0 %v2358
    %2956 = vmatprep.subr.bf16.mxu0 %v2363
    %2957 = vmatpush1.bf16.msra.mxu0 %v2362
    %2958 = vmatprep.subr.bf16.mxu0 %v2367
    %2959 = vmatpush1.bf16.msra.mxu0 %v2366
    %2960 = vmatprep.subr.bf16.mxu0 %v2371
    %2961 = vmatpush1.bf16.msra.mxu0 %v2370
    %2962 = vmatprep.subr.bf16.mxu0 %v2375
    %2963 = vmatpush1.bf16.msra.mxu0 %v2374
    %2964 = vmatprep.subr.bf16.mxu0 %v2379
    %2965 = vmatpush1.bf16.msra.mxu0 %v2378
    %2966 = vmatprep.subr.bf16.mxu0 %v2383
    %2967 = vmatpush1.bf16.msra.mxu0 %v2382
    %2968 = vmatprep.mubr.bf16.mxu0 %v2905
    %2969 = vmatmul.mubr.bf16.gmra.mrb[0].mxu0 %v2904
    %v2970 = vpop.f32.mrb[0].mxu0
    %v2971 = vadd.f32 %v2839, %v2970
    %v2972 = vpop.f32.mrb[0].mxu0
    %v2973 = vadd.f32 %v2843, %v2972
    %v2974 = vpop.f32.mrb[0].mxu0
    %v2975 = vadd.f32 %v2839, %v2974
    %v2976 = vpop.f32.mrb[0].mxu0
    %v2977 = vadd.f32 %v2843, %v2976
    %2978 = vdwg.mxu0
    %2979 = vmatprep.subr.bf16.mxu0 %v2387
    %2980 = vmatpush1.bf16.msra.mxu0 %v2386
    %2981 = vmatprep.subr.bf16.mxu0 %v2391
    %2982 = vmatpush1.bf16.msra.mxu0 %v2390
    %2983 = vmatprep.subr.bf16.mxu0 %v2395
    %2984 = vmatpush1.bf16.msra.mxu0 %v2394
    %2985 = vmatprep.subr.bf16.mxu0 %v2399
    %2986 = vmatpush1.bf16.msra.mxu0 %v2398
    %2987 = vmatprep.subr.bf16.mxu0 %v2403
    %2988 = vmatpush1.bf16.msra.mxu0 %v2402
    %2989 = vmatprep.subr.bf16.mxu0 %v2407
    %2990 = vmatpush1.bf16.msra.mxu0 %v2406
    %2991 = vmatprep.subr.bf16.mxu0 %v2411
    %2992 = vmatpush1.bf16.msra.mxu0 %v2410
    %2993 = vmatprep.subr.bf16.mxu0 %v2415
    %2994 = vmatpush1.bf16.msra.mxu0 %v2414
    %2995 = vmatprep.subr.bf16.mxu0 %v2419
    %2996 = vmatpush1.bf16.msra.mxu0 %v2418
    %2997 = vmatprep.subr.bf16.mxu0 %v2423
    %2998 = vmatpush1.bf16.msra.mxu0 %v2422
    %2999 = vmatprep.subr.bf16.mxu0 %v2427
    %3000 = vmatpush1.bf16.msra.mxu0 %v2426
    %3001 = vmatprep.subr.bf16.mxu0 %v2431
    %3002 = vmatpush1.bf16.msra.mxu0 %v2430
    %3003 = vmatprep.subr.bf16.mxu0 %v2435
    %3004 = vmatpush1.bf16.msra.mxu0 %v2434
    %3005 = vmatprep.subr.bf16.mxu0 %v2439
    %3006 = vmatpush1.bf16.msra.mxu0 %v2438
    %3007 = vmatprep.subr.bf16.mxu0 %v2443
    %3008 = vmatpush1.bf16.msra.mxu0 %v2442
    %3009 = vmatprep.subr.bf16.mxu0 %v2447
    %3010 = vmatpush1.bf16.msra.mxu0 %v2446
    %3011 = vmatprep.mubr.bf16.mxu0 %v2907
    %3012 = vmatmul.mubr.bf16.gmra.mrb[0].mxu0 %v2906
    %v3013 = vpop.f32.mrb[0].mxu0
    %v3014 = vadd.f32 %v2971, %v3013
    %v3015 = vpop.f32.mrb[0].mxu0
    %v3016 = vadd.f32 %v2973, %v3015
    %v3017 = vpop.f32.mrb[0].mxu0
    %v3018 = vadd.f32 %v2975, %v3017
    %v3019 = vpop.f32.mrb[0].mxu0
    %v3020 = vadd.f32 %v2977, %v3019
    %3021 = vdwg.mxu0
    %3022 = vmatprep.subr.bf16.mxu0 %v2451
    %3023 = vmatpush1.bf16.msra.mxu0 %v2450
    %3024 = vmatprep.subr.bf16.mxu0 %v2455
    %3025 = vmatpush1.bf16.msra.mxu0 %v2454
    %3026 = vmatprep.subr.bf16.mxu0 %v2459
    %3027 = vmatpush1.bf16.msra.mxu0 %v2458
    %3028 = vmatprep.subr.bf16.mxu0 %v2463
    %3029 = vmatpush1.bf16.msra.mxu0 %v2462
    %3030 = vmatprep.subr.bf16.mxu0 %v2467
    %3031 = vmatpush1.bf16.msra.mxu0 %v2466
    %3032 = vmatprep.subr.bf16.mxu0 %v2471
    %3033 = vmatpush1.bf16.msra.mxu0 %v2470
    %3034 = vmatprep.subr.bf16.mxu0 %v2475
    %3035 = vmatpush1.bf16.msra.mxu0 %v2474
    %3036 = vmatprep.subr.bf16.mxu0 %v2479
    %3037 = vmatpush1.bf16.msra.mxu0 %v2478
    %3038 = vmatprep.subr.bf16.mxu0 %v2483
    %3039 = vmatpush1.bf16.msra.mxu0 %v2482
    %3040 = vmatprep.subr.bf16.mxu0 %v2487
    %3041 = vmatpush1.bf16.msra.mxu0 %v2486
    %3042 = vmatprep.subr.bf16.mxu0 %v2491
    %3043 = vmatpush1.bf16.msra.mxu0 %v2490
    %3044 = vmatprep.subr.bf16.mxu0 %v2495
    %3045 = vmatpush1.bf16.msra.mxu0 %v2494
    %3046 = vmatprep.subr.bf16.mxu0 %v2499
    %3047 = vmatpush1.bf16.msra.mxu0 %v2498
    %3048 = vmatprep.subr.bf16.mxu0 %v2503
    %3049 = vmatpush1.bf16.msra.mxu0 %v2502
    %3050 = vmatprep.subr.bf16.mxu0 %v2507
    %3051 = vmatpush1.bf16.msra.mxu0 %v2506
    %3052 = vmatprep.subr.bf16.mxu0 %v2511
    %3053 = vmatpush1.bf16.msra.mxu0 %v2510
    %3054 = vmatprep.mubr.bf16.mxu0 %v2909
    %3055 = vmatmul.mubr.bf16.gmra.mrb[0].mxu0 %v2908
    %v3056 = vpop.f32.mrb[0].mxu0
    %v3057 = vadd.f32 %v3014, %v3056
    %v3058 = vpop.f32.mrb[0].mxu0
    %v3059 = vadd.f32 %v3016, %v3058
    %v3060 = vpop.f32.mrb[0].mxu0
    %v3061 = vadd.f32 %v3018, %v3060
    %v3062 = vpop.f32.mrb[0].mxu0
    %v3063 = vadd.f32 %v3020, %v3062
    %3064 = vdwg.mxu0
    %3065 = vmatprep.subr.bf16.mxu0 %v2515
    %3066 = vmatpush1.bf16.msra.mxu0 %v2514
    %3067 = vmatprep.subr.bf16.mxu0 %v2519
    %3068 = vmatpush1.bf16.msra.mxu0 %v2518
    %3069 = vmatprep.subr.bf16.mxu0 %v2523
    %3070 = vmatpush1.bf16.msra.mxu0 %v2522
    %3071 = vmatprep.subr.bf16.mxu0 %v2527
    %3072 = vmatpush1.bf16.msra.mxu0 %v2526
    %3073 = vmatprep.subr.bf16.mxu0 %v2531
    %3074 = vmatpush1.bf16.msra.mxu0 %v2530
    %3075 = vmatprep.subr.bf16.mxu0 %v2535
    %3076 = vmatpush1.bf16.msra.mxu0 %v2534
    %3077 = vmatprep.subr.bf16.mxu0 %v2539
    %3078 = vmatpush1.bf16.msra.mxu0 %v2538
    %3079 = vmatprep.subr.bf16.mxu0 %v2543
    %3080 = vmatpush1.bf16.msra.mxu0 %v2542
    %3081 = vmatprep.subr.bf16.mxu0 %v2547
    %3082 = vmatpush1.bf16.msra.mxu0 %v2546
    %3083 = vmatprep.subr.bf16.mxu0 %v2551
    %3084 = vmatpush1.bf16.msra.mxu0 %v2550
    %3085 = vmatprep.subr.bf16.mxu0 %v2555
    %3086 = vmatpush1.bf16.msra.mxu0 %v2554
    %3087 = vmatprep.subr.bf16.mxu0 %v2559
    %3088 = vmatpush1.bf16.msra.mxu0 %v2558
    %3089 = vmatprep.subr.bf16.mxu0 %v2563
    %3090 = vmatpush1.bf16.msra.mxu0 %v2562
    %3091 = vmatprep.subr.bf16.mxu0 %v2567
    %3092 = vmatpush1.bf16.msra.mxu0 %v2566
    %3093 = vmatprep.subr.bf16.mxu0 %v2571
    %3094 = vmatpush1.bf16.msra.mxu0 %v2570
    %3095 = vmatprep.subr.bf16.mxu0 %v2575
    %3096 = vmatpush1.bf16.msra.mxu0 %v2574
    %3097 = vmatprep.mubr.bf16.mxu0 %v2911
    %3098 = vmatmul.mubr.bf16.gmra.mrb[0].mxu0 %v2910
    %v3099 = vpop.f32.mrb[0].mxu0
    %v3100 = vadd.f32 %v3057, %v3099
    %v3101 = vpop.f32.mrb[0].mxu0
    %v3102 = vadd.f32 %v3059, %v3101
    %v3103 = vpop.f32.mrb[0].mxu0
    %v3104 = vadd.f32 %v3061, %v3103
    %v3105 = vpop.f32.mrb[0].mxu0
    %v3106 = vadd.f32 %v3063, %v3105
    %3107 = vdwg.mxu0
    %3108 = vmatprep.subr.bf16.mxu0 %v2579
    %3109 = vmatpush1.bf16.msra.mxu0 %v2578
    %3110 = vmatprep.subr.bf16.mxu0 %v2583
    %3111 = vmatpush1.bf16.msra.mxu0 %v2582
    %3112 = vmatprep.subr.bf16.mxu0 %v2587
    %3113 = vmatpush1.bf16.msra.mxu0 %v2586
    %3114 = vmatprep.subr.bf16.mxu0 %v2591
    %3115 = vmatpush1.bf16.msra.mxu0 %v2590
    %3116 = vmatprep.subr.bf16.mxu0 %v2595
    %3117 = vmatpush1.bf16.msra.mxu0 %v2594
    %3118 = vmatprep.subr.bf16.mxu0 %v2599
    %3119 = vmatpush1.bf16.msra.mxu0 %v2598
    %3120 = vmatprep.subr.bf16.mxu0 %v2603
    %3121 = vmatpush1.bf16.msra.mxu0 %v2602
    %3122 = vmatprep.subr.bf16.mxu0 %v2607
    %3123 = vmatpush1.bf16.msra.mxu0 %v2606
    %3124 = vmatprep.subr.bf16.mxu0 %v2611
    %3125 = vmatpush1.bf16.msra.mxu0 %v2610
    %3126 = vmatprep.subr.bf16.mxu0 %v2615
    %3127 = vmatpush1.bf16.msra.mxu0 %v2614
    %3128 = vmatprep.subr.bf16.mxu0 %v2619
    %3129 = vmatpush1.bf16.msra.mxu0 %v2618
    %3130 = vmatprep.subr.bf16.mxu0 %v2623
    %3131 = vmatpush1.bf16.msra.mxu0 %v2622
    %3132 = vmatprep.subr.bf16.mxu0 %v2627
    %3133 = vmatpush1.bf16.msra.mxu0 %v2626
    %3134 = vmatprep.subr.bf16.mxu0 %v2631
    %3135 = vmatpush1.bf16.msra.mxu0 %v2630
    %3136 = vmatprep.subr.bf16.mxu0 %v2635
    %3137 = vmatpush1.bf16.msra.mxu0 %v2634
    %3138 = vmatprep.subr.bf16.mxu0 %v2639
    %3139 = vmatpush1.bf16.msra.mxu0 %v2638
    %3140 = vmatprep.mubr.bf16.mxu0 %v2913
    %3141 = vmatmul.mubr.bf16.gmra.mrb[0].mxu0 %v2912
    %v3142 = vpop.f32.mrb[0].mxu0
    %v3143 = vadd.f32 %v3100, %v3142
    %v3144 = vpop.f32.mrb[0].mxu0
    %v3145 = vadd.f32 %v3102, %v3144
    %v3146 = vpop.f32.mrb[0].mxu0
    %v3147 = vadd.f32 %v3104, %v3146
    %v3148 = vpop.f32.mrb[0].mxu0
    %v3149 = vadd.f32 %v3106, %v3148
    %3150 = vdwg.mxu0
    %3151 = vmatprep.subr.bf16.mxu0 %v2643
    %3152 = vmatpush1.bf16.msra.mxu0 %v2642
    %3153 = vmatprep.subr.bf16.mxu0 %v2647
    %3154 = vmatpush1.bf16.msra.mxu0 %v2646
    %3155 = vmatprep.subr.bf16.mxu0 %v2651
    %3156 = vmatpush1.bf16.msra.mxu0 %v2650
    %3157 = vmatprep.subr.bf16.mxu0 %v2655
    %3158 = vmatpush1.bf16.msra.mxu0 %v2654
    %3159 = vmatprep.subr.bf16.mxu0 %v2659
    %3160 = vmatpush1.bf16.msra.mxu0 %v2658
    %3161 = vmatprep.subr.bf16.mxu0 %v2663
    %3162 = vmatpush1.bf16.msra.mxu0 %v2662
    %3163 = vmatprep.subr.bf16.mxu0 %v2667
    %3164 = vmatpush1.bf16.msra.mxu0 %v2666
    %3165 = vmatprep.subr.bf16.mxu0 %v2671
    %3166 = vmatpush1.bf16.msra.mxu0 %v2670
    %3167 = vmatprep.subr.bf16.mxu0 %v2675
    %3168 = vmatpush1.bf16.msra.mxu0 %v2674
    %3169 = vmatprep.subr.bf16.mxu0 %v2679
    %3170 = vmatpush1.bf16.msra.mxu0 %v2678
    %3171 = vmatprep.subr.bf16.mxu0 %v2683
    %3172 = vmatpush1.bf16.msra.mxu0 %v2682
    %3173 = vmatprep.subr.bf16.mxu0 %v2687
    %3174 = vmatpush1.bf16.msra.mxu0 %v2686
    %3175 = vmatprep.subr.bf16.mxu0 %v2691
    %3176 = vmatpush1.bf16.msra.mxu0 %v2690
    %3177 = vmatprep.subr.bf16.mxu0 %v2695
    %3178 = vmatpush1.bf16.msra.mxu0 %v2694
    %3179 = vmatprep.subr.bf16.mxu0 %v2699
    %3180 = vmatpush1.bf16.msra.mxu0 %v2698
    %3181 = vmatprep.subr.bf16.mxu0 %v2703
    %3182 = vmatpush1.bf16.msra.mxu0 %v2702
    %3183 = vmatprep.mubr.bf16.mxu0 %v2915
    %3184 = vmatmul.mubr.bf16.gmra.mrb[0].mxu0 %v2914
    %v3185 = vpop.f32.mrb[0].mxu0
    %v3186 = vadd.f32 %v3143, %v3185
    %v3187 = vpop.f32.mrb[0].mxu0
    %v3188 = vadd.f32 %v3145, %v3187
    %v3189 = vpop.f32.mrb[0].mxu0
    %v3190 = vadd.f32 %v3147, %v3189
    %v3191 = vpop.f32.mrb[0].mxu0
    %v3192 = vadd.f32 %v3149, %v3191
    %3193 = vdwg.mxu0
    %3194 = vmatprep.subr.bf16.mxu0 %v2707
    %3195 = vmatpush1.bf16.msra.mxu0 %v2706
    %3196 = vmatprep.subr.bf16.mxu0 %v2711
    %3197 = vmatpush1.bf16.msra.mxu0 %v2710
    %3198 = vmatprep.subr.bf16.mxu0 %v2715
    %3199 = vmatpush1.bf16.msra.mxu0 %v2714
    %3200 = vmatprep.subr.bf16.mxu0 %v2719
    %3201 = vmatpush1.bf16.msra.mxu0 %v2718
    %3202 = vmatprep.subr.bf16.mxu0 %v2723
    %3203 = vmatpush1.bf16.msra.mxu0 %v2722
    %3204 = vmatprep.subr.bf16.mxu0 %v2727
    %3205 = vmatpush1.bf16.msra.mxu0 %v2726
    %3206 = vmatprep.subr.bf16.mxu0 %v2731
    %3207 = vmatpush1.bf16.msra.mxu0 %v2730
    %3208 = vmatprep.subr.bf16.mxu0 %v2735
    %3209 = vmatpush1.bf16.msra.mxu0 %v2734
    %3210 = vmatprep.subr.bf16.mxu0 %v2739
    %3211 = vmatpush1.bf16.msra.mxu0 %v2738
    %3212 = vmatprep.subr.bf16.mxu0 %v2743
    %3213 = vmatpush1.bf16.msra.mxu0 %v2742
    %3214 = vmatprep.subr.bf16.mxu0 %v2747
    %3215 = vmatpush1.bf16.msra.mxu0 %v2746
    %3216 = vmatprep.subr.bf16.mxu0 %v2751
    %3217 = vmatpush1.bf16.msra.mxu0 %v2750
    %3218 = vmatprep.subr.bf16.mxu0 %v2755
    %3219 = vmatpush1.bf16.msra.mxu0 %v2754
    %3220 = vmatprep.subr.bf16.mxu0 %v2759
    %3221 = vmatpush1.bf16.msra.mxu0 %v2758
    %3222 = vmatprep.subr.bf16.mxu0 %v2763
    %3223 = vmatpush1.bf16.msra.mxu0 %v2762
    %3224 = vmatprep.subr.bf16.mxu0 %v2767
    %3225 = vmatpush1.bf16.msra.mxu0 %v2766
    %3226 = vmatprep.mubr.bf16.mxu0 %v2917
    %3227 = vmatmul.mubr.bf16.gmra.mrb[0].mxu0 %v2916
    %v3228 = vpop.f32.mrb[0].mxu0
    %v3229 = vadd.f32 %v3186, %v3228
    %v3230 = vpop.f32.mrb[0].mxu0
    %v3231 = vadd.f32 %v3188, %v3230
    %v3232 = vpop.f32.mrb[0].mxu0
    %v3233 = vadd.f32 %v3190, %v3232
    %v3234 = vpop.f32.mrb[0].mxu0
    %v3235 = vadd.f32 %v3192, %v3234
    %3236 = vdwg.mxu0
    %3237 = vmatprep.subr.bf16.mxu0 %v2771
    %3238 = vmatpush1.bf16.msra.mxu0 %v2770
    %3239 = vmatprep.subr.bf16.mxu0 %v2775
    %3240 = vmatpush1.bf16.msra.mxu0 %v2774
    %3241 = vmatprep.subr.bf16.mxu0 %v2779
    %3242 = vmatpush1.bf16.msra.mxu0 %v2778
    %3243 = vmatprep.subr.bf16.mxu0 %v2783
    %3244 = vmatpush1.bf16.msra.mxu0 %v2782
    %3245 = vmatprep.subr.bf16.mxu0 %v2787
    %3246 = vmatpush1.bf16.msra.mxu0 %v2786
    %3247 = vmatprep.subr.bf16.mxu0 %v2791
    %3248 = vmatpush1.bf16.msra.mxu0 %v2790
    %3249 = vmatprep.subr.bf16.mxu0 %v2795
    %3250 = vmatpush1.bf16.msra.mxu0 %v2794
    %3251 = vmatprep.subr.bf16.mxu0 %v2799
    %3252 = vmatpush1.bf16.msra.mxu0 %v2798
    %3253 = vmatprep.subr.bf16.mxu0 %v2803
    %3254 = vmatpush1.bf16.msra.mxu0 %v2802
    %3255 = vmatprep.subr.bf16.mxu0 %v2807
    %3256 = vmatpush1.bf16.msra.mxu0 %v2806
    %3257 = vmatprep.subr.bf16.mxu0 %v2811
    %3258 = vmatpush1.bf16.msra.mxu0 %v2810
    %3259 = vmatprep.subr.bf16.mxu0 %v2815
    %3260 = vmatpush1.bf16.msra.mxu0 %v2814
    %3261 = vmatprep.subr.bf16.mxu0 %v2819
    %3262 = vmatpush1.bf16.msra.mxu0 %v2818
    %3263 = vmatprep.subr.bf16.mxu0 %v2823
    %3264 = vmatpush1.bf16.msra.mxu0 %v2822
    %3265 = vmatprep.subr.bf16.mxu0 %v2827
    %3266 = vmatpush1.bf16.msra.mxu0 %v2826
    %3267 = vmatprep.subr.bf16.mxu0 %v2831
    %3268 = vmatpush1.bf16.msra.mxu0 %v2830
    %3269 = vmatprep.mubr.bf16.mxu0 %v2919
    %3270 = vmatmul.mubr.bf16.gmra.mrb[0].mxu0 %v2918
    %v3271 = vpop.f32.mrb[0].mxu0
    %v3272 = vadd.f32 %v3229, %v3271
    %v3273 = vpop.f32.mrb[0].mxu0
    %v3274 = vadd.f32 %v3231, %v3273
    %v3275 = vpop.f32.mrb[0].mxu0
    %v3276 = vadd.f32 %v3233, %v3275
    %v3277 = vpop.f32.mrb[0].mxu0
    %v3278 = vadd.f32 %v3235, %v3277
    %3279 = vdwg.mxu0
    %3280 = vmatprep.subr.bf16.mxu0 %v2325
    %3281 = vmatpush1.bf16.msra.mxu0 %v2324
    %3282 = vmatprep.subr.bf16.mxu0 %v2329
    %3283 = vmatpush1.bf16.msra.mxu0 %v2328
    %3284 = vmatprep.subr.bf16.mxu0 %v2333
    %3285 = vmatpush1.bf16.msra.mxu0 %v2332
    %3286 = vmatprep.subr.bf16.mxu0 %v2337
    %3287 = vmatpush1.bf16.msra.mxu0 %v2336
    %3288 = vmatprep.subr.bf16.mxu0 %v2341
    %3289 = vmatpush1.bf16.msra.mxu0 %v2340
    %3290 = vmatprep.subr.bf16.mxu0 %v2345
    %3291 = vmatpush1.bf16.msra.mxu0 %v2344
    %3292 = vmatprep.subr.bf16.mxu0 %v2349
    %3293 = vmatpush1.bf16.msra.mxu0 %v2348
    %3294 = vmatprep.subr.bf16.mxu0 %v2353
    %3295 = vmatpush1.bf16.msra.mxu0 %v2352
    %3296 = vmatprep.subr.bf16.mxu0 %v2357
    %3297 = vmatpush1.bf16.msra.mxu0 %v2356
    %3298 = vmatprep.subr.bf16.mxu0 %v2361
    %3299 = vmatpush1.bf16.msra.mxu0 %v2360
    %3300 = vmatprep.subr.bf16.mxu0 %v2365
    %3301 = vmatpush1.bf16.msra.mxu0 %v2364
    %3302 = vmatprep.subr.bf16.mxu0 %v2369
    %3303 = vmatpush1.bf16.msra.mxu0 %v2368
    %3304 = vmatprep.subr.bf16.mxu0 %v2373
    %3305 = vmatpush1.bf16.msra.mxu0 %v2372
    %3306 = vmatprep.subr.bf16.mxu0 %v2377
    %3307 = vmatpush1.bf16.msra.mxu0 %v2376
    %3308 = vmatprep.subr.bf16.mxu0 %v2381
    %3309 = vmatpush1.bf16.msra.mxu0 %v2380
    %3310 = vmatprep.subr.bf16.mxu0 %v2385
    %3311 = vmatpush1.bf16.msra.mxu0 %v2384
    %3312 = vmatprep.mubr.bf16.mxu0 %v2905
    %3313 = vmatmul.mubr.bf16.gmra.mrb[0].mxu0 %v2904
    %v3314 = vpop.f32.mrb[0].mxu0
    %v3315 = vadd.f32 %v2847, %v3314
    %v3316 = vpop.f32.mrb[0].mxu0
    %v3317 = vadd.f32 %v2851, %v3316
    %v3318 = vpop.f32.mrb[0].mxu0
    %v3319 = vadd.f32 %v2847, %v3318
    %v3320 = vpop.f32.mrb[0].mxu0
    %v3321 = vadd.f32 %v2851, %v3320
    %3322 = vdwg.mxu0
    %3323 = vmatprep.subr.bf16.mxu0 %v2389
    %3324 = vmatpush1.bf16.msra.mxu0 %v2388
    %3325 = vmatprep.subr.bf16.mxu0 %v2393
    %3326 = vmatpush1.bf16.msra.mxu0 %v2392
    %3327 = vmatprep.subr.bf16.mxu0 %v2397
    %3328 = vmatpush1.bf16.msra.mxu0 %v2396
    %3329 = vmatprep.subr.bf16.mxu0 %v2401
    %3330 = vmatpush1.bf16.msra.mxu0 %v2400
    %3331 = vmatprep.subr.bf16.mxu0 %v2405
    %3332 = vmatpush1.bf16.msra.mxu0 %v2404
    %3333 = vmatprep.subr.bf16.mxu0 %v2409
    %3334 = vmatpush1.bf16.msra.mxu0 %v2408
    %3335 = vmatprep.subr.bf16.mxu0 %v2413
    %3336 = vmatpush1.bf16.msra.mxu0 %v2412
    %3337 = vmatprep.subr.bf16.mxu0 %v2417
    %3338 = vmatpush1.bf16.msra.mxu0 %v2416
    %3339 = vmatprep.subr.bf16.mxu0 %v2421
    %3340 = vmatpush1.bf16.msra.mxu0 %v2420
    %3341 = vmatprep.subr.bf16.mxu0 %v2425
    %3342 = vmatpush1.bf16.msra.mxu0 %v2424
    %3343 = vmatprep.subr.bf16.mxu0 %v2429
    %3344 = vmatpush1.bf16.msra.mxu0 %v2428
    %3345 = vmatprep.subr.bf16.mxu0 %v2433
    %3346 = vmatpush1.bf16.msra.mxu0 %v2432
    %3347 = vmatprep.subr.bf16.mxu0 %v2437
    %3348 = vmatpush1.bf16.msra.mxu0 %v2436
    %3349 = vmatprep.subr.bf16.mxu0 %v2441
    %3350 = vmatpush1.bf16.msra.mxu0 %v2440
    %3351 = vmatprep.subr.bf16.mxu0 %v2445
    %3352 = vmatpush1.bf16.msra.mxu0 %v2444
    %3353 = vmatprep.subr.bf16.mxu0 %v2449
    %3354 = vmatpush1.bf16.msra.mxu0 %v2448
    %3355 = vmatprep.mubr.bf16.mxu0 %v2907
    %3356 = vmatmul.mubr.bf16.gmra.mrb[0].mxu0 %v2906
    %v3357 = vpop.f32.mrb[0].mxu0
    %v3358 = vadd.f32 %v3315, %v3357
    %v3359 = vpop.f32.mrb[0].mxu0
    %v3360 = vadd.f32 %v3317, %v3359
    %v3361 = vpop.f32.mrb[0].mxu0
    %v3362 = vadd.f32 %v3319, %v3361
    %v3363 = vpop.f32.mrb[0].mxu0
    %v3364 = vadd.f32 %v3321, %v3363
    %3365 = vdwg.mxu0
    %3366 = vmatprep.subr.bf16.mxu0 %v2453
    %3367 = vmatpush1.bf16.msra.mxu0 %v2452
    %3368 = vmatprep.subr.bf16.mxu0 %v2457
    %3369 = vmatpush1.bf16.msra.mxu0 %v2456
    %3370 = vmatprep.subr.bf16.mxu0 %v2461
    %3371 = vmatpush1.bf16.msra.mxu0 %v2460
    %3372 = vmatprep.subr.bf16.mxu0 %v2465
    %3373 = vmatpush1.bf16.msra.mxu0 %v2464
    %3374 = vmatprep.subr.bf16.mxu0 %v2469
    %3375 = vmatpush1.bf16.msra.mxu0 %v2468
    %3376 = vmatprep.subr.bf16.mxu0 %v2473
    %3377 = vmatpush1.bf16.msra.mxu0 %v2472
    %3378 = vmatprep.subr.bf16.mxu0 %v2477
    %3379 = vmatpush1.bf16.msra.mxu0 %v2476
    %3380 = vmatprep.subr.bf16.mxu0 %v2481
    %3381 = vmatpush1.bf16.msra.mxu0 %v2480
    %3382 = vmatprep.subr.bf16.mxu0 %v2485
    %3383 = vmatpush1.bf16.msra.mxu0 %v2484
    %3384 = vmatprep.subr.bf16.mxu0 %v2489
    %3385 = vmatpush1.bf16.msra.mxu0 %v2488
    %3386 = vmatprep.subr.bf16.mxu0 %v2493
    %3387 = vmatpush1.bf16.msra.mxu0 %v2492
    %3388 = vmatprep.subr.bf16.mxu0 %v2497
    %3389 = vmatpush1.bf16.msra.mxu0 %v2496
    %3390 = vmatprep.subr.bf16.mxu0 %v2501
    %3391 = vmatpush1.bf16.msra.mxu0 %v2500
    %3392 = vmatprep.subr.bf16.mxu0 %v2505
    %3393 = vmatpush1.bf16.msra.mxu0 %v2504
    %3394 = vmatprep.subr.bf16.mxu0 %v2509
    %3395 = vmatpush1.bf16.msra.mxu0 %v2508
    %3396 = vmatprep.subr.bf16.mxu0 %v2513
    %3397 = vmatpush1.bf16.msra.mxu0 %v2512
    %3398 = vmatprep.mubr.bf16.mxu0 %v2909
    %3399 = vmatmul.mubr.bf16.gmra.mrb[0].mxu0 %v2908
    %v3400 = vpop.f32.mrb[0].mxu0
    %v3401 = vadd.f32 %v3358, %v3400
    %v3402 = vpop.f32.mrb[0].mxu0
    %v3403 = vadd.f32 %v3360, %v3402
    %v3404 = vpop.f32.mrb[0].mxu0
    %v3405 = vadd.f32 %v3362, %v3404
    %v3406 = vpop.f32.mrb[0].mxu0
    %v3407 = vadd.f32 %v3364, %v3406
    %3408 = vdwg.mxu0
    %3409 = vmatprep.subr.bf16.mxu0 %v2517
    %3410 = vmatpush1.bf16.msra.mxu0 %v2516
    %3411 = vmatprep.subr.bf16.mxu0 %v2521
    %3412 = vmatpush1.bf16.msra.mxu0 %v2520
    %3413 = vmatprep.subr.bf16.mxu0 %v2525
    %3414 = vmatpush1.bf16.msra.mxu0 %v2524
    %3415 = vmatprep.subr.bf16.mxu0 %v2529
    %3416 = vmatpush1.bf16.msra.mxu0 %v2528
    %3417 = vmatprep.subr.bf16.mxu0 %v2533
    %3418 = vmatpush1.bf16.msra.mxu0 %v2532
    %3419 = vmatprep.subr.bf16.mxu0 %v2537
    %3420 = vmatpush1.bf16.msra.mxu0 %v2536
    %3421 = vmatprep.subr.bf16.mxu0 %v2541
    %3422 = vmatpush1.bf16.msra.mxu0 %v2540
    %3423 = vmatprep.subr.bf16.mxu0 %v2545
    %3424 = vmatpush1.bf16.msra.mxu0 %v2544
    %3425 = vmatprep.subr.bf16.mxu0 %v2549
    %3426 = vmatpush1.bf16.msra.mxu0 %v2548
    %3427 = vmatprep.subr.bf16.mxu0 %v2553
    %3428 = vmatpush1.bf16.msra.mxu0 %v2552
    %3429 = vmatprep.subr.bf16.mxu0 %v2557
    %3430 = vmatpush1.bf16.msra.mxu0 %v2556
    %3431 = vmatprep.subr.bf16.mxu0 %v2561
    %3432 = vmatpush1.bf16.msra.mxu0 %v2560
    %3433 = vmatprep.subr.bf16.mxu0 %v2565
    %3434 = vmatpush1.bf16.msra.mxu0 %v2564
    %3435 = vmatprep.subr.bf16.mxu0 %v2569
    %3436 = vmatpush1.bf16.msra.mxu0 %v2568
    %3437 = vmatprep.subr.bf16.mxu0 %v2573
    %3438 = vmatpush1.bf16.msra.mxu0 %v2572
    %3439 = vmatprep.subr.bf16.mxu0 %v2577
    %3440 = vmatpush1.bf16.msra.mxu0 %v2576
    %3441 = vmatprep.mubr.bf16.mxu0 %v2911
    %3442 = vmatmul.mubr.bf16.gmra.mrb[0].mxu0 %v2910
    %v3443 = vpop.f32.mrb[0].mxu0
    %v3444 = vadd.f32 %v3401, %v3443
    %v3445 = vpop.f32.mrb[0].mxu0
    %v3446 = vadd.f32 %v3403, %v3445
    %v3447 = vpop.f32.mrb[0].mxu0
    %v3448 = vadd.f32 %v3405, %v3447
    %v3449 = vpop.f32.mrb[0].mxu0
    %v3450 = vadd.f32 %v3407, %v3449
    %3451 = vdwg.mxu0
    %3452 = vmatprep.subr.bf16.mxu0 %v2581
    %3453 = vmatpush1.bf16.msra.mxu0 %v2580
    %3454 = vmatprep.subr.bf16.mxu0 %v2585
    %3455 = vmatpush1.bf16.msra.mxu0 %v2584
    %3456 = vmatprep.subr.bf16.mxu0 %v2589
    %3457 = vmatpush1.bf16.msra.mxu0 %v2588
    %3458 = vmatprep.subr.bf16.mxu0 %v2593
    %3459 = vmatpush1.bf16.msra.mxu0 %v2592
    %3460 = vmatprep.subr.bf16.mxu0 %v2597
    %3461 = vmatpush1.bf16.msra.mxu0 %v2596
    %3462 = vmatprep.subr.bf16.mxu0 %v2601
    %3463 = vmatpush1.bf16.msra.mxu0 %v2600
    %3464 = vmatprep.subr.bf16.mxu0 %v2605
    %3465 = vmatpush1.bf16.msra.mxu0 %v2604
    %3466 = vmatprep.subr.bf16.mxu0 %v2609
    %3467 = vmatpush1.bf16.msra.mxu0 %v2608
    %3468 = vmatprep.subr.bf16.mxu0 %v2613
    %3469 = vmatpush1.bf16.msra.mxu0 %v2612
    %3470 = vmatprep.subr.bf16.mxu0 %v2617
    %3471 = vmatpush1.bf16.msra.mxu0 %v2616
    %3472 = vmatprep.subr.bf16.mxu0 %v2621
    %3473 = vmatpush1.bf16.msra.mxu0 %v2620
    %3474 = vmatprep.subr.bf16.mxu0 %v2625
    %3475 = vmatpush1.bf16.msra.mxu0 %v2624
    %3476 = vmatprep.subr.bf16.mxu0 %v2629
    %3477 = vmatpush1.bf16.msra.mxu0 %v2628
    %3478 = vmatprep.subr.bf16.mxu0 %v2633
    %3479 = vmatpush1.bf16.msra.mxu0 %v2632
    %3480 = vmatprep.subr.bf16.mxu0 %v2637
    %3481 = vmatpush1.bf16.msra.mxu0 %v2636
    %3482 = vmatprep.subr.bf16.mxu0 %v2641
    %3483 = vmatpush1.bf16.msra.mxu0 %v2640
    %3484 = vmatprep.mubr.bf16.mxu0 %v2913
    %3485 = vmatmul.mubr.bf16.gmra.mrb[0].mxu0 %v2912
    %v3486 = vpop.f32.mrb[0].mxu0
    %v3487 = vadd.f32 %v3444, %v3486
    %v3488 = vpop.f32.mrb[0].mxu0
    %v3489 = vadd.f32 %v3446, %v3488
    %v3490 = vpop.f32.mrb[0].mxu0
    %v3491 = vadd.f32 %v3448, %v3490
    %v3492 = vpop.f32.mrb[0].mxu0
    %v3493 = vadd.f32 %v3450, %v3492
    %3494 = vdwg.mxu0
    %3495 = vmatprep.subr.bf16.mxu0 %v2645
    %3496 = vmatpush1.bf16.msra.mxu0 %v2644
    %3497 = vmatprep.subr.bf16.mxu0 %v2649
    %3498 = vmatpush1.bf16.msra.mxu0 %v2648
    %3499 = vmatprep.subr.bf16.mxu0 %v2653
    %3500 = vmatpush1.bf16.msra.mxu0 %v2652
    %3501 = vmatprep.subr.bf16.mxu0 %v2657
    %3502 = vmatpush1.bf16.msra.mxu0 %v2656
    %3503 = vmatprep.subr.bf16.mxu0 %v2661
    %3504 = vmatpush1.bf16.msra.mxu0 %v2660
    %3505 = vmatprep.subr.bf16.mxu0 %v2665
    %3506 = vmatpush1.bf16.msra.mxu0 %v2664
    %3507 = vmatprep.subr.bf16.mxu0 %v2669
    %3508 = vmatpush1.bf16.msra.mxu0 %v2668
    %3509 = vmatprep.subr.bf16.mxu0 %v2673
    %3510 = vmatpush1.bf16.msra.mxu0 %v2672
    %3511 = vmatprep.subr.bf16.mxu0 %v2677
    %3512 = vmatpush1.bf16.msra.mxu0 %v2676
    %3513 = vmatprep.subr.bf16.mxu0 %v2681
    %3514 = vmatpush1.bf16.msra.mxu0 %v2680
    %3515 = vmatprep.subr.bf16.mxu0 %v2685
    %3516 = vmatpush1.bf16.msra.mxu0 %v2684
    %3517 = vmatprep.subr.bf16.mxu0 %v2689
    %3518 = vmatpush1.bf16.msra.mxu0 %v2688
    %3519 = vmatprep.subr.bf16.mxu0 %v2693
    %3520 = vmatpush1.bf16.msra.mxu0 %v2692
    %3521 = vmatprep.subr.bf16.mxu0 %v2697
    %3522 = vmatpush1.bf16.msra.mxu0 %v2696
    %3523 = vmatprep.subr.bf16.mxu0 %v2701
    %3524 = vmatpush1.bf16.msra.mxu0 %v2700
    %3525 = vmatprep.subr.bf16.mxu0 %v2705
    %3526 = vmatpush1.bf16.msra.mxu0 %v2704
    %3527 = vmatprep.mubr.bf16.mxu0 %v2915
    %3528 = vmatmul.mubr.bf16.gmra.mrb[0].mxu0 %v2914
    %v3529 = vpop.f32.mrb[0].mxu0
    %v3530 = vadd.f32 %v3487, %v3529
    %v3531 = vpop.f32.mrb[0].mxu0
    %v3532 = vadd.f32 %v3489, %v3531
    %v3533 = vpop.f32.mrb[0].mxu0
    %v3534 = vadd.f32 %v3491, %v3533
    %v3535 = vpop.f32.mrb[0].mxu0
    %v3536 = vadd.f32 %v3493, %v3535
    %3537 = vdwg.mxu0
    %3538 = vmatprep.subr.bf16.mxu0 %v2709
    %3539 = vmatpush1.bf16.msra.mxu0 %v2708
    %3540 = vmatprep.subr.bf16.mxu0 %v2713
    %3541 = vmatpush1.bf16.msra.mxu0 %v2712
    %3542 = vmatprep.subr.bf16.mxu0 %v2717
    %3543 = vmatpush1.bf16.msra.mxu0 %v2716
    %3544 = vmatprep.subr.bf16.mxu0 %v2721
    %3545 = vmatpush1.bf16.msra.mxu0 %v2720
    %3546 = vmatprep.subr.bf16.mxu0 %v2725
    %3547 = vmatpush1.bf16.msra.mxu0 %v2724
    %3548 = vmatprep.subr.bf16.mxu0 %v2729
    %3549 = vmatpush1.bf16.msra.mxu0 %v2728
    %3550 = vmatprep.subr.bf16.mxu0 %v2733
    %3551 = vmatpush1.bf16.msra.mxu0 %v2732
    %3552 = vmatprep.subr.bf16.mxu0 %v2737
    %3553 = vmatpush1.bf16.msra.mxu0 %v2736
    %3554 = vmatprep.subr.bf16.mxu0 %v2741
    %3555 = vmatpush1.bf16.msra.mxu0 %v2740
    %3556 = vmatprep.subr.bf16.mxu0 %v2745
    %3557 = vmatpush1.bf16.msra.mxu0 %v2744
    %3558 = vmatprep.subr.bf16.mxu0 %v2749
    %3559 = vmatpush1.bf16.msra.mxu0 %v2748
    %3560 = vmatprep.subr.bf16.mxu0 %v2753
    %3561 = vmatpush1.bf16.msra.mxu0 %v2752
    %3562 = vmatprep.subr.bf16.mxu0 %v2757
    %3563 = vmatpush1.bf16.msra.mxu0 %v2756
    %3564 = vmatprep.subr.bf16.mxu0 %v2761
    %3565 = vmatpush1.bf16.msra.mxu0 %v2760
    %3566 = vmatprep.subr.bf16.mxu0 %v2765
    %3567 = vmatpush1.bf16.msra.mxu0 %v2764
    %3568 = vmatprep.subr.bf16.mxu0 %v2769
    %3569 = vmatpush1.bf16.msra.mxu0 %v2768
    %3570 = vmatprep.mubr.bf16.mxu0 %v2917
    %3571 = vmatmul.mubr.bf16.gmra.mrb[0].mxu0 %v2916
    %v3572 = vpop.f32.mrb[0].mxu0
    %v3573 = vadd.f32 %v3530, %v3572
    %v3574 = vpop.f32.mrb[0].mxu0
    %v3575 = vadd.f32 %v3532, %v3574
    %v3576 = vpop.f32.mrb[0].mxu0
    %v3577 = vadd.f32 %v3534, %v3576
    %v3578 = vpop.f32.mrb[0].mxu0
    %v3579 = vadd.f32 %v3536, %v3578
    %3580 = vdwg.mxu0
    %3581 = vmatprep.subr.bf16.mxu0 %v2773
    %3582 = vmatpush1.bf16.msra.mxu0 %v2772
    %3583 = vmatprep.subr.bf16.mxu0 %v2777
    %3584 = vmatpush1.bf16.msra.mxu0 %v2776
    %3585 = vmatprep.subr.bf16.mxu0 %v2781
    %3586 = vmatpush1.bf16.msra.mxu0 %v2780
    %3587 = vmatprep.subr.bf16.mxu0 %v2785
    %3588 = vmatpush1.bf16.msra.mxu0 %v2784
    %3589 = vmatprep.subr.bf16.mxu0 %v2789
    %3590 = vmatpush1.bf16.msra.mxu0 %v2788
    %3591 = vmatprep.subr.bf16.mxu0 %v2793
    %3592 = vmatpush1.bf16.msra.mxu0 %v2792
    %3593 = vmatprep.subr.bf16.mxu0 %v2797
    %3594 = vmatpush1.bf16.msra.mxu0 %v2796
    %3595 = vmatprep.subr.bf16.mxu0 %v2801
    %3596 = vmatpush1.bf16.msra.mxu0 %v2800
    %3597 = vmatprep.subr.bf16.mxu0 %v2805
    %3598 = vmatpush1.bf16.msra.mxu0 %v2804
    %3599 = vmatprep.subr.bf16.mxu0 %v2809
    %3600 = vmatpush1.bf16.msra.mxu0 %v2808
    %3601 = vmatprep.subr.bf16.mxu0 %v2813
    %3602 = vmatpush1.bf16.msra.mxu0 %v2812
    %3603 = vmatprep.subr.bf16.mxu0 %v2817
    %3604 = vmatpush1.bf16.msra.mxu0 %v2816
    %3605 = vmatprep.subr.bf16.mxu0 %v2821
    %3606 = vmatpush1.bf16.msra.mxu0 %v2820
    %3607 = vmatprep.subr.bf16.mxu0 %v2825
    %3608 = vmatpush1.bf16.msra.mxu0 %v2824
    %3609 = vmatprep.subr.bf16.mxu0 %v2829
    %3610 = vmatpush1.bf16.msra.mxu0 %v2828
    %3611 = vmatprep.subr.bf16.mxu0 %v2833
    %3612 = vmatpush1.bf16.msra.mxu0 %v2832
    %3613 = vmatprep.mubr.bf16.mxu0 %v2919
    %3614 = vmatmul.mubr.bf16.gmra.mrb[0].mxu0 %v2918
    %v3615 = vpop.f32.mrb[0].mxu0
    %v3616 = vadd.f32 %v3573, %v3615
    %v3617 = vpop.f32.mrb[0].mxu0
    %v3618 = vadd.f32 %v3575, %v3617
    %v3619 = vpop.f32.mrb[0].mxu0
    %v3620 = vadd.f32 %v3577, %v3619
    %v3621 = vpop.f32.mrb[0].mxu0
    %v3622 = vadd.f32 %v3579, %v3621
    %3623 = vdwg.mxu0
    %v3624 = vld [vmem:[#allocation25] sm:$0xf]
    %v3625 = vld [vmem:[#allocation27] sm:$0xf]
    %vm3626 = vcmask 1045504
    %v3627 = vsel %vm3626, %v3276, 0.0
    %v3628 = vadd.f32 %v3272, %v3627
    %v3629 = vrot.slane %v3628, 4
    %v3630 = vadd.f32 %v3628, %v3629
    %v3631 = vrot.slane %v3630, 2
    %v3632 = vadd.f32 %v3630, %v3631
    %v3633 = vrot.slane %v3632, 1
    %v3634 = vadd.f32 %v3632, %v3633
    %v3635 = vsel %vm3626, %v3278, 0.0
    %v3636 = vadd.f32 %v3274, %v3635
    %v3637 = vrot.slane %v3636, 4
    %v3638 = vadd.f32 %v3636, %v3637
    %v3639 = vrot.slane %v3638, 2
    %v3640 = vadd.f32 %v3638, %v3639
    %v3641 = vrot.slane %v3640, 1
    %v3642 = vadd.f32 %v3640, %v3641
    %v3643 = vsel %vm3626, %v3620, 0.0
    %v3644 = vadd.f32 %v3616, %v3643
    %v3645 = vrot.slane %v3644, 4
    %v3646 = vadd.f32 %v3644, %v3645
    %v3647 = vrot.slane %v3646, 2
    %v3648 = vadd.f32 %v3646, %v3647
    %v3649 = vrot.slane %v3648, 1
    %v3650 = vadd.f32 %v3648, %v3649
    %v3651 = vsel %vm3626, %v3622, 0.0
    %v3652 = vadd.f32 %v3618, %v3651
    %v3653 = vrot.slane %v3652, 4
    %v3654 = vadd.f32 %v3652, %v3653
    %v3655 = vrot.slane %v3654, 2
    %v3656 = vadd.f32 %v3654, %v3655
    %v3657 = vrot.slane %v3656, 1
    %v3658 = vadd.f32 %v3656, %v3657
    %v3659 = vmul.f32 %v3634, 0.071428575
    %v3660 = vmul.f32 %v3642, 0.071428575
    %v3661 = vmul.f32 %v3650, 0.071428575
    %v3662 = vmul.f32 %v3658, 0.071428575
    %v3663 = vsub.f32 %v3272, %v3659
    %v3664 = vsub.f32 %v3274, %v3660
    %v3665 = vsub.f32 %v3616, %v3661
    %v3666 = vsub.f32 %v3618, %v3662
    %v3667 = vsub.f32 %v3276, %v3659
    %v3668 = vsub.f32 %v3278, %v3660
    %v3669 = vsub.f32 %v3620, %v3661
    %v3670 = vsub.f32 %v3622, %v3662
    %v3671 = vmul.f32 %v3663, %v3663
    %v3672 = vmul.f32 %v3664, %v3664
    %v3673 = vmul.f32 %v3665, %v3665
    %v3674 = vmul.f32 %v3666, %v3666
    %v3675 = vmul.f32 %v3667, %v3667
    %v3676 = vmul.f32 %v3668, %v3668
    %v3677 = vmul.f32 %v3669, %v3669
    %v3678 = vmul.f32 %v3670, %v3670
    %v3679 = vsel %vm3626, %v3675, 0.0
    %v3680 = vadd.f32 %v3671, %v3679
    %v3681 = vrot.slane %v3680, 4
    %v3682 = vadd.f32 %v3680, %v3681
    %v3683 = vrot.slane %v3682, 2
    %v3684 = vadd.f32 %v3682, %v3683
    %v3685 = vrot.slane %v3684, 1
    %v3686 = vadd.f32 %v3684, %v3685
    %v3687 = vsel %vm3626, %v3676, 0.0
    %v3688 = vadd.f32 %v3672, %v3687
    %v3689 = vrot.slane %v3688, 4
    %v3690 = vadd.f32 %v3688, %v3689
    %v3691 = vrot.slane %v3690, 2
    %v3692 = vadd.f32 %v3690, %v3691
    %v3693 = vrot.slane %v3692, 1
    %v3694 = vadd.f32 %v3692, %v3693
    %v3695 = vsel %vm3626, %v3677, 0.0
    %v3696 = vadd.f32 %v3673, %v3695
    %v3697 = vrot.slane %v3696, 4
    %v3698 = vadd.f32 %v3696, %v3697
    %v3699 = vrot.slane %v3698, 2
    %v3700 = vadd.f32 %v3698, %v3699
    %v3701 = vrot.slane %v3700, 1
    %v3702 = vadd.f32 %v3700, %v3701
    %v3703 = vsel %vm3626, %v3678, 0.0
    %v3704 = vadd.f32 %v3674, %v3703
    %v3705 = vrot.slane %v3704, 4
    %v3706 = vadd.f32 %v3704, %v3705
    %v3707 = vrot.slane %v3706, 2
    %v3708 = vadd.f32 %v3706, %v3707
    %v3709 = vrot.slane %v3708, 1
    %v3710 = vadd.f32 %v3708, %v3709
    %v3711 = vmul.f32 %v3686, 0.071428575
    %v3712 = vmul.f32 %v3694, 0.071428575
    %v3713 = vmul.f32 %v3702, 0.071428575
    %v3714 = vmul.f32 %v3710, 0.071428575
    %v3715 = vadd.f32 %v3711, 1e-05
    %v3716 = vadd.f32 %v3712, 1e-05
    %v3717 = vadd.f32 %v3713, 1e-05
    %v3718 = vadd.f32 %v3714, 1e-05
    %v3719 = vrsqrt.pop %v3715
    %v3720 = vrsqrt.pop %v3716
    %v3721 = vrsqrt.pop %v3717
    %v3722 = vrsqrt.pop %v3718
    %v3723 = vmul.f32 %v3663, %v3719
    %v3724 = vmul.f32 %v3664, %v3720
    %v3725 = vmul.f32 %v3665, %v3721
    %v3726 = vmul.f32 %v3666, %v3722
    %v3727 = vmul.f32 %v3667, %v3719
    %v3728 = vmul.f32 %v3668, %v3720
    %v3729 = vmul.f32 %v3669, %v3721
    %v3730 = vmul.f32 %v3670, %v3722
    %v3732 = vlaneseq
    %v3733 = vshrl.u32 %v3732, 7
    %v3734 = vsub.s32 0, %v3733
    %v3735 = vrot.slane %v3624, %v3734
    %v3736 = vlaneseq
    %v3737 = vshrl.u32 %v3736, 7
    %v3738 = vsub.s32 1, %v3737
    %v3739 = vrot.slane %v3624, %v3738
    %v3740 = vlaneseq
    %v3741 = vshrl.u32 %v3740, 7
    %v3742 = vsub.s32 2, %v3741
    %v3743 = vrot.slane %v3624, %v3742
    %v3744 = vlaneseq
    %v3745 = vshrl.u32 %v3744, 7
    %v3746 = vsub.s32 3, %v3745
    %v3747 = vrot.slane %v3624, %v3746
    %v3752 = vmul.f32 %v3723, %v3735
    %v3753 = vmul.f32 %v3724, %v3739
    %v3754 = vmul.f32 %v3725, %v3743
    %v3755 = vmul.f32 %v3726, %v3747
    %v3756 = vmul.f32 %v3727, %v3735
    %v3757 = vmul.f32 %v3728, %v3739
    %v3758 = vmul.f32 %v3729, %v3743
    %v3759 = vmul.f32 %v3730, %v3747
    %v3761 = vlaneseq
    %v3762 = vshrl.u32 %v3761, 7
    %v3763 = vsub.s32 0, %v3762
    %v3764 = vrot.slane %v3625, %v3763
    %v3765 = vlaneseq
    %v3766 = vshrl.u32 %v3765, 7
    %v3767 = vsub.s32 1, %v3766
    %v3768 = vrot.slane %v3625, %v3767
    %v3769 = vlaneseq
    %v3770 = vshrl.u32 %v3769, 7
    %v3771 = vsub.s32 2, %v3770
    %v3772 = vrot.slane %v3625, %v3771
    %v3773 = vlaneseq
    %v3774 = vshrl.u32 %v3773, 7
    %v3775 = vsub.s32 3, %v3774
    %v3776 = vrot.slane %v3625, %v3775
    %v3781 = vadd.f32 %v3752, %v3764
    %v3782 = vadd.f32 %v3753, %v3768
    %v3783 = vadd.f32 %v3754, %v3772
    %v3784 = vadd.f32 %v3755, %v3776
    %v3785 = vadd.f32 %v3756, %v3764
    %v3786 = vadd.f32 %v3757, %v3768
    %v3787 = vadd.f32 %v3758, %v3772
    %v3788 = vadd.f32 %v3759, %v3776
    %vm3789 = vcmp.ge.f32.partialorder %v3781, 0.0
    %vm3790 = vcmp.ge.f32.partialorder %v3782, 0.0
    %vm3791 = vcmp.ge.f32.partialorder %v3783, 0.0
    %vm3792 = vcmp.ge.f32.partialorder %v3784, 0.0
    %vm3793 = vcmp.ge.f32.partialorder %v3785, 0.0
    %vm3794 = vcmp.ge.f32.partialorder %v3786, 0.0
    %vm3795 = vcmp.ge.f32.partialorder %v3787, 0.0
    %vm3796 = vcmp.ge.f32.partialorder %v3788, 0.0
    %v3797 = vmul.f32 %v3781, 0.01
    %v3798 = vmul.f32 %v3782, 0.01
    %v3799 = vmul.f32 %v3783, 0.01
    %v3800 = vmul.f32 %v3784, 0.01
    %v3801 = vmul.f32 %v3785, 0.01
    %v3802 = vmul.f32 %v3786, 0.01
    %v3803 = vmul.f32 %v3787, 0.01
    %v3804 = vmul.f32 %v3788, 0.01
    %v3805 = vsel %vm3789, %v3781, %v3797
    %v3806 = vsel %vm3790, %v3782, %v3798
    %v3807 = vsel %vm3791, %v3783, %v3799
    %v3808 = vsel %vm3792, %v3784, %v3800
    %v3809 = vsel %vm3793, %v3785, %v3801
    %v3810 = vsel %vm3794, %v3786, %v3802
    %v3811 = vsel %vm3795, %v3787, %v3803
    %v3812 = vsel %vm3796, %v3788, %v3804
    %v3813 = vld [vmem:[#allocation28] ss:$2 sm:$0xf]
    %v3815 = vlaneseq
    %v3816 = vshrl.u32 %v3815, 7
    %v3817 = vsub.s32 0, %v3816
    %v3818 = vrot.slane %v3813, %v3817
    %v3819 = vlaneseq
    %v3820 = vshrl.u32 %v3819, 7
    %v3821 = vsub.s32 1, %v3820
    %v3822 = vrot.slane %v3813, %v3821
    %v3823 = vlaneseq
    %v3824 = vshrl.u32 %v3823, 7
    %v3825 = vsub.s32 2, %v3824
    %v3826 = vrot.slane %v3813, %v3825
    %v3827 = vlaneseq
    %v3828 = vshrl.u32 %v3827, 7
    %v3829 = vsub.s32 3, %v3828
    %v3830 = vrot.slane %v3813, %v3829
    %v3835 = vmul.f32 %v3805, %v3818
    %v3836 = vmul.f32 %v3806, %v3822
    %v3837 = vmul.f32 %v3807, %v3826
    %v3838 = vmul.f32 %v3808, %v3830
    %vm3839 = vcmask 1041408
    %v3840 = vsel %vm3839, %v3835, 0.0
    %v3841 = vsel %vm3839, %v3836, 0.0
    %v3842 = vadd.f32 %v3840, %v3841
    %v3843 = vsel %vm3839, %v3837, 0.0
    %v3844 = vadd.f32 %v3842, %v3843
    %v3845 = vsel %vm3839, %v3838, 0.0
    %v3846 = vadd.f32 %v3844, %v3845
    %3847 = vadd.xlane.f32.xlu0 %v3846
    %v3848 = vpop.xlane.xlu0 %3847
    %s3849 = scalar_lea.vmem [#allocation28], 8
    %v3850 = vld [vmem:[%s3849] ss:$2 sm:$0xf]
    %v3852 = vlaneseq
    %v3853 = vshrl.u32 %v3852, 7
    %v3854 = vsub.s32 0, %v3853
    %v3855 = vrot.slane %v3850, %v3854
    %v3856 = vlaneseq
    %v3857 = vshrl.u32 %v3856, 7
    %v3858 = vsub.s32 1, %v3857
    %v3859 = vrot.slane %v3850, %v3858
    %v3860 = vlaneseq
    %v3861 = vshrl.u32 %v3860, 7
    %v3862 = vsub.s32 2, %v3861
    %v3863 = vrot.slane %v3850, %v3862
    %v3864 = vlaneseq
    %v3865 = vshrl.u32 %v3864, 7
    %v3866 = vsub.s32 3, %v3865
    %v3867 = vrot.slane %v3850, %v3866
    %v3872 = vmul.f32 %v3805, %v3855
    %v3873 = vmul.f32 %v3806, %v3859
    %v3874 = vmul.f32 %v3807, %v3863
    %v3875 = vmul.f32 %v3808, %v3867
    %vm3876 = vcmask 1043458
    %v3877 = vsel %vm3876, %v3872, 0.0
    %v3878 = vsel %vm3876, %v3873, 0.0
    %v3879 = vadd.f32 %v3877, %v3878
    %v3880 = vsel %vm3876, %v3874, 0.0
    %v3881 = vadd.f32 %v3879, %v3880
    %v3882 = vsel %vm3876, %v3875, 0.0
    %v3883 = vadd.f32 %v3881, %v3882
    %3884 = vadd.xlane.f32.xlu0 %v3883
    %v3885 = vpop.xlane.xlu0 %3884
    %v3887 = vrot.slane %v3885, 2
    %v3889 = vadd.f32 %v3848, %v3887
    %s3890 = scalar_lea.vmem [#allocation28], 16
    %v3891 = vld [vmem:[%s3890] ss:$2 sm:$0xf]
    %v3893 = vlaneseq
    %v3894 = vshrl.u32 %v3893, 7
    %v3895 = vsub.s32 0, %v3894
    %v3896 = vrot.slane %v3891, %v3895
    %v3897 = vlaneseq
    %v3898 = vshrl.u32 %v3897, 7
    %v3899 = vsub.s32 1, %v3898
    %v3900 = vrot.slane %v3891, %v3899
    %v3901 = vlaneseq
    %v3902 = vshrl.u32 %v3901, 7
    %v3903 = vsub.s32 2, %v3902
    %v3904 = vrot.slane %v3891, %v3903
    %v3905 = vlaneseq
    %v3906 = vshrl.u32 %v3905, 7
    %v3907 = vsub.s32 3, %v3906
    %v3908 = vrot.slane %v3891, %v3907
    %v3913 = vmul.f32 %v3805, %v3896
    %v3914 = vmul.f32 %v3806, %v3900
    %v3915 = vmul.f32 %v3807, %v3904
    %v3916 = vmul.f32 %v3808, %v3908
    %vm3917 = vcmask 1045508
    %v3918 = vsel %vm3917, %v3913, 0.0
    %v3919 = vsel %vm3917, %v3914, 0.0
    %v3920 = vadd.f32 %v3918, %v3919
    %v3921 = vsel %vm3917, %v3915, 0.0
    %v3922 = vadd.f32 %v3920, %v3921
    %v3923 = vsel %vm3917, %v3916, 0.0
    %v3924 = vadd.f32 %v3922, %v3923
    %3925 = vadd.xlane.f32.xlu0 %v3924
    %v3926 = vpop.xlane.xlu0 %3925
    %v3928 = vrot.slane %v3926, 4
    %v3930 = vadd.f32 %v3889, %v3928
    %s3931 = scalar_lea.vmem [#allocation28], 24
    %v3932 = vld [vmem:[%s3931] ss:$2 sm:$0xf]
    %v3934 = vlaneseq
    %v3935 = vshrl.u32 %v3934, 7
    %v3936 = vsub.s32 0, %v3935
    %v3937 = vrot.slane %v3932, %v3936
    %v3938 = vlaneseq
    %v3939 = vshrl.u32 %v3938, 7
    %v3940 = vsub.s32 1, %v3939
    %v3941 = vrot.slane %v3932, %v3940
    %v3942 = vlaneseq
    %v3943 = vshrl.u32 %v3942, 7
    %v3944 = vsub.s32 2, %v3943
    %v3945 = vrot.slane %v3932, %v3944
    %v3946 = vlaneseq
    %v3947 = vshrl.u32 %v3946, 7
    %v3948 = vsub.s32 3, %v3947
    %v3949 = vrot.slane %v3932, %v3948
    %v3954 = vmul.f32 %v3805, %v3937
    %v3955 = vmul.f32 %v3806, %v3941
    %v3956 = vmul.f32 %v3807, %v3945
    %v3957 = vmul.f32 %v3808, %v3949
    %vm3958 = vcmask 1047558
    %v3959 = vsel %vm3958, %v3954, 0.0
    %v3960 = vsel %vm3958, %v3955, 0.0
    %v3961 = vadd.f32 %v3959, %v3960
    %v3962 = vsel %vm3958, %v3956, 0.0
    %v3963 = vadd.f32 %v3961, %v3962
    %v3964 = vsel %vm3958, %v3957, 0.0
    %v3965 = vadd.f32 %v3963, %v3964
    %3966 = vadd.xlane.f32.xlu0 %v3965
    %v3967 = vpop.xlane.xlu0 %3966
    %v3969 = vrot.slane %v3967, 6
    %v3971 = vadd.f32 %v3930, %v3969
    %s3972 = scalar_lea.vmem [#allocation28], 32
    %v3973 = vld [vmem:[%s3972] ss:$2 sm:$0xf]
    %v3975 = vlaneseq
    %v3976 = vshrl.u32 %v3975, 7
    %v3977 = vsub.s32 0, %v3976
    %v3978 = vrot.slane %v3973, %v3977
    %v3979 = vlaneseq
    %v3980 = vshrl.u32 %v3979, 7
    %v3981 = vsub.s32 1, %v3980
    %v3982 = vrot.slane %v3973, %v3981
    %v3983 = vlaneseq
    %v3984 = vshrl.u32 %v3983, 7
    %v3985 = vsub.s32 2, %v3984
    %v3986 = vrot.slane %v3973, %v3985
    %v3987 = vlaneseq
    %v3988 = vshrl.u32 %v3987, 7
    %v3989 = vsub.s32 3, %v3988
    %v3990 = vrot.slane %v3973, %v3989
    %v3995 = vmul.f32 %v3809, %v3978
    %v3996 = vmul.f32 %v3810, %v3982
    %v3997 = vmul.f32 %v3811, %v3986
    %v3998 = vmul.f32 %v3812, %v3990
    %v3999 = vsel %vm3839, %v3995, 0.0
    %v4000 = vsel %vm3839, %v3996, 0.0
    %v4001 = vadd.f32 %v3999, %v4000
    %v4002 = vsel %vm3839, %v3997, 0.0
    %v4003 = vadd.f32 %v4001, %v4002
    %v4004 = vsel %vm3839, %v3998, 0.0
    %v4005 = vadd.f32 %v4003, %v4004
    %4006 = vadd.xlane.f32.xlu0 %v4005
    %v4007 = vpop.xlane.xlu0 %4006
    %v4008 = vadd.f32 %v3971, %v4007
    %s4009 = scalar_lea.vmem [#allocation28], 40
    %v4010 = vld [vmem:[%s4009] ss:$2 sm:$0xf]
    %v4012 = vlaneseq
    %v4013 = vshrl.u32 %v4012, 7
    %v4014 = vsub.s32 0, %v4013
    %v4015 = vrot.slane %v4010, %v4014
    %v4016 = vlaneseq
    %v4017 = vshrl.u32 %v4016, 7
    %v4018 = vsub.s32 1, %v4017
    %v4019 = vrot.slane %v4010, %v4018
    %v4020 = vlaneseq
    %v4021 = vshrl.u32 %v4020, 7
    %v4022 = vsub.s32 2, %v4021
    %v4023 = vrot.slane %v4010, %v4022
    %v4024 = vlaneseq
    %v4025 = vshrl.u32 %v4024, 7
    %v4026 = vsub.s32 3, %v4025
    %v4027 = vrot.slane %v4010, %v4026
    %v4032 = vmul.f32 %v3809, %v4015
    %v4033 = vmul.f32 %v3810, %v4019
    %v4034 = vmul.f32 %v3811, %v4023
    %v4035 = vmul.f32 %v3812, %v4027
    %v4036 = vsel %vm3876, %v4032, 0.0
    %v4037 = vsel %vm3876, %v4033, 0.0
    %v4038 = vadd.f32 %v4036, %v4037
    %v4039 = vsel %vm3876, %v4034, 0.0
    %v4040 = vadd.f32 %v4038, %v4039
    %v4041 = vsel %vm3876, %v4035, 0.0
    %v4042 = vadd.f32 %v4040, %v4041
    %4043 = vadd.xlane.f32.xlu0 %v4042
    %v4044 = vpop.xlane.xlu0 %4043
    %v4046 = vrot.slane %v4044, 2
    %v4048 = vadd.f32 %v4008, %v4046
    %s4049 = scalar_lea.vmem [#allocation28], 48
    %v4050 = vld [vmem:[%s4049] ss:$2 sm:$0xf]
    %v4052 = vlaneseq
    %v4053 = vshrl.u32 %v4052, 7
    %v4054 = vsub.s32 0, %v4053
    %v4055 = vrot.slane %v4050, %v4054
    %v4056 = vlaneseq
    %v4057 = vshrl.u32 %v4056, 7
    %v4058 = vsub.s32 1, %v4057
    %v4059 = vrot.slane %v4050, %v4058
    %v4060 = vlaneseq
    %v4061 = vshrl.u32 %v4060, 7
    %v4062 = vsub.s32 2, %v4061
    %v4063 = vrot.slane %v4050, %v4062
    %v4064 = vlaneseq
    %v4065 = vshrl.u32 %v4064, 7
    %v4066 = vsub.s32 3, %v4065
    %v4067 = vrot.slane %v4050, %v4066
    %v4072 = vmul.f32 %v3809, %v4055
    %v4073 = vmul.f32 %v3810, %v4059
    %v4074 = vmul.f32 %v3811, %v4063
    %v4075 = vmul.f32 %v3812, %v4067
    %v4076 = vsel %vm3917, %v4072, 0.0
    %v4077 = vsel %vm3917, %v4073, 0.0
    %v4078 = vadd.f32 %v4076, %v4077
    %v4079 = vsel %vm3917, %v4074, 0.0
    %v4080 = vadd.f32 %v4078, %v4079
    %v4081 = vsel %vm3917, %v4075, 0.0
    %v4082 = vadd.f32 %v4080, %v4081
    %4083 = vadd.xlane.f32.xlu0 %v4082
    %v4084 = vpop.xlane.xlu0 %4083
    %v4086 = vrot.slane %v4084, 4
    %v4088 = vadd.f32 %v4048, %v4086
    %v4089 = vld [vmem:[#allocation30] sm:$0x1]
    %v4091 = vlaneseq
    %v4092 = vshrl.u32 %v4091, 7
    %v4093 = vsub.s32 0, %v4092
    %v4094 = vrot.slane %v4089, %v4093
    %v4096 = vadd.f32 %v4088, %v4094
    %vm4097 = vcmask 1024
    %4098 = vst.msk [vmem:[#allocation31] sm:$0x3] %vm4097, %v4096
    %s4099 = scalar_lea.vmem [#allocation28], 1
    %v4100 = vld [vmem:[%s4099] ss:$2 sm:$0xf]
    %v4102 = vlaneseq
    %v4103 = vshrl.u32 %v4102, 7
    %v4104 = vsub.s32 0, %v4103
    %v4105 = vrot.slane %v4100, %v4104
    %v4106 = vlaneseq
    %v4107 = vshrl.u32 %v4106, 7
    %v4108 = vsub.s32 1, %v4107
    %v4109 = vrot.slane %v4100, %v4108
    %v4110 = vlaneseq
    %v4111 = vshrl.u32 %v4110, 7
    %v4112 = vsub.s32 2, %v4111
    %v4113 = vrot.slane %v4100, %v4112
    %v4114 = vlaneseq
    %v4115 = vshrl.u32 %v4114, 7
    %v4116 = vsub.s32 3, %v4115
    %v4117 = vrot.slane %v4100, %v4116
    %v4122 = vmul.f32 %v3805, %v4105
    %v4123 = vmul.f32 %v3806, %v4109
    %v4124 = vmul.f32 %v3807, %v4113
    %v4125 = vmul.f32 %v3808, %v4117
    %v4126 = vsel %vm3839, %v4122, 0.0
    %v4127 = vsel %vm3839, %v4123, 0.0
    %v4128 = vadd.f32 %v4126, %v4127
    %v4129 = vsel %vm3839, %v4124, 0.0
    %v4130 = vadd.f32 %v4128, %v4129
    %v4131 = vsel %vm3839, %v4125, 0.0
    %v4132 = vadd.f32 %v4130, %v4131
    %4133 = vadd.xlane.f32.xlu0 %v4132
    %v4134 = vpop.xlane.xlu0 %4133
    %s4135 = scalar_lea.vmem [#allocation28], 9
    %v4136 = vld [vmem:[%s4135] ss:$2 sm:$0xf]
    %v4138 = vlaneseq
    %v4139 = vshrl.u32 %v4138, 7
    %v4140 = vsub.s32 0, %v4139
    %v4141 = vrot.slane %v4136, %v4140
    %v4142 = vlaneseq
    %v4143 = vshrl.u32 %v4142, 7
    %v4144 = vsub.s32 1, %v4143
    %v4145 = vrot.slane %v4136, %v4144
    %v4146 = vlaneseq
    %v4147 = vshrl.u32 %v4146, 7
    %v4148 = vsub.s32 2, %v4147
    %v4149 = vrot.slane %v4136, %v4148
    %v4150 = vlaneseq
    %v4151 = vshrl.u32 %v4150, 7
    %v4152 = vsub.s32 3, %v4151
    %v4153 = vrot.slane %v4136, %v4152
    %v4158 = vmul.f32 %v3805, %v4141
    %v4159 = vmul.f32 %v3806, %v4145
    %v4160 = vmul.f32 %v3807, %v4149
    %v4161 = vmul.f32 %v3808, %v4153
    %v4162 = vsel %vm3876, %v4158, 0.0
    %v4163 = vsel %vm3876, %v4159, 0.0
    %v4164 = vadd.f32 %v4162, %v4163
    %v4165 = vsel %vm3876, %v4160, 0.0
    %v4166 = vadd.f32 %v4164, %v4165
    %v4167 = vsel %vm3876, %v4161, 0.0
    %v4168 = vadd.f32 %v4166, %v4167
    %4169 = vadd.xlane.f32.xlu0 %v4168
    %v4170 = vpop.xlane.xlu0 %4169
    %v4172 = vrot.slane %v4170, 2
    %v4174 = vadd.f32 %v4134, %v4172
    %s4175 = scalar_lea.vmem [#allocation28], 17
    %v4176 = vld [vmem:[%s4175] ss:$2 sm:$0xf]
    %v4178 = vlaneseq
    %v4179 = vshrl.u32 %v4178, 7
    %v4180 = vsub.s32 0, %v4179
    %v4181 = vrot.slane %v4176, %v4180
    %v4182 = vlaneseq
    %v4183 = vshrl.u32 %v4182, 7
    %v4184 = vsub.s32 1, %v4183
    %v4185 = vrot.slane %v4176, %v4184
    %v4186 = vlaneseq
    %v4187 = vshrl.u32 %v4186, 7
    %v4188 = vsub.s32 2, %v4187
    %v4189 = vrot.slane %v4176, %v4188
    %v4190 = vlaneseq
    %v4191 = vshrl.u32 %v4190, 7
    %v4192 = vsub.s32 3, %v4191
    %v4193 = vrot.slane %v4176, %v4192
    %v4198 = vmul.f32 %v3805, %v4181
    %v4199 = vmul.f32 %v3806, %v4185
    %v4200 = vmul.f32 %v3807, %v4189
    %v4201 = vmul.f32 %v3808, %v4193
    %v4202 = vsel %vm3917, %v4198, 0.0
    %v4203 = vsel %vm3917, %v4199, 0.0
    %v4204 = vadd.f32 %v4202, %v4203
    %v4205 = vsel %vm3917, %v4200, 0.0
    %v4206 = vadd.f32 %v4204, %v4205
    %v4207 = vsel %vm3917, %v4201, 0.0
    %v4208 = vadd.f32 %v4206, %v4207
    %4209 = vadd.xlane.f32.xlu0 %v4208
    %v4210 = vpop.xlane.xlu0 %4209
    %v4212 = vrot.slane %v4210, 4
    %v4214 = vadd.f32 %v4174, %v4212
    %s4215 = scalar_lea.vmem [#allocation28], 25
    %v4216 = vld [vmem:[%s4215] ss:$2 sm:$0xf]
    %v4218 = vlaneseq
    %v4219 = vshrl.u32 %v4218, 7
    %v4220 = vsub.s32 0, %v4219
    %v4221 = vrot.slane %v4216, %v4220
    %v4222 = vlaneseq
    %v4223 = vshrl.u32 %v4222, 7
    %v4224 = vsub.s32 1, %v4223
    %v4225 = vrot.slane %v4216, %v4224
    %v4226 = vlaneseq
    %v4227 = vshrl.u32 %v4226, 7
    %v4228 = vsub.s32 2, %v4227
    %v4229 = vrot.slane %v4216, %v4228
    %v4230 = vlaneseq
    %v4231 = vshrl.u32 %v4230, 7
    %v4232 = vsub.s32 3, %v4231
    %v4233 = vrot.slane %v4216, %v4232
    %v4238 = vmul.f32 %v3805, %v4221
    %v4239 = vmul.f32 %v3806, %v4225
    %v4240 = vmul.f32 %v3807, %v4229
    %v4241 = vmul.f32 %v3808, %v4233
    %v4242 = vsel %vm3958, %v4238, 0.0
    %v4243 = vsel %vm3958, %v4239, 0.0
    %v4244 = vadd.f32 %v4242, %v4243
    %v4245 = vsel %vm3958, %v4240, 0.0
    %v4246 = vadd.f32 %v4244, %v4245
    %v4247 = vsel %vm3958, %v4241, 0.0
    %v4248 = vadd.f32 %v4246, %v4247
    %4249 = vadd.xlane.f32.xlu0 %v4248
    %v4250 = vpop.xlane.xlu0 %4249
    %v4252 = vrot.slane %v4250, 6
    %v4254 = vadd.f32 %v4214, %v4252
    %s4255 = scalar_lea.vmem [#allocation28], 33
    %v4256 = vld [vmem:[%s4255] ss:$2 sm:$0xf]
    %v4258 = vlaneseq
    %v4259 = vshrl.u32 %v4258, 7
    %v4260 = vsub.s32 0, %v4259
    %v4261 = vrot.slane %v4256, %v4260
    %v4262 = vlaneseq
    %v4263 = vshrl.u32 %v4262, 7
    %v4264 = vsub.s32 1, %v4263
    %v4265 = vrot.slane %v4256, %v4264
    %v4266 = vlaneseq
    %v4267 = vshrl.u32 %v4266, 7
    %v4268 = vsub.s32 2, %v4267
    %v4269 = vrot.slane %v4256, %v4268
    %v4270 = vlaneseq
    %v4271 = vshrl.u32 %v4270, 7
    %v4272 = vsub.s32 3, %v4271
    %v4273 = vrot.slane %v4256, %v4272
    %v4278 = vmul.f32 %v3809, %v4261
    %v4279 = vmul.f32 %v3810, %v4265
    %v4280 = vmul.f32 %v3811, %v4269
    %v4281 = vmul.f32 %v3812, %v4273
    %v4282 = vsel %vm3839, %v4278, 0.0
    %v4283 = vsel %vm3839, %v4279, 0.0
    %v4284 = vadd.f32 %v4282, %v4283
    %v4285 = vsel %vm3839, %v4280, 0.0
    %v4286 = vadd.f32 %v4284, %v4285
    %v4287 = vsel %vm3839, %v4281, 0.0
    %v4288 = vadd.f32 %v4286, %v4287
    %4289 = vadd.xlane.f32.xlu0 %v4288
    %v4290 = vpop.xlane.xlu0 %4289
    %v4291 = vadd.f32 %v4254, %v4290
    %s4292 = scalar_lea.vmem [#allocation28], 41
    %v4293 = vld [vmem:[%s4292] ss:$2 sm:$0xf]
    %v4295 = vlaneseq
    %v4296 = vshrl.u32 %v4295, 7
    %v4297 = vsub.s32 0, %v4296
    %v4298 = vrot.slane %v4293, %v4297
    %v4299 = vlaneseq
    %v4300 = vshrl.u32 %v4299, 7
    %v4301 = vsub.s32 1, %v4300
    %v4302 = vrot.slane %v4293, %v4301
    %v4303 = vlaneseq
    %v4304 = vshrl.u32 %v4303, 7
    %v4305 = vsub.s32 2, %v4304
    %v4306 = vrot.slane %v4293, %v4305
    %v4307 = vlaneseq
    %v4308 = vshrl.u32 %v4307, 7
    %v4309 = vsub.s32 3, %v4308
    %v4310 = vrot.slane %v4293, %v4309
    %v4315 = vmul.f32 %v3809, %v4298
    %v4316 = vmul.f32 %v3810, %v4302
    %v4317 = vmul.f32 %v3811, %v4306
    %v4318 = vmul.f32 %v3812, %v4310
    %v4319 = vsel %vm3876, %v4315, 0.0
    %v4320 = vsel %vm3876, %v4316, 0.0
    %v4321 = vadd.f32 %v4319, %v4320
    %v4322 = vsel %vm3876, %v4317, 0.0
    %v4323 = vadd.f32 %v4321, %v4322
    %v4324 = vsel %vm3876, %v4318, 0.0
    %v4325 = vadd.f32 %v4323, %v4324
    %4326 = vadd.xlane.f32.xlu0 %v4325
    %v4327 = vpop.xlane.xlu0 %4326
    %v4329 = vrot.slane %v4327, 2
    %v4331 = vadd.f32 %v4291, %v4329
    %s4332 = scalar_lea.vmem [#allocation28], 49
    %v4333 = vld [vmem:[%s4332] ss:$2 sm:$0xf]
    %v4335 = vlaneseq
    %v4336 = vshrl.u32 %v4335, 7
    %v4337 = vsub.s32 0, %v4336
    %v4338 = vrot.slane %v4333, %v4337
    %v4339 = vlaneseq
    %v4340 = vshrl.u32 %v4339, 7
    %v4341 = vsub.s32 1, %v4340
    %v4342 = vrot.slane %v4333, %v4341
    %v4343 = vlaneseq
    %v4344 = vshrl.u32 %v4343, 7
    %v4345 = vsub.s32 2, %v4344
    %v4346 = vrot.slane %v4333, %v4345
    %v4347 = vlaneseq
    %v4348 = vshrl.u32 %v4347, 7
    %v4349 = vsub.s32 3, %v4348
    %v4350 = vrot.slane %v4333, %v4349
    %v4355 = vmul.f32 %v3809, %v4338
    %v4356 = vmul.f32 %v3810, %v4342
    %v4357 = vmul.f32 %v3811, %v4346
    %v4358 = vmul.f32 %v3812, %v4350
    %v4359 = vsel %vm3917, %v4355, 0.0
    %v4360 = vsel %vm3917, %v4356, 0.0
    %v4361 = vadd.f32 %v4359, %v4360
    %v4362 = vsel %vm3917, %v4357, 0.0
    %v4363 = vadd.f32 %v4361, %v4362
    %v4364 = vsel %vm3917, %v4358, 0.0
    %v4365 = vadd.f32 %v4363, %v4364
    %4366 = vadd.xlane.f32.xlu0 %v4365
    %v4367 = vpop.xlane.xlu0 %4366
    %v4369 = vrot.slane %v4367, 4
    %v4371 = vadd.f32 %v4331, %v4369
    %v4372 = vld [vmem:[#allocation30] sm:$0x1]
    %v4374 = vlaneseq
    %v4375 = vshrl.u32 %v4374, 7
    %v4376 = vsub.s32 0, %v4375
    %v4377 = vrot.slane %v4372, %v4376
    %4378 = vrot.lane.b32.xlu0 %v4377, 127
    %v4379 = vpop.permute.xlu0 %4378
    %v4381 = vadd.f32 %v4371, %v4379
    %4383 = vrot.lane.b32.xlu0 %v4381, 1
    %v4384 = vpop.permute.xlu0 %4383
    %vm4386 = vcmask 9224
    %4387 = vst.msk [vmem:[#allocation31] sm:$0x3] %vm4386, %v4384
    // Predicated region
    $region126: #{classifier_forward.1} parent=1 // pred_check
      _
    $region127: #{classifier_forward.1} parent=1 // pred_check_branch
      %4389 = sbr.rel (0) target = $region129
    $region128: #{classifier_forward.1} parent=1 // pred_region
      %s4391 = ssub.s32 32, 32
      %4392 = vsyncadd [#allocation9], %s4391
      %s4394 = sshll.u32 [#allocation31], 4
      %s4395 = int_to_ptr.vmem [resolvable:$true] %s4394
      %4397 = dma.vmem_to_hbm [thread:$0]  %s4395, 32, %s17, [#allocation9]
    $region129: #{classifier_forward.1} parent=1 // pred_fallthru
      _
    // Predicated region
    $region130: #{classifier_forward.1} parent=1 // pred_check
      _
    $region131: #{classifier_forward.1} parent=1 // pred_check_branch
      %4399 = sbr.rel (0) target = $region133
    $region132: #{classifier_forward.1} parent=1 // pred_region
      %4400 = dma.done [#allocation9], 32
    $region133: #{classifier_forward.1} parent=1 // pred_fallthru
      _
    %4401 = vsyncpa [#allocation8], 1
    %4402 = vsyncpa [#allocation11], 1
    %4403 = vsyncpa [#allocation14], 1
    %4404 = vsyncpa [#allocation17], 1
    %4405 = vsyncpa [#allocation20], 1
    %4406 = vsyncpa [#allocation23], 1
    %4407 = vsyncpa [#allocation26], 1
    %4408 = vsyncpa [#allocation29], 1
    %4409 = vsyncpa [#allocation9], 1
  %4410 = vsyncmov [#allocation3]
  %s4411 = vpop.sfrf %4410
  %p4412 = scmp.eq.s32.totalorder %s4411, 0
  %p4413 = pneg %p4412
  %4415 = shalt.err (%p4413)

</llo_original>
